<compile_context>
chip_gen: v7x
topology: tpu7x:2x2x1
jax: 0.10.0
libtpu: 0.0.40
codegen_flags: <defaults>
</compile_context>

<pallas_src>
import jax
import jax.numpy as jnp
from jax.experimental import pallas as pl
from jax.experimental.pallas import tpu as pltpu

BN_EPS = 1e-5
VMEM_LIMIT_BYTES = 32 * 1024 * 1024   # explicit; safe on v5e/v6e and v7x (64 MiB phys)


# ---------------------------------------------------------------------------
# Geometry helpers
# ---------------------------------------------------------------------------
def _conv_geom(H, W):
    """Padded/flattened geometry for the shifted-matmul 3x3 conv.

    Input is zero-padded H:(1,2), W:(1,1) and flattened to length Lp.
    The conv output is computed over an (H, W+2) grid flattened to Lv, where
    the last 2 columns of every row are junk (masked for stats, dropped later).
    Tap (kh, kw) is the slice [kh*(W+2)+kw : kh*(W+2)+kw + Lv] of the input.
    """
    Wp = W + 2
    Lv = H * Wp
    Lp = (H + 3) * Wp
    return Wp, Lv, Lp


# ---------------------------------------------------------------------------
# Pallas kernels
# ---------------------------------------------------------------------------
def _make_conv3x3_kernel(H, W, c_in, c_out, fuse_input_bn_relu):
    """Fused: [optional BN+ReLU+re-pad of input] -> 3x3 conv (9 shifted matmuls)
    -> pre-BN output + per-channel (sum, sumsq) accumulation."""
    Wp, Lv, Lp = _conv_geom(H, W)

    def kernel(*refs):
        if fuse_input_bn_relu:
            x_ref, scale_ref, shift_ref, w_ref, y_ref, stats_ref = refs
            # Prologue fused from the previous layer: BN(scale/shift) + ReLU on
            # the pre-BN conv output, junk-column masking, and re-padding to
            # the (H+3, W+2)-flattened layout -- all in registers/VMEM.
            a = x_ref[0].astype(jnp.float32)                              # (c_in, Lv)
            a = jnp.maximum(a * scale_ref[...] + shift_ref[...], 0.0)
            col = jax.lax.broadcasted_iota(jnp.int32, (c_in, Lv), 1)
            a = jnp.where((col % Wp) < W, a, 0.0)
            # [zeros(Wp+1), a[:, :Lv-1], zeros(2*Wp)] == zero-padded flat layout
            # (the masked junk columns land exactly on the pad positions).
            xp = jnp.concatenate(
                [jnp.zeros((c_in, Wp + 1), jnp.float32),
                 a[:, : Lv - 1],
                 jnp.zeros((c_in, 2 * Wp), jnp.float32)],
                axis=1).astype(jnp.bfloat16)                              # (c_in, Lp)
        else:
            x_ref, w_ref, y_ref, stats_ref = refs
            xp = x_ref[0]                                                 # (c_in, Lp) bf16

        w = w_ref[...]                                                    # (9, c_out, c_in)

        # 3x3 conv as 9 accumulated shifted matmuls; lane-dense (c_out, Lv).
        acc = jnp.zeros((c_out, Lv), jnp.float32)
        for kh in range(3):
            for kw in range(3):
                off = kh * Wp + kw
                acc = acc + jnp.dot(w[kh * 3 + kw], xp[:, off:off + Lv],
                                    preferred_element_type=jnp.float32)
        y_ref[0] = acc

        # Two-phase BN: accumulate per-channel sum / sum-of-squares over the
        # VALID columns only, across the batch grid axis (revisited block).
        col = jax.lax.broadcasted_iota(jnp.int32, (c_out, Lv), 1)
        accv = jnp.where((col % Wp) < W, acc, 0.0)
        tile_stats = jnp.concatenate(
            [jnp.sum(accv, axis=1, keepdims=True),
             jnp.sum(accv * accv, axis=1, keepdims=True)], axis=1)        # (c_out, 2)

        @pl.when(pl.program_id(0) == 0)
        def _():
            stats_ref[...] = jnp.zeros_like(stats_ref)

        stats_ref[...] += tile_stats

    return kernel


def _bn_relu_kernel(y_ref, scale_ref, shift_ref, o_ref):
    y = y_ref[0].astype(jnp.float32)
    o_ref[0] = jnp.maximum(y * scale_ref[...] + shift_ref[...], 0.0)


# ---------------------------------------------------------------------------
# pallas_call wrappers
# ---------------------------------------------------------------------------
def conv3x3_bn_stats(x, w_taps, H, W, scale=None, shift=None):
    """x: (N, c_in, Lp) bf16 pre-padded   (scale is None)
          (N, c_in, Lv) f32 pre-BN output (scale/shift given -> fused BN+ReLU+re-pad)
       w_taps: (9, c_out, c_in) bf16.
       Returns y_pre (N, c_out, Lv) f32 and stats (c_out, 2) f32 = [sum, sumsq]."""
    N, c_in, L_in = x.shape
    c_out = w_taps.shape[1]
    Wp, Lv, Lp = _conv_geom(H, W)
    fuse = scale is not None

    in_arrays = [x]
    in_specs = [pl.BlockSpec((1, c_in, L_in), lambda i: (i, 0, 0))]
    if fuse:
        in_arrays += [scale, shift]
        in_specs += [pl.BlockSpec((c_in, 1), lambda i: (0, 0)),
                     pl.BlockSpec((c_in, 1), lambda i: (0, 0))]
    in_arrays.append(w_taps)
    in_specs.append(pl.BlockSpec((9, c_out, c_in), lambda i: (0, 0, 0)))

    flops = 2 * N * Lv * 9 * c_in * c_out
    bytes_accessed = (x.size * x.dtype.itemsize + w_taps.size * 2
                      + N * c_out * Lv * 4 + c_out * 2 * 4)

    # TODO(synk): for large spatial sizes add a second grid axis over haloed
    # row tiles (pl.Element index maps); on v7x split the stats accumulator
    # per-core so the batch axis can be marked 'parallel' for both TensorCores.
    return pl.pallas_call(
        _make_conv3x3_kernel(H, W, c_in, c_out, fuse),
        grid=(N,),
        in_specs=in_specs,
        out_specs=(pl.BlockSpec((1, c_out, Lv), lambda i: (i, 0, 0)),
                   pl.BlockSpec((c_out, 2), lambda i: (0, 0))),
        out_shape=(jax.ShapeDtypeStruct((N, c_out, Lv), jnp.float32),
                   jax.ShapeDtypeStruct((c_out, 2), jnp.float32)),
        compiler_params=pltpu.CompilerParams(
            # 'arbitrary': the stats output block is a revisited accumulator.
            dimension_semantics=("arbitrary",),
            vmem_limit_bytes=VMEM_LIMIT_BYTES),
        cost_estimate=pl.CostEstimate(flops=flops, transcendentals=0,
                                      bytes_accessed=bytes_accessed),
    )(*in_arrays)


def bn_relu_apply(y_pre, scale, shift):
    """Elementwise scale/shift + ReLU on the lane-dense (N, C, Lv) layout."""
    N, C, L = y_pre.shape
    return pl.pallas_call(
        _bn_relu_kernel,
        grid=(N,),
        in_specs=[pl.BlockSpec((1, C, L), lambda i: (i, 0, 0)),
                  pl.BlockSpec((C, 1), lambda i: (0, 0)),
                  pl.BlockSpec((C, 1), lambda i: (0, 0))],
        out_specs=pl.BlockSpec((1, C, L), lambda i: (i, 0, 0)),
        out_shape=jax.ShapeDtypeStruct((N, C, L), jnp.float32),
        compiler_params=pltpu.CompilerParams(
            dimension_semantics=("parallel",),
            vmem_limit_bytes=VMEM_LIMIT_BYTES),
    )(y_pre, scale, shift)


# ---------------------------------------------------------------------------
# BN folding (tiny per-channel math, plain JAX)
# ---------------------------------------------------------------------------
def _fold_bn(stats, count, gamma, beta):
    mean = stats[:, 0] / count
    var = stats[:, 1] / count - mean * mean          # biased, as PyTorch train-mode BN
    scale = gamma * jax.lax.rsqrt(var + BN_EPS)
    shift = beta - mean * scale
    return (scale.reshape(-1, 1).astype(jnp.float32),
            shift.reshape(-1, 1).astype(jnp.float32))


# ---------------------------------------------------------------------------
# Parameters (deterministic). Conv biases are omitted: train-mode BatchNorm's
# mean subtraction cancels them exactly, so they never affect the output.
# ---------------------------------------------------------------------------
def _to_taps(w_oihw):
    co, ci, kh, kw = w_oihw.shape
    return (jnp.transpose(w_oihw, (2, 3, 0, 1))
            .reshape(kh * kw, co, ci).astype(jnp.bfloat16))


def init_params(key, in_channels, out_channels):
    mid = out_channels  # DoubleConv default mid_channels
    k1, k2, k3, k4, k5, k6 = jax.random.split(key, 6)
    w1 = 0.05 * jax.random.normal(k1, (mid, in_channels, 3, 3), jnp.float32)
    w2 = 0.05 * jax.random.normal(k2, (out_channels, mid, 3, 3), jnp.float32)
    g1 = 1.0 + 0.05 * jax.random.normal(k3, (mid,), jnp.float32)
    beta1 = 0.05 * jax.random.normal(k4, (mid,), jnp.float32)
    g2 = 1.0 + 0.05 * jax.random.normal(k5, (out_channels,), jnp.float32)
    beta2 = 0.05 * jax.random.normal(k6, (out_channels,), jnp.float32)
    return {
        "w1": w1, "w2": w2,                      # OIHW f32 (used by the reference)
        "w1_taps": _to_taps(w1), "w2_taps": _to_taps(w2),
        "g1": g1, "beta1": beta1, "g2": g2, "beta2": beta2,
    }


# ---------------------------------------------------------------------------
# Forward pass
# ---------------------------------------------------------------------------
def down_forward(params, x):
    """x: (N, C_in, H0, W0) f32 -> (N, C_out, H0//2, W0//2) f32."""
    N, c_in, H0, W0 = x.shape
    H, W = H0 // 2, W0 // 2
    Wp, Lv, Lp = _conv_geom(H, W)
    c_out = params["w2_taps"].shape[1]
    count = float(N * H * W)

    # MaxPool2d(2) + zero-pad (H:(1,2), W:(1,1)) + flatten: layout plumbing.
    pooled = x.reshape(N, c_in, H, 2, W, 2).max(axis=(3, 5))
    x_pad = jnp.pad(pooled, ((0, 0), (0, 0), (1, 2), (1, 1)))
    x_pad = x_pad.reshape(N, c_in, Lp).astype(jnp.bfloat16)

    # conv1 (3x3) + per-channel batch stats.
    y1_pre, stats1 = conv3x3_bn_stats(x_pad, params["w1_taps"], H, W)
    scale1, shift1 = _fold_bn(stats1, count, params["g1"], params["beta1"])

    # conv2: BN1 + ReLU + re-pad fused into the conv kernel's prologue.
    y2_pre, stats2 = conv3x3_bn_stats(y1_pre, params["w2_taps"], H, W,
                                      scale=scale1, shift=shift1)
    scale2, shift2 = _fold_bn(stats2, count, params["g2"], params["beta2"])

    # Final BN2 + ReLU, then drop the 2 junk columns per row (layout glue).
    y = bn_relu_apply(y2_pre, scale2, shift2)
    return y.reshape(N, c_out, H, Wp)[:, :, :, :W]


# ---------------------------------------------------------------------------
# Pure-JAX reference (f32) for a correctness check
# ---------------------------------------------------------------------------
def down_reference(params, x):
    N, c_in, H0, W0 = x.shape
    H, W = H0 // 2, W0 // 2
    pooled = x.reshape(N, c_in, H, 2, W, 2).max(axis=(3, 5))

    def conv_bn_relu(h, w, gamma, beta):
        y = jax.lax.conv_general_dilated(
            h, w, window_strides=(1, 1), padding=((1, 1), (1, 1)),
            dimension_numbers=("NCHW", "OIHW", "NCHW"))
        mean = y.mean(axis=(0, 2, 3), keepdims=True)
        var = ((y - mean) ** 2).mean(axis=(0, 2, 3), keepdims=True)
        yn = (y - mean) * jax.lax.rsqrt(var + BN_EPS)
        return jnp.maximum(yn * gamma.reshape(1, -1, 1, 1)
                           + beta.reshape(1, -1, 1, 1), 0.0)

    h = conv_bn_relu(pooled, params["w1"], params["g1"], params["beta1"])
    return conv_bn_relu(h, params["w2"], params["g2"], params["beta2"])


# ---------------------------------------------------------------------------
# Demo
# ---------------------------------------------------------------------------
if __name__ == "__main__":
    key = jax.random.PRNGKey(0)
    k_x, k_p = jax.random.split(key)

    N, C_IN, C_OUT = 2, 16, 32
    H0 = W0 = 32
    x = jax.random.normal(k_x, (N, C_IN, H0, W0), jnp.float32)
    params = init_params(k_p, C_IN, C_OUT)

    out = jax.jit(down_forward)(params, x)
    out = jax.block_until_ready(out)

    assert out.shape == (N, C_OUT, H0 // 2, W0 // 2), out.shape
    assert bool(jnp.all(jnp.isfinite(out)))
    assert bool(jnp.all(out >= 0.0))            # final ReLU

    ref = down_reference(params, x)
    max_err = float(jnp.max(jnp.abs(out - ref)))
    assert max_err < 0.1, f"max |out - ref| = {max_err}"   # bf16-MXU tolerance

    print("KERNEL_OK")
</pallas_src>

<mosaic_0001>
module attributes {stable_mosaic.version = 11 : i64} {
  func.func @kernel(%arg0: i32, %arg1: memref<1x16x342xbf16, #tpu.memory_space<vmem>>, %arg2: memref<9x32x16xbf16, #tpu.memory_space<vmem>>, %arg3: memref<1x32x288xf32, #tpu.memory_space<vmem>>, %arg4: memref<32x2xf32, #tpu.memory_space<vmem>>) attributes {dimension_semantics = [#tpu.dimension_semantics<arbitrary>], iteration_bounds = array<i64: 2>, scalar_prefetch = 0 : i64, scratch_operands = 0 : i64, tpu.core_type = #tpu.core_type<tc>, window_params = [{transform_indices = @transform_0, window_bounds = array<i64: 1, 16, 342>}, {pipeline_mode = #tpu.pipeline_mode<synchronous>, transform_indices = @transform_1, window_bounds = array<i64: 9, 32, 16>}, {transform_indices = @transform_2, window_bounds = array<i64: 1, 32, 288>}, {pipeline_mode = #tpu.pipeline_mode<synchronous>, transform_indices = @transform_3, window_bounds = array<i64: 32, 2>}]} {
    %c0 = arith.constant 0 : index
    %c0_0 = arith.constant 0 : index
    %c0_1 = arith.constant 0 : index
    %0 = vector.load %arg1[%c0, %c0_0, %c0_1] : memref<1x16x342xbf16, #tpu.memory_space<vmem>>, vector<1x16x342xbf16>
    %1 = vector.shape_cast %0 : vector<1x16x342xbf16> to vector<16x342xbf16>
    %c0_2 = arith.constant 0 : index
    %c0_3 = arith.constant 0 : index
    %c0_4 = arith.constant 0 : index
    %2 = vector.load %arg2[%c0_2, %c0_3, %c0_4] : memref<9x32x16xbf16, #tpu.memory_space<vmem>>, vector<9x32x16xbf16>
    %cst = arith.constant 0.000000e+00 : f32
    %3 = vector.broadcast %cst : f32 to vector<32x288xf32>
    %4 = vector.extract_strided_slice %2 {offsets = [0, 0, 0], sizes = [1, 32, 16], strides = [1, 1, 1]} : vector<9x32x16xbf16> to vector<1x32x16xbf16>
    %5 = vector.shape_cast %4 : vector<1x32x16xbf16> to vector<32x16xbf16>
    %6 = vector.extract_strided_slice %1 {offsets = [0, 0], sizes = [16, 288], strides = [1, 1]} : vector<16x342xbf16> to vector<16x288xbf16>
    %cst_5 = arith.constant dense<0.000000e+00> : vector<32x288xf32>
    %7 = tpu.matmul %5, %6, %cst_5 {dimension_numbers = #tpu.dot_dimension_numbers<[1], [0], [0], [1], [0, 0, 1, 1], [], []>} : vector<32x16xbf16>, vector<16x288xbf16>, vector<32x288xf32> -> vector<32x288xf32>
    %8 = arith.addf %3, %7 : vector<32x288xf32>
    %9 = vector.extract_strided_slice %2 {offsets = [1, 0, 0], sizes = [1, 32, 16], strides = [1, 1, 1]} : vector<9x32x16xbf16> to vector<1x32x16xbf16>
    %10 = vector.shape_cast %9 : vector<1x32x16xbf16> to vector<32x16xbf16>
    %11 = vector.extract_strided_slice %1 {offsets = [0, 1], sizes = [16, 288], strides = [1, 1]} : vector<16x342xbf16> to vector<16x288xbf16>
    %cst_6 = arith.constant dense<0.000000e+00> : vector<32x288xf32>
    %12 = tpu.matmul %10, %11, %cst_6 {dimension_numbers = #tpu.dot_dimension_numbers<[1], [0], [0], [1], [0, 0, 1, 1], [], []>} : vector<32x16xbf16>, vector<16x288xbf16>, vector<32x288xf32> -> vector<32x288xf32>
    %13 = arith.addf %8, %12 : vector<32x288xf32>
    %14 = vector.extract_strided_slice %2 {offsets = [2, 0, 0], sizes = [1, 32, 16], strides = [1, 1, 1]} : vector<9x32x16xbf16> to vector<1x32x16xbf16>
    %15 = vector.shape_cast %14 : vector<1x32x16xbf16> to vector<32x16xbf16>
    %16 = vector.extract_strided_slice %1 {offsets = [0, 2], sizes = [16, 288], strides = [1, 1]} : vector<16x342xbf16> to vector<16x288xbf16>
    %cst_7 = arith.constant dense<0.000000e+00> : vector<32x288xf32>
    %17 = tpu.matmul %15, %16, %cst_7 {dimension_numbers = #tpu.dot_dimension_numbers<[1], [0], [0], [1], [0, 0, 1, 1], [], []>} : vector<32x16xbf16>, vector<16x288xbf16>, vector<32x288xf32> -> vector<32x288xf32>
    %18 = arith.addf %13, %17 : vector<32x288xf32>
    %19 = vector.extract_strided_slice %2 {offsets = [3, 0, 0], sizes = [1, 32, 16], strides = [1, 1, 1]} : vector<9x32x16xbf16> to vector<1x32x16xbf16>
    %20 = vector.shape_cast %19 : vector<1x32x16xbf16> to vector<32x16xbf16>
    %21 = vector.extract_strided_slice %1 {offsets = [0, 18], sizes = [16, 288], strides = [1, 1]} : vector<16x342xbf16> to vector<16x288xbf16>
    %cst_8 = arith.constant dense<0.000000e+00> : vector<32x288xf32>
    %22 = tpu.matmul %20, %21, %cst_8 {dimension_numbers = #tpu.dot_dimension_numbers<[1], [0], [0], [1], [0, 0, 1, 1], [], []>} : vector<32x16xbf16>, vector<16x288xbf16>, vector<32x288xf32> -> vector<32x288xf32>
    %23 = arith.addf %18, %22 : vector<32x288xf32>
    %24 = vector.extract_strided_slice %2 {offsets = [4, 0, 0], sizes = [1, 32, 16], strides = [1, 1, 1]} : vector<9x32x16xbf16> to vector<1x32x16xbf16>
    %25 = vector.shape_cast %24 : vector<1x32x16xbf16> to vector<32x16xbf16>
    %26 = vector.extract_strided_slice %1 {offsets = [0, 19], sizes = [16, 288], strides = [1, 1]} : vector<16x342xbf16> to vector<16x288xbf16>
    %cst_9 = arith.constant dense<0.000000e+00> : vector<32x288xf32>
    %27 = tpu.matmul %25, %26, %cst_9 {dimension_numbers = #tpu.dot_dimension_numbers<[1], [0], [0], [1], [0, 0, 1, 1], [], []>} : vector<32x16xbf16>, vector<16x288xbf16>, vector<32x288xf32> -> vector<32x288xf32>
    %28 = arith.addf %23, %27 : vector<32x288xf32>
    %29 = vector.extract_strided_slice %2 {offsets = [5, 0, 0], sizes = [1, 32, 16], strides = [1, 1, 1]} : vector<9x32x16xbf16> to vector<1x32x16xbf16>
    %30 = vector.shape_cast %29 : vector<1x32x16xbf16> to vector<32x16xbf16>
    %31 = vector.extract_strided_slice %1 {offsets = [0, 20], sizes = [16, 288], strides = [1, 1]} : vector<16x342xbf16> to vector<16x288xbf16>
    %cst_10 = arith.constant dense<0.000000e+00> : vector<32x288xf32>
    %32 = tpu.matmul %30, %31, %cst_10 {dimension_numbers = #tpu.dot_dimension_numbers<[1], [0], [0], [1], [0, 0, 1, 1], [], []>} : vector<32x16xbf16>, vector<16x288xbf16>, vector<32x288xf32> -> vector<32x288xf32>
    %33 = arith.addf %28, %32 : vector<32x288xf32>
    %34 = vector.extract_strided_slice %2 {offsets = [6, 0, 0], sizes = [1, 32, 16], strides = [1, 1, 1]} : vector<9x32x16xbf16> to vector<1x32x16xbf16>
    %35 = vector.shape_cast %34 : vector<1x32x16xbf16> to vector<32x16xbf16>
    %36 = vector.extract_strided_slice %1 {offsets = [0, 36], sizes = [16, 288], strides = [1, 1]} : vector<16x342xbf16> to vector<16x288xbf16>
    %cst_11 = arith.constant dense<0.000000e+00> : vector<32x288xf32>
    %37 = tpu.matmul %35, %36, %cst_11 {dimension_numbers = #tpu.dot_dimension_numbers<[1], [0], [0], [1], [0, 0, 1, 1], [], []>} : vector<32x16xbf16>, vector<16x288xbf16>, vector<32x288xf32> -> vector<32x288xf32>
    %38 = arith.addf %33, %37 : vector<32x288xf32>
    %39 = vector.extract_strided_slice %2 {offsets = [7, 0, 0], sizes = [1, 32, 16], strides = [1, 1, 1]} : vector<9x32x16xbf16> to vector<1x32x16xbf16>
    %40 = vector.shape_cast %39 : vector<1x32x16xbf16> to vector<32x16xbf16>
    %41 = vector.extract_strided_slice %1 {offsets = [0, 37], sizes = [16, 288], strides = [1, 1]} : vector<16x342xbf16> to vector<16x288xbf16>
    %cst_12 = arith.constant dense<0.000000e+00> : vector<32x288xf32>
    %42 = tpu.matmul %40, %41, %cst_12 {dimension_numbers = #tpu.dot_dimension_numbers<[1], [0], [0], [1], [0, 0, 1, 1], [], []>} : vector<32x16xbf16>, vector<16x288xbf16>, vector<32x288xf32> -> vector<32x288xf32>
    %43 = arith.addf %38, %42 : vector<32x288xf32>
    %44 = vector.extract_strided_slice %2 {offsets = [8, 0, 0], sizes = [1, 32, 16], strides = [1, 1, 1]} : vector<9x32x16xbf16> to vector<1x32x16xbf16>
    %45 = vector.shape_cast %44 : vector<1x32x16xbf16> to vector<32x16xbf16>
    %46 = vector.extract_strided_slice %1 {offsets = [0, 38], sizes = [16, 288], strides = [1, 1]} : vector<16x342xbf16> to vector<16x288xbf16>
    %cst_13 = arith.constant dense<0.000000e+00> : vector<32x288xf32>
    %47 = tpu.matmul %45, %46, %cst_13 {dimension_numbers = #tpu.dot_dimension_numbers<[1], [0], [0], [1], [0, 0, 1, 1], [], []>} : vector<32x16xbf16>, vector<16x288xbf16>, vector<32x288xf32> -> vector<32x288xf32>
    %48 = arith.addf %43, %47 : vector<32x288xf32>
    %c0_14 = arith.constant 0 : index
    %c0_15 = arith.constant 0 : index
    %c0_16 = arith.constant 0 : index
    %49 = vector.load %arg3[%c0_14, %c0_15, %c0_16] : memref<1x32x288xf32, #tpu.memory_space<vmem>>, vector<1x32x288xf32>
    %50 = vector.shape_cast %49 : vector<1x32x288xf32> to vector<32x288xf32>
    %51 = vector.shape_cast %48 : vector<32x288xf32> to vector<1x32x288xf32>
    tpu.vector_store %arg3[%c0_14, %c0_15, %c0_16], %51 {strides = array<i32>} : memref<1x32x288xf32, #tpu.memory_space<vmem>>, vector<1x32x288xf32>,
    %52 = tpu.iota {dimensions = array<i32: 1>} : vector<32x288xi32>
    %c18_i32 = arith.constant 18 : i32
    %c0_i32 = arith.constant 0 : i32
    %53 = arith.cmpi eq, %c18_i32, %c0_i32 : i32
    %c1_i32 = arith.constant 1 : i32
    %54 = arith.select %53, %c1_i32, %c18_i32 : i32
    %55 = vector.broadcast %54 : i32 to vector<32x288xi32>
    %56 = arith.remsi %52, %55 : vector<32x288xi32>
    %c0_i32_17 = arith.constant 0 : i32
    %57 = vector.broadcast %c0_i32_17 : i32 to vector<32x288xi32>
    %58 = arith.cmpi ne, %56, %57 : vector<32x288xi32>
    %c0_i32_18 = arith.constant 0 : i32
    %59 = vector.broadcast %c0_i32_18 : i32 to vector<32x288xi32>
    %60 = arith.cmpi slt, %56, %59 : vector<32x288xi32>
    %c0_i32_19 = arith.constant 0 : i32
    %61 = arith.cmpi slt, %54, %c0_i32_19 : i32
    %62 = vector.broadcast %61 : i1 to vector<32x288xi1>
    %63 = vector.broadcast %62 : vector<32x288xi1> to vector<32x288xi1>
    %64 = arith.xori %60, %63 : vector<32x288xi1>
    %65 = arith.andi %64, %58 : vector<32x288xi1>
    %66 = vector.broadcast %54 : i32 to vector<32x288xi32>
    %67 = arith.addi %56, %66 : vector<32x288xi32>
    %68 = arith.select %65, %67, %56 : vector<32x288xi1>, vector<32x288xi32>
    %c16_i32 = arith.constant 16 : i32
    %69 = vector.broadcast %c16_i32 : i32 to vector<32x288xi32>
    %70 = arith.cmpi slt, %68, %69 : vector<32x288xi32>
    %cst_20 = arith.constant 0.000000e+00 : f32
    %71 = vector.broadcast %cst_20 : f32 to vector<32x288xf32>
    %72 = arith.select %70, %48, %71 : vector<32x288xi1>, vector<32x288xf32>
    %cst_21 = arith.constant dense<0.000000e+00> : vector<32xf32>
    %73 = vector.multi_reduction <add>, %72, %cst_21 [1] : vector<32x288xf32> to vector<32xf32>
    %74 = vector.shape_cast %73 : vector<32xf32> to vector<32x1xf32>
    %75 = arith.mulf %72, %72 : vector<32x288xf32>
    %cst_22 = arith.constant dense<0.000000e+00> : vector<32xf32>
    %76 = vector.multi_reduction <add>, %75, %cst_22 [1] : vector<32x288xf32> to vector<32xf32>
    %77 = vector.shape_cast %76 : vector<32xf32> to vector<32x1xf32>
    %78 = tpu.concatenate %74, %77 in 1 : vector<32x1xf32>, vector<32x1xf32> -> vector<32x2xf32>
    %c0_i32_23 = arith.constant 0 : i32
    %79 = arith.cmpi eq, %arg0, %c0_i32_23 : i32
    %80 = arith.extui %79 : i1 to i32
    %c0_i32_24 = arith.constant 0 : i32
    %81 = arith.cmpi ne, %80, %c0_i32_24 : i32
    scf.if %81 {
      %cst_29 = arith.constant 0.000000e+00 : f32
      %85 = vector.broadcast %cst_29 : f32 to vector<32x2xf32>
      %c0_30 = arith.constant 0 : index
      %c0_31 = arith.constant 0 : index
      %86 = vector.load %arg4[%c0_30, %c0_31] : memref<32x2xf32, #tpu.memory_space<vmem>>, vector<32x2xf32>
      tpu.vector_store %arg4[%c0_30, %c0_31], %85 {strides = array<i32>} : memref<32x2xf32, #tpu.memory_space<vmem>>, vector<32x2xf32>,
    } else {
    }
    %c0_25 = arith.constant 0 : index
    %c0_26 = arith.constant 0 : index
    %82 = vector.load %arg4[%c0_25, %c0_26] : memref<32x2xf32, #tpu.memory_space<vmem>>, vector<32x2xf32>
    %83 = arith.addf %82, %78 : vector<32x2xf32>
    %c0_27 = arith.constant 0 : index
    %c0_28 = arith.constant 0 : index
    %84 = vector.load %arg4[%c0_27, %c0_28] : memref<32x2xf32, #tpu.memory_space<vmem>>, vector<32x2xf32>
    tpu.vector_store %arg4[%c0_27, %c0_28], %83 {strides = array<i32>} : memref<32x2xf32, #tpu.memory_space<vmem>>, vector<32x2xf32>,
    return
  }
  func.func @transform_0(%arg0: i32) -> (i32, i32, i32) {
    %c0_i32 = arith.constant 0 : i32
    %c0_i32_0 = arith.constant 0 : i32
    %c0_i32_1 = arith.constant 0 : i32
    return %arg0, %c0_i32, %c0_i32_0 : i32, i32, i32
  }
  func.func @transform_1(%arg0: i32) -> (i32, i32, i32) {
    %c0_i32 = arith.constant 0 : i32
    %c0_i32_0 = arith.constant 0 : i32
    %c0_i32_1 = arith.constant 0 : i32
    %c0_i32_2 = arith.constant 0 : i32
    return %c0_i32, %c0_i32_0, %c0_i32_1 : i32, i32, i32
  }
  func.func @transform_2(%arg0: i32) -> (i32, i32, i32) {
    %c0_i32 = arith.constant 0 : i32
    %c0_i32_0 = arith.constant 0 : i32
    %c0_i32_1 = arith.constant 0 : i32
    return %arg0, %c0_i32, %c0_i32_0 : i32, i32, i32
  }
  func.func @transform_3(%arg0: i32) -> (i32, i32) {
    %c0_i32 = arith.constant 0 : i32
    %c0_i32_0 = arith.constant 0 : i32
    %c0_i32_1 = arith.constant 0 : i32
    return %c0_i32, %c0_i32_0 : i32, i32
  }
}

module attributes {stable_mosaic.version = 11 : i64} {
  func.func @kernel(%arg0: i32, %arg1: memref<1x32x288xf32, #tpu.memory_space<vmem>>, %arg2: memref<32x1xf32, #tpu.memory_space<vmem>>, %arg3: memref<32x1xf32, #tpu.memory_space<vmem>>, %arg4: memref<9x32x32xbf16, #tpu.memory_space<vmem>>, %arg5: memref<1x32x288xf32, #tpu.memory_space<vmem>>, %arg6: memref<32x2xf32, #tpu.memory_space<vmem>>) attributes {dimension_semantics = [#tpu.dimension_semantics<arbitrary>], iteration_bounds = array<i64: 2>, scalar_prefetch = 0 : i64, scratch_operands = 0 : i64, tpu.core_type = #tpu.core_type<tc>, window_params = [{transform_indices = @transform_0, window_bounds = array<i64: 1, 32, 288>}, {pipeline_mode = #tpu.pipeline_mode<synchronous>, transform_indices = @transform_1, window_bounds = array<i64: 32, 1>}, {pipeline_mode = #tpu.pipeline_mode<synchronous>, transform_indices = @transform_2, window_bounds = array<i64: 32, 1>}, {pipeline_mode = #tpu.pipeline_mode<synchronous>, transform_indices = @transform_3, window_bounds = array<i64: 9, 32, 32>}, {transform_indices = @transform_4, window_bounds = array<i64: 1, 32, 288>}, {pipeline_mode = #tpu.pipeline_mode<synchronous>, transform_indices = @transform_5, window_bounds = array<i64: 32, 2>}]} {
    %c0 = arith.constant 0 : index
    %c0_0 = arith.constant 0 : index
    %c0_1 = arith.constant 0 : index
    %0 = vector.load %arg1[%c0, %c0_0, %c0_1] : memref<1x32x288xf32, #tpu.memory_space<vmem>>, vector<1x32x288xf32>
    %1 = vector.shape_cast %0 : vector<1x32x288xf32> to vector<32x288xf32>
    %c0_2 = arith.constant 0 : index
    %c0_3 = arith.constant 0 : index
    %2 = vector.load %arg2[%c0_2, %c0_3] : memref<32x1xf32, #tpu.memory_space<vmem>>, vector<32x1xf32>
    %3 = vector.broadcast %2 : vector<32x1xf32> to vector<32x288xf32>
    %4 = arith.mulf %1, %3 : vector<32x288xf32>
    %c0_4 = arith.constant 0 : index
    %c0_5 = arith.constant 0 : index
    %5 = vector.load %arg3[%c0_4, %c0_5] : memref<32x1xf32, #tpu.memory_space<vmem>>, vector<32x1xf32>
    %6 = vector.broadcast %5 : vector<32x1xf32> to vector<32x288xf32>
    %7 = arith.addf %4, %6 : vector<32x288xf32>
    %cst = arith.constant 0.000000e+00 : f32
    %8 = vector.broadcast %cst : f32 to vector<32x288xf32>
    %9 = arith.maximumf %7, %8 : vector<32x288xf32>
    %10 = tpu.iota {dimensions = array<i32: 1>} : vector<32x288xi32>
    %c18_i32 = arith.constant 18 : i32
    %c0_i32 = arith.constant 0 : i32
    %11 = arith.cmpi eq, %c18_i32, %c0_i32 : i32
    %c1_i32 = arith.constant 1 : i32
    %12 = arith.select %11, %c1_i32, %c18_i32 : i32
    %13 = vector.broadcast %12 : i32 to vector<32x288xi32>
    %14 = arith.remsi %10, %13 : vector<32x288xi32>
    %c0_i32_6 = arith.constant 0 : i32
    %15 = vector.broadcast %c0_i32_6 : i32 to vector<32x288xi32>
    %16 = arith.cmpi ne, %14, %15 : vector<32x288xi32>
    %c0_i32_7 = arith.constant 0 : i32
    %17 = vector.broadcast %c0_i32_7 : i32 to vector<32x288xi32>
    %18 = arith.cmpi slt, %14, %17 : vector<32x288xi32>
    %c0_i32_8 = arith.constant 0 : i32
    %19 = arith.cmpi slt, %12, %c0_i32_8 : i32
    %20 = vector.broadcast %19 : i1 to vector<32x288xi1>
    %21 = vector.broadcast %20 : vector<32x288xi1> to vector<32x288xi1>
    %22 = arith.xori %18, %21 : vector<32x288xi1>
    %23 = arith.andi %22, %16 : vector<32x288xi1>
    %24 = vector.broadcast %12 : i32 to vector<32x288xi32>
    %25 = arith.addi %14, %24 : vector<32x288xi32>
    %26 = arith.select %23, %25, %14 : vector<32x288xi1>, vector<32x288xi32>
    %c16_i32 = arith.constant 16 : i32
    %27 = vector.broadcast %c16_i32 : i32 to vector<32x288xi32>
    %28 = arith.cmpi slt, %26, %27 : vector<32x288xi32>
    %cst_9 = arith.constant 0.000000e+00 : f32
    %29 = vector.broadcast %cst_9 : f32 to vector<32x288xf32>
    %30 = arith.select %28, %9, %29 : vector<32x288xi1>, vector<32x288xf32>
    %cst_10 = arith.constant 0.000000e+00 : f32
    %31 = vector.broadcast %cst_10 : f32 to vector<32x19xf32>
    %32 = vector.extract_strided_slice %30 {offsets = [0, 0], sizes = [32, 287], strides = [1, 1]} : vector<32x288xf32> to vector<32x287xf32>
    %cst_11 = arith.constant 0.000000e+00 : f32
    %33 = vector.broadcast %cst_11 : f32 to vector<32x36xf32>
    %34 = tpu.concatenate %31, %32, %33 in 1 : vector<32x19xf32>, vector<32x287xf32>, vector<32x36xf32> -> vector<32x342xf32>
    %35 = arith.truncf %34 : vector<32x342xf32> to vector<32x342xbf16>
    %c0_12 = arith.constant 0 : index
    %c0_13 = arith.constant 0 : index
    %c0_14 = arith.constant 0 : index
    %36 = vector.load %arg4[%c0_12, %c0_13, %c0_14] : memref<9x32x32xbf16, #tpu.memory_space<vmem>>, vector<9x32x32xbf16>
    %cst_15 = arith.constant 0.000000e+00 : f32
    %37 = vector.broadcast %cst_15 : f32 to vector<32x288xf32>
    %38 = vector.extract_strided_slice %36 {offsets = [0, 0, 0], sizes = [1, 32, 32], strides = [1, 1, 1]} : vector<9x32x32xbf16> to vector<1x32x32xbf16>
    %39 = vector.shape_cast %38 : vector<1x32x32xbf16> to vector<32x32xbf16>
    %40 = vector.extract_strided_slice %35 {offsets = [0, 0], sizes = [32, 288], strides = [1, 1]} : vector<32x342xbf16> to vector<32x288xbf16>
    %cst_16 = arith.constant dense<0.000000e+00> : vector<32x288xf32>
    %41 = tpu.matmul %39, %40, %cst_16 {dimension_numbers = #tpu.dot_dimension_numbers<[1], [0], [0], [1], [0, 0, 1, 1], [], []>} : vector<32x32xbf16>, vector<32x288xbf16>, vector<32x288xf32> -> vector<32x288xf32>
    %42 = arith.addf %37, %41 : vector<32x288xf32>
    %43 = vector.extract_strided_slice %36 {offsets = [1, 0, 0], sizes = [1, 32, 32], strides = [1, 1, 1]} : vector<9x32x32xbf16> to vector<1x32x32xbf16>
    %44 = vector.shape_cast %43 : vector<1x32x32xbf16> to vector<32x32xbf16>
    %45 = vector.extract_strided_slice %35 {offsets = [0, 1], sizes = [32, 288], strides = [1, 1]} : vector<32x342xbf16> to vector<32x288xbf16>
    %cst_17 = arith.constant dense<0.000000e+00> : vector<32x288xf32>
    %46 = tpu.matmul %44, %45, %cst_17 {dimension_numbers = #tpu.dot_dimension_numbers<[1], [0], [0], [1], [0, 0, 1, 1], [], []>} : vector<32x32xbf16>, vector<32x288xbf16>, vector<32x288xf32> -> vector<32x288xf32>
    %47 = arith.addf %42, %46 : vector<32x288xf32>
    %48 = vector.extract_strided_slice %36 {offsets = [2, 0, 0], sizes = [1, 32, 32], strides = [1, 1, 1]} : vector<9x32x32xbf16> to vector<1x32x32xbf16>
    %49 = vector.shape_cast %48 : vector<1x32x32xbf16> to vector<32x32xbf16>
    %50 = vector.extract_strided_slice %35 {offsets = [0, 2], sizes = [32, 288], strides = [1, 1]} : vector<32x342xbf16> to vector<32x288xbf16>
    %cst_18 = arith.constant dense<0.000000e+00> : vector<32x288xf32>
    %51 = tpu.matmul %49, %50, %cst_18 {dimension_numbers = #tpu.dot_dimension_numbers<[1], [0], [0], [1], [0, 0, 1, 1], [], []>} : vector<32x32xbf16>, vector<32x288xbf16>, vector<32x288xf32> -> vector<32x288xf32>
    %52 = arith.addf %47, %51 : vector<32x288xf32>
    %53 = vector.extract_strided_slice %36 {offsets = [3, 0, 0], sizes = [1, 32, 32], strides = [1, 1, 1]} : vector<9x32x32xbf16> to vector<1x32x32xbf16>
    %54 = vector.shape_cast %53 : vector<1x32x32xbf16> to vector<32x32xbf16>
    %55 = vector.extract_strided_slice %35 {offsets = [0, 18], sizes = [32, 288], strides = [1, 1]} : vector<32x342xbf16> to vector<32x288xbf16>
    %cst_19 = arith.constant dense<0.000000e+00> : vector<32x288xf32>
    %56 = tpu.matmul %54, %55, %cst_19 {dimension_numbers = #tpu.dot_dimension_numbers<[1], [0], [0], [1], [0, 0, 1, 1], [], []>} : vector<32x32xbf16>, vector<32x288xbf16>, vector<32x288xf32> -> vector<32x288xf32>
    %57 = arith.addf %52, %56 : vector<32x288xf32>
    %58 = vector.extract_strided_slice %36 {offsets = [4, 0, 0], sizes = [1, 32, 32], strides = [1, 1, 1]} : vector<9x32x32xbf16> to vector<1x32x32xbf16>
    %59 = vector.shape_cast %58 : vector<1x32x32xbf16> to vector<32x32xbf16>
    %60 = vector.extract_strided_slice %35 {offsets = [0, 19], sizes = [32, 288], strides = [1, 1]} : vector<32x342xbf16> to vector<32x288xbf16>
    %cst_20 = arith.constant dense<0.000000e+00> : vector<32x288xf32>
    %61 = tpu.matmul %59, %60, %cst_20 {dimension_numbers = #tpu.dot_dimension_numbers<[1], [0], [0], [1], [0, 0, 1, 1], [], []>} : vector<32x32xbf16>, vector<32x288xbf16>, vector<32x288xf32> -> vector<32x288xf32>
    %62 = arith.addf %57, %61 : vector<32x288xf32>
    %63 = vector.extract_strided_slice %36 {offsets = [5, 0, 0], sizes = [1, 32, 32], strides = [1, 1, 1]} : vector<9x32x32xbf16> to vector<1x32x32xbf16>
    %64 = vector.shape_cast %63 : vector<1x32x32xbf16> to vector<32x32xbf16>
    %65 = vector.extract_strided_slice %35 {offsets = [0, 20], sizes = [32, 288], strides = [1, 1]} : vector<32x342xbf16> to vector<32x288xbf16>
    %cst_21 = arith.constant dense<0.000000e+00> : vector<32x288xf32>
    %66 = tpu.matmul %64, %65, %cst_21 {dimension_numbers = #tpu.dot_dimension_numbers<[1], [0], [0], [1], [0, 0, 1, 1], [], []>} : vector<32x32xbf16>, vector<32x288xbf16>, vector<32x288xf32> -> vector<32x288xf32>
    %67 = arith.addf %62, %66 : vector<32x288xf32>
    %68 = vector.extract_strided_slice %36 {offsets = [6, 0, 0], sizes = [1, 32, 32], strides = [1, 1, 1]} : vector<9x32x32xbf16> to vector<1x32x32xbf16>
    %69 = vector.shape_cast %68 : vector<1x32x32xbf16> to vector<32x32xbf16>
    %70 = vector.extract_strided_slice %35 {offsets = [0, 36], sizes = [32, 288], strides = [1, 1]} : vector<32x342xbf16> to vector<32x288xbf16>
    %cst_22 = arith.constant dense<0.000000e+00> : vector<32x288xf32>
    %71 = tpu.matmul %69, %70, %cst_22 {dimension_numbers = #tpu.dot_dimension_numbers<[1], [0], [0], [1], [0, 0, 1, 1], [], []>} : vector<32x32xbf16>, vector<32x288xbf16>, vector<32x288xf32> -> vector<32x288xf32>
    %72 = arith.addf %67, %71 : vector<32x288xf32>
    %73 = vector.extract_strided_slice %36 {offsets = [7, 0, 0], sizes = [1, 32, 32], strides = [1, 1, 1]} : vector<9x32x32xbf16> to vector<1x32x32xbf16>
    %74 = vector.shape_cast %73 : vector<1x32x32xbf16> to vector<32x32xbf16>
    %75 = vector.extract_strided_slice %35 {offsets = [0, 37], sizes = [32, 288], strides = [1, 1]} : vector<32x342xbf16> to vector<32x288xbf16>
    %cst_23 = arith.constant dense<0.000000e+00> : vector<32x288xf32>
    %76 = tpu.matmul %74, %75, %cst_23 {dimension_numbers = #tpu.dot_dimension_numbers<[1], [0], [0], [1], [0, 0, 1, 1], [], []>} : vector<32x32xbf16>, vector<32x288xbf16>, vector<32x288xf32> -> vector<32x288xf32>
    %77 = arith.addf %72, %76 : vector<32x288xf32>
    %78 = vector.extract_strided_slice %36 {offsets = [8, 0, 0], sizes = [1, 32, 32], strides = [1, 1, 1]} : vector<9x32x32xbf16> to vector<1x32x32xbf16>
    %79 = vector.shape_cast %78 : vector<1x32x32xbf16> to vector<32x32xbf16>
    %80 = vector.extract_strided_slice %35 {offsets = [0, 38], sizes = [32, 288], strides = [1, 1]} : vector<32x342xbf16> to vector<32x288xbf16>
    %cst_24 = arith.constant dense<0.000000e+00> : vector<32x288xf32>
    %81 = tpu.matmul %79, %80, %cst_24 {dimension_numbers = #tpu.dot_dimension_numbers<[1], [0], [0], [1], [0, 0, 1, 1], [], []>} : vector<32x32xbf16>, vector<32x288xbf16>, vector<32x288xf32> -> vector<32x288xf32>
    %82 = arith.addf %77, %81 : vector<32x288xf32>
    %c0_25 = arith.constant 0 : index
    %c0_26 = arith.constant 0 : index
    %c0_27 = arith.constant 0 : index
    %83 = vector.load %arg5[%c0_25, %c0_26, %c0_27] : memref<1x32x288xf32, #tpu.memory_space<vmem>>, vector<1x32x288xf32>
    %84 = vector.shape_cast %83 : vector<1x32x288xf32> to vector<32x288xf32>
    %85 = vector.shape_cast %82 : vector<32x288xf32> to vector<1x32x288xf32>
    tpu.vector_store %arg5[%c0_25, %c0_26, %c0_27], %85 {strides = array<i32>} : memref<1x32x288xf32, #tpu.memory_space<vmem>>, vector<1x32x288xf32>,
    %86 = tpu.iota {dimensions = array<i32: 1>} : vector<32x288xi32>
    %c18_i32_28 = arith.constant 18 : i32
    %c0_i32_29 = arith.constant 0 : i32
    %87 = arith.cmpi eq, %c18_i32_28, %c0_i32_29 : i32
    %c1_i32_30 = arith.constant 1 : i32
    %88 = arith.select %87, %c1_i32_30, %c18_i32_28 : i32
    %89 = vector.broadcast %88 : i32 to vector<32x288xi32>
    %90 = arith.remsi %86, %89 : vector<32x288xi32>
    %c0_i32_31 = arith.constant 0 : i32
    %91 = vector.broadcast %c0_i32_31 : i32 to vector<32x288xi32>
    %92 = arith.cmpi ne, %90, %91 : vector<32x288xi32>
    %c0_i32_32 = arith.constant 0 : i32
    %93 = vector.broadcast %c0_i32_32 : i32 to vector<32x288xi32>
    %94 = arith.cmpi slt, %90, %93 : vector<32x288xi32>
    %c0_i32_33 = arith.constant 0 : i32
    %95 = arith.cmpi slt, %88, %c0_i32_33 : i32
    %96 = vector.broadcast %95 : i1 to vector<32x288xi1>
    %97 = vector.broadcast %96 : vector<32x288xi1> to vector<32x288xi1>
    %98 = arith.xori %94, %97 : vector<32x288xi1>
    %99 = arith.andi %98, %92 : vector<32x288xi1>
    %100 = vector.broadcast %88 : i32 to vector<32x288xi32>
    %101 = arith.addi %90, %100 : vector<32x288xi32>
    %102 = arith.select %99, %101, %90 : vector<32x288xi1>, vector<32x288xi32>
    %c16_i32_34 = arith.constant 16 : i32
    %103 = vector.broadcast %c16_i32_34 : i32 to vector<32x288xi32>
    %104 = arith.cmpi slt, %102, %103 : vector<32x288xi32>
    %cst_35 = arith.constant 0.000000e+00 : f32
    %105 = vector.broadcast %cst_35 : f32 to vector<32x288xf32>
    %106 = arith.select %104, %82, %105 : vector<32x288xi1>, vector<32x288xf32>
    %cst_36 = arith.constant dense<0.000000e+00> : vector<32xf32>
    %107 = vector.multi_reduction <add>, %106, %cst_36 [1] : vector<32x288xf32> to vector<32xf32>
    %108 = vector.shape_cast %107 : vector<32xf32> to vector<32x1xf32>
    %109 = arith.mulf %106, %106 : vector<32x288xf32>
    %cst_37 = arith.constant dense<0.000000e+00> : vector<32xf32>
    %110 = vector.multi_reduction <add>, %109, %cst_37 [1] : vector<32x288xf32> to vector<32xf32>
    %111 = vector.shape_cast %110 : vector<32xf32> to vector<32x1xf32>
    %112 = tpu.concatenate %108, %111 in 1 : vector<32x1xf32>, vector<32x1xf32> -> vector<32x2xf32>
    %c0_i32_38 = arith.constant 0 : i32
    %113 = arith.cmpi eq, %arg0, %c0_i32_38 : i32
    %114 = arith.extui %113 : i1 to i32
    %c0_i32_39 = arith.constant 0 : i32
    %115 = arith.cmpi ne, %114, %c0_i32_39 : i32
    scf.if %115 {
      %cst_44 = arith.constant 0.000000e+00 : f32
      %119 = vector.broadcast %cst_44 : f32 to vector<32x2xf32>
      %c0_45 = arith.constant 0 : index
      %c0_46 = arith.constant 0 : index
      %120 = vector.load %arg6[%c0_45, %c0_46] : memref<32x2xf32, #tpu.memory_space<vmem>>, vector<32x2xf32>
      tpu.vector_store %arg6[%c0_45, %c0_46], %119 {strides = array<i32>} : memref<32x2xf32, #tpu.memory_space<vmem>>, vector<32x2xf32>,
    } else {
    }
    %c0_40 = arith.constant 0 : index
    %c0_41 = arith.constant 0 : index
    %116 = vector.load %arg6[%c0_40, %c0_41] : memref<32x2xf32, #tpu.memory_space<vmem>>, vector<32x2xf32>
    %117 = arith.addf %116, %112 : vector<32x2xf32>
    %c0_42 = arith.constant 0 : index
    %c0_43 = arith.constant 0 : index
    %118 = vector.load %arg6[%c0_42, %c0_43] : memref<32x2xf32, #tpu.memory_space<vmem>>, vector<32x2xf32>
    tpu.vector_store %arg6[%c0_42, %c0_43], %117 {strides = array<i32>} : memref<32x2xf32, #tpu.memory_space<vmem>>, vector<32x2xf32>,
    return
  }
  func.func @transform_0(%arg0: i32) -> (i32, i32, i32) {
    %c0_i32 = arith.constant 0 : i32
    %c0_i32_0 = arith.constant 0 : i32
    %c0_i32_1 = arith.constant 0 : i32
    return %arg0, %c0_i32, %c0_i32_0 : i32, i32, i32
  }
  func.func @transform_1(%arg0: i32) -> (i32, i32) {
    %c0_i32 = arith.constant 0 : i32
    %c0_i32_0 = arith.constant 0 : i32
    %c0_i32_1 = arith.constant 0 : i32
    return %c0_i32, %c0_i32_0 : i32, i32
  }
  func.func @transform_2(%arg0: i32) -> (i32, i32) {
    %c0_i32 = arith.constant 0 : i32
    %c0_i32_0 = arith.constant 0 : i32
    %c0_i32_1 = arith.constant 0 : i32
    return %c0_i32, %c0_i32_0 : i32, i32
  }
  func.func @transform_3(%arg0: i32) -> (i32, i32, i32) {
    %c0_i32 = arith.constant 0 : i32
    %c0_i32_0 = arith.constant 0 : i32
    %c0_i32_1 = arith.constant 0 : i32
    %c0_i32_2 = arith.constant 0 : i32
    return %c0_i32, %c0_i32_0, %c0_i32_1 : i32, i32, i32
  }
  func.func @transform_4(%arg0: i32) -> (i32, i32, i32) {
    %c0_i32 = arith.constant 0 : i32
    %c0_i32_0 = arith.constant 0 : i32
    %c0_i32_1 = arith.constant 0 : i32
    return %arg0, %c0_i32, %c0_i32_0 : i32, i32, i32
  }
  func.func @transform_5(%arg0: i32) -> (i32, i32) {
    %c0_i32 = arith.constant 0 : i32
    %c0_i32_0 = arith.constant 0 : i32
    %c0_i32_1 = arith.constant 0 : i32
    return %c0_i32, %c0_i32_0 : i32, i32
  }
}

module attributes {stable_mosaic.version = 11 : i64} {
  func.func @_bn_relu_kernel(%arg0: i32, %arg1: memref<1x32x288xf32, #tpu.memory_space<vmem>>, %arg2: memref<32x1xf32, #tpu.memory_space<vmem>>, %arg3: memref<32x1xf32, #tpu.memory_space<vmem>>, %arg4: memref<1x32x288xf32, #tpu.memory_space<vmem>>) attributes {dimension_semantics = [#tpu.dimension_semantics<parallel>], iteration_bounds = array<i64: 2>, scalar_prefetch = 0 : i64, scratch_operands = 0 : i64, tpu.core_type = #tpu.core_type<tc>, window_params = [{transform_indices = @transform_0, window_bounds = array<i64: 1, 32, 288>}, {pipeline_mode = #tpu.pipeline_mode<synchronous>, transform_indices = @transform_1, window_bounds = array<i64: 32, 1>}, {pipeline_mode = #tpu.pipeline_mode<synchronous>, transform_indices = @transform_2, window_bounds = array<i64: 32, 1>}, {transform_indices = @transform_3, window_bounds = array<i64: 1, 32, 288>}]} {
    %c0 = arith.constant 0 : index
    %c0_0 = arith.constant 0 : index
    %c0_1 = arith.constant 0 : index
    %0 = vector.load %arg1[%c0, %c0_0, %c0_1] : memref<1x32x288xf32, #tpu.memory_space<vmem>>, vector<1x32x288xf32>
    %1 = vector.shape_cast %0 : vector<1x32x288xf32> to vector<32x288xf32>
    %c0_2 = arith.constant 0 : index
    %c0_3 = arith.constant 0 : index
    %2 = vector.load %arg2[%c0_2, %c0_3] : memref<32x1xf32, #tpu.memory_space<vmem>>, vector<32x1xf32>
    %3 = vector.broadcast %2 : vector<32x1xf32> to vector<32x288xf32>
    %4 = arith.mulf %1, %3 : vector<32x288xf32>
    %c0_4 = arith.constant 0 : index
    %c0_5 = arith.constant 0 : index
    %5 = vector.load %arg3[%c0_4, %c0_5] : memref<32x1xf32, #tpu.memory_space<vmem>>, vector<32x1xf32>
    %6 = vector.broadcast %5 : vector<32x1xf32> to vector<32x288xf32>
    %7 = arith.addf %4, %6 : vector<32x288xf32>
    %cst = arith.constant 0.000000e+00 : f32
    %8 = vector.broadcast %cst : f32 to vector<32x288xf32>
    %9 = arith.maximumf %7, %8 : vector<32x288xf32>
    %c0_6 = arith.constant 0 : index
    %c0_7 = arith.constant 0 : index
    %c0_8 = arith.constant 0 : index
    %10 = vector.load %arg4[%c0_6, %c0_7, %c0_8] : memref<1x32x288xf32, #tpu.memory_space<vmem>>, vector<1x32x288xf32>
    %11 = vector.shape_cast %10 : vector<1x32x288xf32> to vector<32x288xf32>
    %12 = vector.shape_cast %9 : vector<32x288xf32> to vector<1x32x288xf32>
    tpu.vector_store %arg4[%c0_6, %c0_7, %c0_8], %12 {strides = array<i32>} : memref<1x32x288xf32, #tpu.memory_space<vmem>>, vector<1x32x288xf32>,
    return
  }
  func.func @transform_0(%arg0: i32) -> (i32, i32, i32) {
    %c0_i32 = arith.constant 0 : i32
    %c0_i32_0 = arith.constant 0 : i32
    %c0_i32_1 = arith.constant 0 : i32
    return %arg0, %c0_i32, %c0_i32_0 : i32, i32, i32
  }
  func.func @transform_1(%arg0: i32) -> (i32, i32) {
    %c0_i32 = arith.constant 0 : i32
    %c0_i32_0 = arith.constant 0 : i32
    %c0_i32_1 = arith.constant 0 : i32
    return %c0_i32, %c0_i32_0 : i32, i32
  }
  func.func @transform_2(%arg0: i32) -> (i32, i32) {
    %c0_i32 = arith.constant 0 : i32
    %c0_i32_0 = arith.constant 0 : i32
    %c0_i32_1 = arith.constant 0 : i32
    return %c0_i32, %c0_i32_0 : i32, i32
  }
  func.func @transform_3(%arg0: i32) -> (i32, i32, i32) {
    %c0_i32 = arith.constant 0 : i32
    %c0_i32_0 = arith.constant 0 : i32
    %c0_i32_1 = arith.constant 0 : i32
    return %arg0, %c0_i32, %c0_i32_0 : i32, i32, i32
  }
}

</mosaic_0001>

<llo_original>
// kernel: down_forward.3
$region0: #{down_forward.3}
  #allocation0 [shape = 'u32[]', space=smem, size = 0x4, offset = 0x4, fixed_abs, tag = 'smem constant byte address 0x4 - core index']
  #allocation1 [shape = 'u32[144,128]{1,0:T(1,128)}', space=vmem, size = 0x12000, scoped, tag = 'internal scratch']
  %s0 = inlined_call_operand.vmem [shape: bf16[2,16,342], index: 0, kind: input, shape index: {}]
  %s1 = inlined_call_operand.vmem [shape: bf16[9,32,16], index: 1, kind: input, shape index: {}]
  %s2 = inlined_call_operand.vmem [shape: f32[2,32,288], index: 2, kind: output, shape index: {0}]
  %s3 = inlined_call_operand.vmem [shape: f32[32,2], index: 3, kind: output, shape index: {1}]
  %4 = xla_tuple %s2, %s3
  %s5 = sld [smem:[#allocation0]]
  $region53: #{down_forward.3} parent=0
    _
  %s7 = ssub.s32 1, %s5
  %s8 = scalar_select 0, %s7, %s5
  loop: start=0, step=1, limit=4
  $region2: #{down_forward.3} parent=0 // loop_pre_header
    _
  $region3: #{down_forward.3} parent=0 // loop_header
    %s10 = sphi 0, %s14
    %p11 = scmp.ge.s32.totalorder %s10, 4
    %s20 = sphi 0, %s22
    %s23 = sphi 0, %s20
    %s24 = sphi 0, %s23
    %s40 = sphi 0, %s24
    %s44 = sphi 0, %s44
    %s46 = sphi 0, %s44
    %s47 = sphi 0, %s46
    %s61 = sphi 0, %s47
    %s67 = sphi 0, %s69
    %s70 = sphi 0, %s67
    %s71 = sphi 0, %s70
    %s87 = sphi 0, %s71
    %s91 = sphi 0, %s91
    %s93 = sphi 0, %s91
    %s94 = sphi 0, %s93
    %s108 = sphi 0, %s94
  $region4: #{down_forward.3} parent=0 // loop_header_branch
    %13 = sbr.rel (%p11) target = $region8
  $region5: #{down_forward.3} parent=0 // loop_body
    %s15 = ssub.s32 %s10, 1
    %s16 = ssub.s32 %s10, 2
    %s17 = sadd.s32 %s10, 1
    %s18 = ssub.s32 %s10, %s17
    %p19 = scmp.eq.s32.totalorder %s18, 0
    %s21 = sadd.s32 %s20, 1
    %s22 = scalar_select %p19, %s20, %s21
    %p25 = pneg %p19
    %p26 = scmp.eq.s32.totalorder %s10, 1
    %p27 = por %p25, %p26
    %p28 = scmp.ne.s32.totalorder %s20, %s23
    %p29 = scmp.eq.s32.totalorder %s10, 0
    %p30 = por %p28, %p29
    %p31 = scmp.ne.s32.totalorder %s20, %s23
    %p32 = scmp.eq.s32.totalorder %s15, 1
    %p33 = por %p31, %p32
    %p34 = scmp.ne.s32.totalorder %s23, %s24
    %p35 = scmp.eq.s32.totalorder %s15, 0
    %p36 = por %p34, %p35
    %p37 = scmp.ne.s32.totalorder %s23, %s24
    %p38 = scmp.eq.s32.totalorder %s16, 1
    %p39 = por %p37, %p38
    %p41 = scmp.ne.s32.totalorder %s24, %s40
    %p42 = scmp.eq.s32.totalorder %s16, 0
    %p43 = por %p41, %p42
    %s45 = sadd.s32 %s44, 1
    %p48 = scmp.eq.s32.totalorder %s10, 1
    %p49 = scmp.ne.s32.totalorder %s44, %s46
    %p50 = scmp.eq.s32.totalorder %s10, 0
    %p51 = por %p49, %p50
    %p52 = scmp.ne.s32.totalorder %s44, %s46
    %p53 = scmp.eq.s32.totalorder %s15, 1
    %p54 = por %p52, %p53
    %p55 = scmp.ne.s32.totalorder %s46, %s47
    %p56 = scmp.eq.s32.totalorder %s15, 0
    %p57 = por %p55, %p56
    %p58 = scmp.ne.s32.totalorder %s46, %s47
    %p59 = scmp.eq.s32.totalorder %s16, 1
    %p60 = por %p58, %p59
    %p62 = scmp.ne.s32.totalorder %s47, %s61
    %p63 = scmp.eq.s32.totalorder %s16, 0
    %p64 = por %p62, %p63
    %s65 = ssub.s32 %s10, %s17
    %p66 = scmp.eq.s32.totalorder %s65, 0
    %s68 = sadd.s32 %s67, 1
    %s69 = scalar_select %p66, %s67, %s68
    %p72 = pneg %p66
    %p73 = scmp.eq.s32.totalorder %s10, 1
    %p74 = por %p72, %p73
    %p75 = scmp.ne.s32.totalorder %s67, %s70
    %p76 = scmp.eq.s32.totalorder %s10, 0
    %p77 = por %p75, %p76
    %p78 = scmp.ne.s32.totalorder %s67, %s70
    %p79 = scmp.eq.s32.totalorder %s15, 1
    %p80 = por %p78, %p79
    %p81 = scmp.ne.s32.totalorder %s70, %s71
    %p82 = scmp.eq.s32.totalorder %s15, 0
    %p83 = por %p81, %p82
    %p84 = scmp.ne.s32.totalorder %s70, %s71
    %p85 = scmp.eq.s32.totalorder %s16, 1
    %p86 = por %p84, %p85
    %p88 = scmp.ne.s32.totalorder %s71, %s87
    %p89 = scmp.eq.s32.totalorder %s16, 0
    %p90 = por %p88, %p89
    %s92 = sadd.s32 %s91, 1
    %p95 = scmp.eq.s32.totalorder %s10, 1
    %p96 = scmp.ne.s32.totalorder %s91, %s93
    %p97 = scmp.eq.s32.totalorder %s10, 0
    %p98 = por %p96, %p97
    %p99 = scmp.ne.s32.totalorder %s91, %s93
    %p100 = scmp.eq.s32.totalorder %s15, 1
    %p101 = por %p99, %p100
    %p102 = scmp.ne.s32.totalorder %s93, %s94
    %p103 = scmp.eq.s32.totalorder %s15, 0
    %p104 = por %p102, %p103
    %p105 = scmp.ne.s32.totalorder %s93, %s94
    %p106 = scmp.eq.s32.totalorder %s16, 1
    %p107 = por %p105, %p106
    %p109 = scmp.ne.s32.totalorder %s94, %s108
    %p110 = scmp.eq.s32.totalorder %s16, 0
    %p111 = por %p109, %p110
    %p112 = scmp.le.s32.totalorder 1, %s10
    %p113 = scmp.lt.s32.totalorder %s10, 3
    %p114 = pnand %p112, %p113
    %p115 = pneg %p114
    // Predicated region
    $region9: #{down_forward.3} parent=5 // pred_check
      _
    $region10: #{down_forward.3} parent=5 // pred_check_branch
      %117 = sbr.rel (%p114) target = $region12
    $region11: #{down_forward.3} parent=5 // pred_region
      %s118 = ssub.s32 %s10, 1
      // Predicated region
      $region13: #{down_forward.3} parent=11 // pred_check
        %p119 = pneg %p57
      $region14: #{down_forward.3} parent=11 // pred_check_branch
        %121 = sbr.rel (%p119) target = $region16
      $region15: #{down_forward.3} parent=11 // pred_region
        _
      $region16: #{down_forward.3} parent=11 // pred_fallthru
        _
    $region12: #{down_forward.3} parent=5 // pred_fallthru
      _
    %p122 = scmp.lt.s32.totalorder %s10, 2
    // Predicated region
    $region17: #{down_forward.3} parent=5 // pred_check
      %p123 = pneg %p122
    $region18: #{down_forward.3} parent=5 // pred_check_branch
      %125 = sbr.rel (%p123) target = $region20
    $region19: #{down_forward.3} parent=5 // pred_region
      // Predicated region
      $region21: #{down_forward.3} parent=19 // pred_check
        %p126 = pneg %p30
      $region22: #{down_forward.3} parent=19 // pred_check_branch
        %128 = sbr.rel (%p126) target = $region24
      $region23: #{down_forward.3} parent=19 // pred_region
        %p129 = scmp.lt.s32.totalorder %s10, 1
        %s130 = scalar_select %p129, %s10, 1
        %s131 = smul.addr %s130, 6
        %s132 = smul.addr %s131, 4
        %s133 = scalar_lea.vmem %s0, %s132
      $region24: #{down_forward.3} parent=19 // pred_fallthru
        _
    $region20: #{down_forward.3} parent=5 // pred_fallthru
      _
    %p134 = scmp.le.s32.totalorder 1, %s10
    %p135 = scmp.lt.s32.totalorder %s10, 3
    %p136 = pnand %p134, %p135
    %p137 = pneg %p136
    // Predicated region
    $region25: #{down_forward.3} parent=5 // pred_check
      _
    $region26: #{down_forward.3} parent=5 // pred_check_branch
      %139 = sbr.rel (%p136) target = $region28
    $region27: #{down_forward.3} parent=5 // pred_region
      %s140 = ssub.s32 %s10, 1
      %p141 = scmp.lt.s32.totalorder %s15, 1
      %s142 = scalar_select %p141, %s15, 1
      %s143 = smul.addr %s142, 6
      %s144 = smul.addr %s143, 4
      %s145 = scalar_lea.vmem %s0, %s144
      %p146 = pneg %p36
      %p147 = pneg %p33
      %p148 = pneg %p57
      %p149 = pneg %p54
      %p150 = pneg %p83
      %p151 = pneg %p80
      %p152 = scmp.lt.s32.totalorder %s15, 1
      %s153 = scalar_select %p152, %s15, 1
      %s154 = smul.addr %s153, 12
      %s155 = smul.addr %s154, 8
      %s156 = scalar_lea.vmem %s2, %s155
      %p157 = pneg %p104
      %p158 = pneg %p101
      %p159 = scmp.lt.s32.totalorder %s15, 1
      %s160 = scalar_select %p159, %s15, 1
      %s161 = smul.addr %s160, 6
      %s162 = smul.addr %s161, 4
      %s163 = scalar_lea.vmem %s0, %s162
      %p164 = scmp.lt.s32.totalorder %s15, 1
      %s165 = scalar_select %p164, %s15, 1
      %s166 = smul.addr %s165, 12
      %s167 = smul.addr %s166, 8
      %s168 = scalar_lea.vmem %s2, %s167
      %v170 = vld [vmem:[%s163] sm:$0xff]
      %v171 = vld [vmem:[%s163 + $0x8] sm:$0xf]
      %v172 = vld [vmem:[%s163 + $0xc] sm:$0xff]
      %v173 = vld [vmem:[%s163 + $0x14] sm:$0xf]
      %v174 = vld [vmem:[%s1] sm:$0xf]
      %v175 = vld [vmem:[%s1 + $0x4] sm:$0xf]
      %v176 = vld [vmem:[%s1 + $0x8] sm:$0xf]
      %v177 = vld [vmem:[%s1 + $0xc] sm:$0xf]
      %v178 = vld [vmem:[%s1 + $0x10] sm:$0xf]
      %v179 = vld [vmem:[%s1 + $0x14] sm:$0xf]
      %v180 = vld [vmem:[%s1 + $0x18] sm:$0xf]
      %v181 = vld [vmem:[%s1 + $0x1c] sm:$0xf]
      %v182 = vld [vmem:[%s1 + $0x20] sm:$0xf]
      %v183 = vld [vmem:[%s1 + $0x24] sm:$0xf]
      %v184 = vld [vmem:[%s1 + $0x28] sm:$0xf]
      %v185 = vld [vmem:[%s1 + $0x2c] sm:$0xf]
      %v186 = vld [vmem:[%s1 + $0x30] sm:$0xf]
      %v187 = vld [vmem:[%s1 + $0x34] sm:$0xf]
      %v188 = vld [vmem:[%s1 + $0x38] sm:$0xf]
      %v189 = vld [vmem:[%s1 + $0x3c] sm:$0xf]
      %v190 = vld [vmem:[%s1 + $0x40] sm:$0xf]
      %v191 = vld [vmem:[%s1 + $0x44] sm:$0xf]
      %v192 = vld [vmem:[%s1 + $0x48] sm:$0xf]
      %v193 = vld [vmem:[%s1 + $0x4c] sm:$0xf]
      %v194 = vld [vmem:[%s1 + $0x50] sm:$0xf]
      %v195 = vld [vmem:[%s1 + $0x54] sm:$0xf]
      %v196 = vld [vmem:[%s1 + $0x58] sm:$0xf]
      %v197 = vld [vmem:[%s1 + $0x5c] sm:$0xf]
      %v198 = vld [vmem:[%s1 + $0x60] sm:$0xf]
      %v199 = vld [vmem:[%s1 + $0x64] sm:$0xf]
      %v200 = vld [vmem:[%s1 + $0x68] sm:$0xf]
      %v201 = vld [vmem:[%s1 + $0x6c] sm:$0xf]
      %v202 = vld [vmem:[%s1 + $0x70] sm:$0xf]
      %v203 = vld [vmem:[%s1 + $0x74] sm:$0xf]
      %v204 = vld [vmem:[%s1 + $0x78] sm:$0xf]
      %v205 = vld [vmem:[%s1 + $0x7c] sm:$0xf]
      %v206 = vld [vmem:[%s1 + $0x80] sm:$0xf]
      %v207 = vld [vmem:[%s1 + $0x84] sm:$0xf]
      %v208 = vld [vmem:[%s1 + $0x88] sm:$0xf]
      %v209 = vld [vmem:[%s1 + $0x8c] sm:$0xf]
      %v214 = vunpack.c.l.b16 %v178
      %v215 = vunpack.c.l.b16 %v179
      %v216 = vunpack.c.l.b16 %v180
      %v217 = vunpack.c.l.b16 %v181
      %v218 = vpack.c.b16 %v215, %v214
      %v219 = vpack.c.b16 %v217, %v216
      %v224 = vunpack.c.l.b16 %v170
      %v225 = vunpack.c.h.b16 %v170
      %v226 = vunpack.c.l.b16 %v171
      %v227 = vunpack.c.l.b16 %v172
      %v228 = vunpack.c.h.b16 %v172
      %v229 = vunpack.c.l.b16 %v173
      %v230 = vpack.c.b16 %v227, %v224
      %v231 = vpack.c.b16 %v228, %v225
      %v232 = vpack.c.b16 %v229, %v226
      %233 = vrot.lane.b32.xlu0 %v230, 127
      %v234 = vpop.permute.xlu0 %233
      %235 = vrot.lane.b32.xlu0 %v231, 127
      %v236 = vpop.permute.xlu0 %235
      %237 = vrot.lane.b32.xlu0 %v232, 127
      %v238 = vpop.permute.xlu0 %237
      %vm239 = vcmask 1039360
      %v240 = vsel %vm239, %v234, %v236
      %v241 = vsel %vm239, %v236, %v238
      %vm245 = vcmask 130048
      %v247 = vsel %vm245, %v218, 0
      %v250 = vsel %vm245, %v219, 0
      %252 = vmatprep.subr.bf16.mxu0 %v241
      %253 = vmatpush1.bf16.msra.mxu0 %v240
      %254 = vmatprep.subr.bf16.mxu0 0
      %255 = vmatpush1.bf16.msra.mxu0 0
      %256 = vmatprep.subr.bf16.mxu0 0
      %257 = vmatpush1.bf16.msra.mxu0 0
      %258 = vmatprep.subr.bf16.mxu0 0
      %259 = vmatpush1.bf16.msra.mxu0 0
      %260 = vmatprep.subr.bf16.mxu0 0
      %261 = vmatpush1.bf16.msra.mxu0 0
      %262 = vmatprep.subr.bf16.mxu0 0
      %263 = vmatpush1.bf16.msra.mxu0 0
      %264 = vmatprep.subr.bf16.mxu0 0
      %265 = vmatpush1.bf16.msra.mxu0 0
      %266 = vmatprep.subr.bf16.mxu0 0
      %267 = vmatpush1.bf16.msra.mxu0 0
      %268 = vmatprep.subr.bf16.mxu0 0
      %269 = vmatpush1.bf16.msra.mxu0 0
      %270 = vmatprep.subr.bf16.mxu0 0
      %271 = vmatpush1.bf16.msra.mxu0 0
      %272 = vmatprep.subr.bf16.mxu0 0
      %273 = vmatpush1.bf16.msra.mxu0 0
      %274 = vmatprep.subr.bf16.mxu0 0
      %275 = vmatpush1.bf16.msra.mxu0 0
      %276 = vmatprep.subr.bf16.mxu0 0
      %277 = vmatpush1.bf16.msra.mxu0 0
      %278 = vmatprep.subr.bf16.mxu0 0
      %279 = vmatpush1.bf16.msra.mxu0 0
      %280 = vmatprep.subr.bf16.mxu0 0
      %281 = vmatpush1.bf16.msra.mxu0 0
      %282 = vmatprep.subr.bf16.mxu0 0
      %283 = vmatpush1.bf16.msra.mxu0 0
      %284 = vmatprep.mubr.bf16.mxu0 0
      %285 = vmatmul.mubr.bf16.gmra.mrb[0].mxu0 %v247
      %v286 = vpop.f32.mrb[0].mxu0
      %v287 = vadd.f32 0.0, %v286
      %v288 = vpop.f32.mrb[0].mxu0
      %v289 = vadd.f32 0.0, %v288
      %v290 = vpop.f32.mrb[0].mxu0
      %v291 = vadd.f32 0.0, %v290
      %v292 = vpop.f32.mrb[0].mxu0
      %v293 = vadd.f32 0.0, %v292
      %294 = vmatprep.mubr.bf16.mxu0 0
      %295 = vmatmul.mubr.bf16.gmra.mrb[0].mxu0 %v250
      %v296 = vpop.f32.mrb[0].mxu0
      %v297 = vadd.f32 0.0, %v296
      %v298 = vpop.f32.mrb[0].mxu0
      %v299 = vadd.f32 0.0, %v298
      %v300 = vpop.f32.mrb[0].mxu0
      %v301 = vadd.f32 0.0, %v300
      %v302 = vpop.f32.mrb[0].mxu0
      %v303 = vadd.f32 0.0, %v302
      %304 = vdwg.mxu0
      %305 = vmatprep.subr.bf16.mxu0 0
      %306 = vmatpush1.bf16.msra.mxu0 %v238
      %307 = vmatprep.subr.bf16.mxu0 0
      %308 = vmatpush1.bf16.msra.mxu0 0
      %309 = vmatprep.subr.bf16.mxu0 0
      %310 = vmatpush1.bf16.msra.mxu0 0
      %311 = vmatprep.subr.bf16.mxu0 0
      %312 = vmatpush1.bf16.msra.mxu0 0
      %313 = vmatprep.subr.bf16.mxu0 0
      %314 = vmatpush1.bf16.msra.mxu0 0
      %315 = vmatprep.subr.bf16.mxu0 0
      %316 = vmatpush1.bf16.msra.mxu0 0
      %317 = vmatprep.subr.bf16.mxu0 0
      %318 = vmatpush1.bf16.msra.mxu0 0
      %319 = vmatprep.subr.bf16.mxu0 0
      %320 = vmatpush1.bf16.msra.mxu0 0
      %321 = vmatprep.subr.bf16.mxu0 0
      %322 = vmatpush1.bf16.msra.mxu0 0
      %323 = vmatprep.subr.bf16.mxu0 0
      %324 = vmatpush1.bf16.msra.mxu0 0
      %325 = vmatprep.subr.bf16.mxu0 0
      %326 = vmatpush1.bf16.msra.mxu0 0
      %327 = vmatprep.subr.bf16.mxu0 0
      %328 = vmatpush1.bf16.msra.mxu0 0
      %329 = vmatprep.subr.bf16.mxu0 0
      %330 = vmatpush1.bf16.msra.mxu0 0
      %331 = vmatprep.subr.bf16.mxu0 0
      %332 = vmatpush1.bf16.msra.mxu0 0
      %333 = vmatprep.subr.bf16.mxu0 0
      %334 = vmatpush1.bf16.msra.mxu0 0
      %335 = vmatprep.subr.bf16.mxu0 0
      %336 = vmatpush1.bf16.msra.mxu0 0
      %337 = vmatprep.mubr.bf16.mxu0 0
      %338 = vmatmul.mubr.bf16.gmra.mrb[0].mxu0 %v247
      %v339 = vpop.f32.mrb[0].mxu0
      %v340 = vadd.f32 0.0, %v339
      %v341 = vpop.f32.mrb[0].mxu0
      %v342 = vpop.f32.mrb[0].mxu0
      %v343 = vadd.f32 0.0, %v342
      %v344 = vpop.f32.mrb[0].mxu0
      %345 = vmatprep.mubr.bf16.mxu0 0
      %346 = vmatmul.mubr.bf16.gmra.mrb[0].mxu0 %v250
      %v347 = vpop.f32.mrb[0].mxu0
      %v348 = vadd.f32 0.0, %v347
      %v349 = vpop.f32.mrb[0].mxu0
      %v350 = vpop.f32.mrb[0].mxu0
      %v351 = vadd.f32 0.0, %v350
      %v352 = vpop.f32.mrb[0].mxu0
      %353 = vdwg.mxu0
      %v358 = vunpack.c.l.b16 %v174
      %v359 = vunpack.c.l.b16 %v175
      %v360 = vunpack.c.l.b16 %v176
      %v361 = vunpack.c.l.b16 %v177
      %v362 = vpack.c.b16 %v359, %v358
      %v363 = vpack.c.b16 %v361, %v360
      %v368 = vsel %vm245, %v362, 0
      %v371 = vsel %vm245, %v363, 0
      %373 = vmatprep.subr.bf16.mxu0 %v231
      %374 = vmatpush1.bf16.msra.mxu0 %v230
      %375 = vmatprep.subr.bf16.mxu0 0
      %376 = vmatpush1.bf16.msra.mxu0 0
      %377 = vmatprep.subr.bf16.mxu0 0
      %378 = vmatpush1.bf16.msra.mxu0 0
      %379 = vmatprep.subr.bf16.mxu0 0
      %380 = vmatpush1.bf16.msra.mxu0 0
      %381 = vmatprep.subr.bf16.mxu0 0
      %382 = vmatpush1.bf16.msra.mxu0 0
      %383 = vmatprep.subr.bf16.mxu0 0
      %384 = vmatpush1.bf16.msra.mxu0 0
      %385 = vmatprep.subr.bf16.mxu0 0
      %386 = vmatpush1.bf16.msra.mxu0 0
      %387 = vmatprep.subr.bf16.mxu0 0
      %388 = vmatpush1.bf16.msra.mxu0 0
      %389 = vmatprep.subr.bf16.mxu0 0
      %390 = vmatpush1.bf16.msra.mxu0 0
      %391 = vmatprep.subr.bf16.mxu0 0
      %392 = vmatpush1.bf16.msra.mxu0 0
      %393 = vmatprep.subr.bf16.mxu0 0
      %394 = vmatpush1.bf16.msra.mxu0 0
      %395 = vmatprep.subr.bf16.mxu0 0
      %396 = vmatpush1.bf16.msra.mxu0 0
      %397 = vmatprep.subr.bf16.mxu0 0
      %398 = vmatpush1.bf16.msra.mxu0 0
      %399 = vmatprep.subr.bf16.mxu0 0
      %400 = vmatpush1.bf16.msra.mxu0 0
      %401 = vmatprep.subr.bf16.mxu0 0
      %402 = vmatpush1.bf16.msra.mxu0 0
      %403 = vmatprep.subr.bf16.mxu0 0
      %404 = vmatpush1.bf16.msra.mxu0 0
      %405 = vmatprep.mubr.bf16.mxu0 0
      %406 = vmatmul.mubr.bf16.gmra.mrb[0].mxu0 %v368
      %v407 = vpop.f32.mrb[0].mxu0
      %v408 = vadd.f32 %v287, %v407
      %v409 = vpop.f32.mrb[0].mxu0
      %v410 = vadd.f32 %v289, %v409
      %v411 = vpop.f32.mrb[0].mxu0
      %v412 = vadd.f32 %v291, %v411
      %v413 = vpop.f32.mrb[0].mxu0
      %v414 = vadd.f32 %v293, %v413
      %415 = vmatprep.mubr.bf16.mxu0 0
      %416 = vmatmul.mubr.bf16.gmra.mrb[0].mxu0 %v371
      %v417 = vpop.f32.mrb[0].mxu0
      %v418 = vadd.f32 %v297, %v417
      %v419 = vpop.f32.mrb[0].mxu0
      %v420 = vadd.f32 %v299, %v419
      %v421 = vpop.f32.mrb[0].mxu0
      %v422 = vadd.f32 %v301, %v421
      %v423 = vpop.f32.mrb[0].mxu0
      %v424 = vadd.f32 %v303, %v423
      %425 = vdwg.mxu0
      %426 = vmatprep.subr.bf16.mxu0 0
      %427 = vmatpush1.bf16.msra.mxu0 %v232
      %428 = vmatprep.subr.bf16.mxu0 0
      %429 = vmatpush1.bf16.msra.mxu0 0
      %430 = vmatprep.subr.bf16.mxu0 0
      %431 = vmatpush1.bf16.msra.mxu0 0
      %432 = vmatprep.subr.bf16.mxu0 0
      %433 = vmatpush1.bf16.msra.mxu0 0
      %434 = vmatprep.subr.bf16.mxu0 0
      %435 = vmatpush1.bf16.msra.mxu0 0
      %436 = vmatprep.subr.bf16.mxu0 0
      %437 = vmatpush1.bf16.msra.mxu0 0
      %438 = vmatprep.subr.bf16.mxu0 0
      %439 = vmatpush1.bf16.msra.mxu0 0
      %440 = vmatprep.subr.bf16.mxu0 0
      %441 = vmatpush1.bf16.msra.mxu0 0
      %442 = vmatprep.subr.bf16.mxu0 0
      %443 = vmatpush1.bf16.msra.mxu0 0
      %444 = vmatprep.subr.bf16.mxu0 0
      %445 = vmatpush1.bf16.msra.mxu0 0
      %446 = vmatprep.subr.bf16.mxu0 0
      %447 = vmatpush1.bf16.msra.mxu0 0
      %448 = vmatprep.subr.bf16.mxu0 0
      %449 = vmatpush1.bf16.msra.mxu0 0
      %450 = vmatprep.subr.bf16.mxu0 0
      %451 = vmatpush1.bf16.msra.mxu0 0
      %452 = vmatprep.subr.bf16.mxu0 0
      %453 = vmatpush1.bf16.msra.mxu0 0
      %454 = vmatprep.subr.bf16.mxu0 0
      %455 = vmatpush1.bf16.msra.mxu0 0
      %456 = vmatprep.subr.bf16.mxu0 0
      %457 = vmatpush1.bf16.msra.mxu0 0
      %458 = vmatprep.mubr.bf16.mxu0 0
      %459 = vmatmul.mubr.bf16.gmra.mrb[0].mxu0 %v368
      %v460 = vpop.f32.mrb[0].mxu0
      %v461 = vadd.f32 %v340, %v460
      %v462 = vpop.f32.mrb[0].mxu0
      %v463 = vpop.f32.mrb[0].mxu0
      %v464 = vadd.f32 %v343, %v463
      %v465 = vpop.f32.mrb[0].mxu0
      %466 = vmatprep.mubr.bf16.mxu0 0
      %467 = vmatmul.mubr.bf16.gmra.mrb[0].mxu0 %v371
      %v468 = vpop.f32.mrb[0].mxu0
      %v469 = vadd.f32 %v348, %v468
      %v470 = vpop.f32.mrb[0].mxu0
      %v471 = vpop.f32.mrb[0].mxu0
      %v472 = vadd.f32 %v351, %v471
      %v473 = vpop.f32.mrb[0].mxu0
      %474 = vdwg.mxu0
      %v479 = vunpack.c.l.b16 %v182
      %v480 = vunpack.c.l.b16 %v183
      %v481 = vunpack.c.l.b16 %v184
      %v482 = vunpack.c.l.b16 %v185
      %v483 = vpack.c.b16 %v480, %v479
      %v484 = vpack.c.b16 %v482, %v481
      %485 = vrot.lane.b32.xlu0 %v230, 126
      %v486 = vpop.permute.xlu0 %485
      %487 = vrot.lane.b32.xlu0 %v231, 126
      %v488 = vpop.permute.xlu0 %487
      %489 = vrot.lane.b32.xlu0 %v232, 126
      %v490 = vpop.permute.xlu0 %489
      %vm491 = vcmask 1031168
      %v492 = vsel %vm491, %v486, %v488
      %v493 = vsel %vm491, %v488, %v490
      %v498 = vsel %vm245, %v483, 0
      %v501 = vsel %vm245, %v484, 0
      %503 = vmatprep.subr.bf16.mxu0 %v493
      %504 = vmatpush1.bf16.msra.mxu0 %v492
      %505 = vmatprep.subr.bf16.mxu0 0
      %506 = vmatpush1.bf16.msra.mxu0 0
      %507 = vmatprep.subr.bf16.mxu0 0
      %508 = vmatpush1.bf16.msra.mxu0 0
      %509 = vmatprep.subr.bf16.mxu0 0
      %510 = vmatpush1.bf16.msra.mxu0 0
      %511 = vmatprep.subr.bf16.mxu0 0
      %512 = vmatpush1.bf16.msra.mxu0 0
      %513 = vmatprep.subr.bf16.mxu0 0
      %514 = vmatpush1.bf16.msra.mxu0 0
      %515 = vmatprep.subr.bf16.mxu0 0
      %516 = vmatpush1.bf16.msra.mxu0 0
      %517 = vmatprep.subr.bf16.mxu0 0
      %518 = vmatpush1.bf16.msra.mxu0 0
      %519 = vmatprep.subr.bf16.mxu0 0
      %520 = vmatpush1.bf16.msra.mxu0 0
      %521 = vmatprep.subr.bf16.mxu0 0
      %522 = vmatpush1.bf16.msra.mxu0 0
      %523 = vmatprep.subr.bf16.mxu0 0
      %524 = vmatpush1.bf16.msra.mxu0 0
      %525 = vmatprep.subr.bf16.mxu0 0
      %526 = vmatpush1.bf16.msra.mxu0 0
      %527 = vmatprep.subr.bf16.mxu0 0
      %528 = vmatpush1.bf16.msra.mxu0 0
      %529 = vmatprep.subr.bf16.mxu0 0
      %530 = vmatpush1.bf16.msra.mxu0 0
      %531 = vmatprep.subr.bf16.mxu0 0
      %532 = vmatpush1.bf16.msra.mxu0 0
      %533 = vmatprep.subr.bf16.mxu0 0
      %534 = vmatpush1.bf16.msra.mxu0 0
      %535 = vmatprep.mubr.bf16.mxu0 0
      %536 = vmatmul.mubr.bf16.gmra.mrb[0].mxu0 %v498
      %v537 = vpop.f32.mrb[0].mxu0
      %v538 = vadd.f32 0.0, %v537
      %v539 = vpop.f32.mrb[0].mxu0
      %v540 = vadd.f32 0.0, %v539
      %v541 = vpop.f32.mrb[0].mxu0
      %v542 = vadd.f32 0.0, %v541
      %v543 = vpop.f32.mrb[0].mxu0
      %v544 = vadd.f32 0.0, %v543
      %545 = vmatprep.mubr.bf16.mxu0 0
      %546 = vmatmul.mubr.bf16.gmra.mrb[0].mxu0 %v501
      %v547 = vpop.f32.mrb[0].mxu0
      %v548 = vadd.f32 0.0, %v547
      %v549 = vpop.f32.mrb[0].mxu0
      %v550 = vadd.f32 0.0, %v549
      %v551 = vpop.f32.mrb[0].mxu0
      %v552 = vadd.f32 0.0, %v551
      %v553 = vpop.f32.mrb[0].mxu0
      %v554 = vadd.f32 0.0, %v553
      %555 = vdwg.mxu0
      %556 = vmatprep.subr.bf16.mxu0 0
      %557 = vmatpush1.bf16.msra.mxu0 %v490
      %558 = vmatprep.subr.bf16.mxu0 0
      %559 = vmatpush1.bf16.msra.mxu0 0
      %560 = vmatprep.subr.bf16.mxu0 0
      %561 = vmatpush1.bf16.msra.mxu0 0
      %562 = vmatprep.subr.bf16.mxu0 0
      %563 = vmatpush1.bf16.msra.mxu0 0
      %564 = vmatprep.subr.bf16.mxu0 0
      %565 = vmatpush1.bf16.msra.mxu0 0
      %566 = vmatprep.subr.bf16.mxu0 0
      %567 = vmatpush1.bf16.msra.mxu0 0
      %568 = vmatprep.subr.bf16.mxu0 0
      %569 = vmatpush1.bf16.msra.mxu0 0
      %570 = vmatprep.subr.bf16.mxu0 0
      %571 = vmatpush1.bf16.msra.mxu0 0
      %572 = vmatprep.subr.bf16.mxu0 0
      %573 = vmatpush1.bf16.msra.mxu0 0
      %574 = vmatprep.subr.bf16.mxu0 0
      %575 = vmatpush1.bf16.msra.mxu0 0
      %576 = vmatprep.subr.bf16.mxu0 0
      %577 = vmatpush1.bf16.msra.mxu0 0
      %578 = vmatprep.subr.bf16.mxu0 0
      %579 = vmatpush1.bf16.msra.mxu0 0
      %580 = vmatprep.subr.bf16.mxu0 0
      %581 = vmatpush1.bf16.msra.mxu0 0
      %582 = vmatprep.subr.bf16.mxu0 0
      %583 = vmatpush1.bf16.msra.mxu0 0
      %584 = vmatprep.subr.bf16.mxu0 0
      %585 = vmatpush1.bf16.msra.mxu0 0
      %586 = vmatprep.subr.bf16.mxu0 0
      %587 = vmatpush1.bf16.msra.mxu0 0
      %588 = vmatprep.mubr.bf16.mxu0 0
      %589 = vmatmul.mubr.bf16.gmra.mrb[0].mxu0 %v498
      %v590 = vpop.f32.mrb[0].mxu0
      %v591 = vadd.f32 0.0, %v590
      %v592 = vpop.f32.mrb[0].mxu0
      %v593 = vpop.f32.mrb[0].mxu0
      %v594 = vadd.f32 0.0, %v593
      %v595 = vpop.f32.mrb[0].mxu0
      %596 = vmatprep.mubr.bf16.mxu0 0
      %597 = vmatmul.mubr.bf16.gmra.mrb[0].mxu0 %v501
      %v598 = vpop.f32.mrb[0].mxu0
      %v599 = vadd.f32 0.0, %v598
      %v600 = vpop.f32.mrb[0].mxu0
      %v601 = vpop.f32.mrb[0].mxu0
      %v602 = vadd.f32 0.0, %v601
      %v603 = vpop.f32.mrb[0].mxu0
      %604 = vdwg.mxu0
      %v605 = vadd.f32 %v408, %v538
      %v606 = vadd.f32 %v410, %v540
      %v607 = vadd.f32 %v461, %v591
      %v608 = vadd.f32 %v412, %v542
      %v609 = vadd.f32 %v414, %v544
      %v610 = vadd.f32 %v464, %v594
      %v611 = vadd.f32 %v418, %v548
      %v612 = vadd.f32 %v420, %v550
      %v613 = vadd.f32 %v469, %v599
      %v614 = vadd.f32 %v422, %v552
      %v615 = vadd.f32 %v424, %v554
      %v616 = vadd.f32 %v472, %v602
      %v621 = vunpack.c.l.b16 %v186
      %v622 = vunpack.c.l.b16 %v187
      %v623 = vunpack.c.l.b16 %v188
      %v624 = vunpack.c.l.b16 %v189
      %v625 = vpack.c.b16 %v622, %v621
      %v626 = vpack.c.b16 %v624, %v623
      %627 = vrot.lane.b32.xlu0 %v230, 110
      %v628 = vpop.permute.xlu0 %627
      %629 = vrot.lane.b32.xlu0 %v231, 110
      %v630 = vpop.permute.xlu0 %629
      %631 = vrot.lane.b32.xlu0 %v232, 110
      %v632 = vpop.permute.xlu0 %631
      %vm633 = vcmask 900096
      %v634 = vsel %vm633, %v628, %v630
      %v635 = vsel %vm633, %v630, %v632
      %v640 = vsel %vm245, %v625, 0
      %v643 = vsel %vm245, %v626, 0
      %645 = vmatprep.subr.bf16.mxu0 %v635
      %646 = vmatpush1.bf16.msra.mxu0 %v634
      %647 = vmatprep.subr.bf16.mxu0 0
      %648 = vmatpush1.bf16.msra.mxu0 0
      %649 = vmatprep.subr.bf16.mxu0 0
      %650 = vmatpush1.bf16.msra.mxu0 0
      %651 = vmatprep.subr.bf16.mxu0 0
      %652 = vmatpush1.bf16.msra.mxu0 0
      %653 = vmatprep.subr.bf16.mxu0 0
      %654 = vmatpush1.bf16.msra.mxu0 0
      %655 = vmatprep.subr.bf16.mxu0 0
      %656 = vmatpush1.bf16.msra.mxu0 0
      %657 = vmatprep.subr.bf16.mxu0 0
      %658 = vmatpush1.bf16.msra.mxu0 0
      %659 = vmatprep.subr.bf16.mxu0 0
      %660 = vmatpush1.bf16.msra.mxu0 0
      %661 = vmatprep.subr.bf16.mxu0 0
      %662 = vmatpush1.bf16.msra.mxu0 0
      %663 = vmatprep.subr.bf16.mxu0 0
      %664 = vmatpush1.bf16.msra.mxu0 0
      %665 = vmatprep.subr.bf16.mxu0 0
      %666 = vmatpush1.bf16.msra.mxu0 0
      %667 = vmatprep.subr.bf16.mxu0 0
      %668 = vmatpush1.bf16.msra.mxu0 0
      %669 = vmatprep.subr.bf16.mxu0 0
      %670 = vmatpush1.bf16.msra.mxu0 0
      %671 = vmatprep.subr.bf16.mxu0 0
      %672 = vmatpush1.bf16.msra.mxu0 0
      %673 = vmatprep.subr.bf16.mxu0 0
      %674 = vmatpush1.bf16.msra.mxu0 0
      %675 = vmatprep.subr.bf16.mxu0 0
      %676 = vmatpush1.bf16.msra.mxu0 0
      %677 = vmatprep.mubr.bf16.mxu0 0
      %678 = vmatmul.mubr.bf16.gmra.mrb[0].mxu0 %v640
      %v679 = vpop.f32.mrb[0].mxu0
      %v680 = vadd.f32 0.0, %v679
      %v681 = vpop.f32.mrb[0].mxu0
      %v682 = vadd.f32 0.0, %v681
      %v683 = vpop.f32.mrb[0].mxu0
      %v684 = vadd.f32 0.0, %v683
      %v685 = vpop.f32.mrb[0].mxu0
      %v686 = vadd.f32 0.0, %v685
      %687 = vmatprep.mubr.bf16.mxu0 0
      %688 = vmatmul.mubr.bf16.gmra.mrb[0].mxu0 %v643
      %v689 = vpop.f32.mrb[0].mxu0
      %v690 = vadd.f32 0.0, %v689
      %v691 = vpop.f32.mrb[0].mxu0
      %v692 = vadd.f32 0.0, %v691
      %v693 = vpop.f32.mrb[0].mxu0
      %v694 = vadd.f32 0.0, %v693
      %v695 = vpop.f32.mrb[0].mxu0
      %v696 = vadd.f32 0.0, %v695
      %697 = vdwg.mxu0
      %698 = vmatprep.subr.bf16.mxu0 0
      %699 = vmatpush1.bf16.msra.mxu0 %v632
      %700 = vmatprep.subr.bf16.mxu0 0
      %701 = vmatpush1.bf16.msra.mxu0 0
      %702 = vmatprep.subr.bf16.mxu0 0
      %703 = vmatpush1.bf16.msra.mxu0 0
      %704 = vmatprep.subr.bf16.mxu0 0
      %705 = vmatpush1.bf16.msra.mxu0 0
      %706 = vmatprep.subr.bf16.mxu0 0
      %707 = vmatpush1.bf16.msra.mxu0 0
      %708 = vmatprep.subr.bf16.mxu0 0
      %709 = vmatpush1.bf16.msra.mxu0 0
      %710 = vmatprep.subr.bf16.mxu0 0
      %711 = vmatpush1.bf16.msra.mxu0 0
      %712 = vmatprep.subr.bf16.mxu0 0
      %713 = vmatpush1.bf16.msra.mxu0 0
      %714 = vmatprep.subr.bf16.mxu0 0
      %715 = vmatpush1.bf16.msra.mxu0 0
      %716 = vmatprep.subr.bf16.mxu0 0
      %717 = vmatpush1.bf16.msra.mxu0 0
      %718 = vmatprep.subr.bf16.mxu0 0
      %719 = vmatpush1.bf16.msra.mxu0 0
      %720 = vmatprep.subr.bf16.mxu0 0
      %721 = vmatpush1.bf16.msra.mxu0 0
      %722 = vmatprep.subr.bf16.mxu0 0
      %723 = vmatpush1.bf16.msra.mxu0 0
      %724 = vmatprep.subr.bf16.mxu0 0
      %725 = vmatpush1.bf16.msra.mxu0 0
      %726 = vmatprep.subr.bf16.mxu0 0
      %727 = vmatpush1.bf16.msra.mxu0 0
      %728 = vmatprep.subr.bf16.mxu0 0
      %729 = vmatpush1.bf16.msra.mxu0 0
      %730 = vmatprep.mubr.bf16.mxu0 0
      %731 = vmatmul.mubr.bf16.gmra.mrb[0].mxu0 %v640
      %v732 = vpop.f32.mrb[0].mxu0
      %v733 = vadd.f32 0.0, %v732
      %v734 = vpop.f32.mrb[0].mxu0
      %v735 = vpop.f32.mrb[0].mxu0
      %v736 = vadd.f32 0.0, %v735
      %v737 = vpop.f32.mrb[0].mxu0
      %738 = vmatprep.mubr.bf16.mxu0 0
      %739 = vmatmul.mubr.bf16.gmra.mrb[0].mxu0 %v643
      %v740 = vpop.f32.mrb[0].mxu0
      %v741 = vadd.f32 0.0, %v740
      %v742 = vpop.f32.mrb[0].mxu0
      %v743 = vpop.f32.mrb[0].mxu0
      %v744 = vadd.f32 0.0, %v743
      %v745 = vpop.f32.mrb[0].mxu0
      %746 = vdwg.mxu0
      %v747 = vadd.f32 %v605, %v680
      %v748 = vadd.f32 %v606, %v682
      %v749 = vadd.f32 %v607, %v733
      %v750 = vadd.f32 %v608, %v684
      %v751 = vadd.f32 %v609, %v686
      %v752 = vadd.f32 %v610, %v736
      %v753 = vadd.f32 %v611, %v690
      %v754 = vadd.f32 %v612, %v692
      %v755 = vadd.f32 %v613, %v741
      %v756 = vadd.f32 %v614, %v694
      %v757 = vadd.f32 %v615, %v696
      %v758 = vadd.f32 %v616, %v744
      %v763 = vunpack.c.l.b16 %v190
      %v764 = vunpack.c.l.b16 %v191
      %v765 = vunpack.c.l.b16 %v192
      %v766 = vunpack.c.l.b16 %v193
      %v767 = vpack.c.b16 %v764, %v763
      %v768 = vpack.c.b16 %v766, %v765
      %769 = vrot.lane.b32.xlu0 %v230, 109
      %v770 = vpop.permute.xlu0 %769
      %771 = vrot.lane.b32.xlu0 %v231, 109
      %v772 = vpop.permute.xlu0 %771
      %773 = vrot.lane.b32.xlu0 %v232, 109
      %v774 = vpop.permute.xlu0 %773
      %vm775 = vcmask 891904
      %v776 = vsel %vm775, %v770, %v772
      %v777 = vsel %vm775, %v772, %v774
      %v782 = vsel %vm245, %v767, 0
      %v785 = vsel %vm245, %v768, 0
      %787 = vmatprep.subr.bf16.mxu0 %v777
      %788 = vmatpush1.bf16.msra.mxu0 %v776
      %789 = vmatprep.subr.bf16.mxu0 0
      %790 = vmatpush1.bf16.msra.mxu0 0
      %791 = vmatprep.subr.bf16.mxu0 0
      %792 = vmatpush1.bf16.msra.mxu0 0
      %793 = vmatprep.subr.bf16.mxu0 0
      %794 = vmatpush1.bf16.msra.mxu0 0
      %795 = vmatprep.subr.bf16.mxu0 0
      %796 = vmatpush1.bf16.msra.mxu0 0
      %797 = vmatprep.subr.bf16.mxu0 0
      %798 = vmatpush1.bf16.msra.mxu0 0
      %799 = vmatprep.subr.bf16.mxu0 0
      %800 = vmatpush1.bf16.msra.mxu0 0
      %801 = vmatprep.subr.bf16.mxu0 0
      %802 = vmatpush1.bf16.msra.mxu0 0
      %803 = vmatprep.subr.bf16.mxu0 0
      %804 = vmatpush1.bf16.msra.mxu0 0
      %805 = vmatprep.subr.bf16.mxu0 0
      %806 = vmatpush1.bf16.msra.mxu0 0
      %807 = vmatprep.subr.bf16.mxu0 0
      %808 = vmatpush1.bf16.msra.mxu0 0
      %809 = vmatprep.subr.bf16.mxu0 0
      %810 = vmatpush1.bf16.msra.mxu0 0
      %811 = vmatprep.subr.bf16.mxu0 0
      %812 = vmatpush1.bf16.msra.mxu0 0
      %813 = vmatprep.subr.bf16.mxu0 0
      %814 = vmatpush1.bf16.msra.mxu0 0
      %815 = vmatprep.subr.bf16.mxu0 0
      %816 = vmatpush1.bf16.msra.mxu0 0
      %817 = vmatprep.subr.bf16.mxu0 0
      %818 = vmatpush1.bf16.msra.mxu0 0
      %819 = vmatprep.mubr.bf16.mxu0 0
      %820 = vmatmul.mubr.bf16.gmra.mrb[0].mxu0 %v782
      %v821 = vpop.f32.mrb[0].mxu0
      %v822 = vadd.f32 0.0, %v821
      %v823 = vpop.f32.mrb[0].mxu0
      %v824 = vadd.f32 0.0, %v823
      %v825 = vpop.f32.mrb[0].mxu0
      %v826 = vadd.f32 0.0, %v825
      %v827 = vpop.f32.mrb[0].mxu0
      %v828 = vadd.f32 0.0, %v827
      %829 = vmatprep.mubr.bf16.mxu0 0
      %830 = vmatmul.mubr.bf16.gmra.mrb[0].mxu0 %v785
      %v831 = vpop.f32.mrb[0].mxu0
      %v832 = vadd.f32 0.0, %v831
      %v833 = vpop.f32.mrb[0].mxu0
      %v834 = vadd.f32 0.0, %v833
      %v835 = vpop.f32.mrb[0].mxu0
      %v836 = vadd.f32 0.0, %v835
      %v837 = vpop.f32.mrb[0].mxu0
      %v838 = vadd.f32 0.0, %v837
      %839 = vdwg.mxu0
      %840 = vmatprep.subr.bf16.mxu0 0
      %841 = vmatpush1.bf16.msra.mxu0 %v774
      %842 = vmatprep.subr.bf16.mxu0 0
      %843 = vmatpush1.bf16.msra.mxu0 0
      %844 = vmatprep.subr.bf16.mxu0 0
      %845 = vmatpush1.bf16.msra.mxu0 0
      %846 = vmatprep.subr.bf16.mxu0 0
      %847 = vmatpush1.bf16.msra.mxu0 0
      %848 = vmatprep.subr.bf16.mxu0 0
      %849 = vmatpush1.bf16.msra.mxu0 0
      %850 = vmatprep.subr.bf16.mxu0 0
      %851 = vmatpush1.bf16.msra.mxu0 0
      %852 = vmatprep.subr.bf16.mxu0 0
      %853 = vmatpush1.bf16.msra.mxu0 0
      %854 = vmatprep.subr.bf16.mxu0 0
      %855 = vmatpush1.bf16.msra.mxu0 0
      %856 = vmatprep.subr.bf16.mxu0 0
      %857 = vmatpush1.bf16.msra.mxu0 0
      %858 = vmatprep.subr.bf16.mxu0 0
      %859 = vmatpush1.bf16.msra.mxu0 0
      %860 = vmatprep.subr.bf16.mxu0 0
      %861 = vmatpush1.bf16.msra.mxu0 0
      %862 = vmatprep.subr.bf16.mxu0 0
      %863 = vmatpush1.bf16.msra.mxu0 0
      %864 = vmatprep.subr.bf16.mxu0 0
      %865 = vmatpush1.bf16.msra.mxu0 0
      %866 = vmatprep.subr.bf16.mxu0 0
      %867 = vmatpush1.bf16.msra.mxu0 0
      %868 = vmatprep.subr.bf16.mxu0 0
      %869 = vmatpush1.bf16.msra.mxu0 0
      %870 = vmatprep.subr.bf16.mxu0 0
      %871 = vmatpush1.bf16.msra.mxu0 0
      %872 = vmatprep.mubr.bf16.mxu0 0
      %873 = vmatmul.mubr.bf16.gmra.mrb[0].mxu0 %v782
      %v874 = vpop.f32.mrb[0].mxu0
      %v875 = vadd.f32 0.0, %v874
      %v876 = vpop.f32.mrb[0].mxu0
      %v877 = vpop.f32.mrb[0].mxu0
      %v878 = vadd.f32 0.0, %v877
      %v879 = vpop.f32.mrb[0].mxu0
      %880 = vmatprep.mubr.bf16.mxu0 0
      %881 = vmatmul.mubr.bf16.gmra.mrb[0].mxu0 %v785
      %v882 = vpop.f32.mrb[0].mxu0
      %v883 = vadd.f32 0.0, %v882
      %v884 = vpop.f32.mrb[0].mxu0
      %v885 = vpop.f32.mrb[0].mxu0
      %v886 = vadd.f32 0.0, %v885
      %v887 = vpop.f32.mrb[0].mxu0
      %888 = vdwg.mxu0
      %v889 = vadd.f32 %v747, %v822
      %v890 = vadd.f32 %v748, %v824
      %v891 = vadd.f32 %v749, %v875
      %v892 = vadd.f32 %v750, %v826
      %v893 = vadd.f32 %v751, %v828
      %v894 = vadd.f32 %v752, %v878
      %v895 = vadd.f32 %v753, %v832
      %v896 = vadd.f32 %v754, %v834
      %v897 = vadd.f32 %v755, %v883
      %v898 = vadd.f32 %v756, %v836
      %v899 = vadd.f32 %v757, %v838
      %v900 = vadd.f32 %v758, %v886
      %v905 = vunpack.c.l.b16 %v194
      %v906 = vunpack.c.l.b16 %v195
      %v907 = vunpack.c.l.b16 %v196
      %v908 = vunpack.c.l.b16 %v197
      %v909 = vpack.c.b16 %v906, %v905
      %v910 = vpack.c.b16 %v908, %v907
      %911 = vrot.lane.b32.xlu0 %v230, 108
      %v912 = vpop.permute.xlu0 %911
      %913 = vrot.lane.b32.xlu0 %v231, 108
      %v914 = vpop.permute.xlu0 %913
      %915 = vrot.lane.b32.xlu0 %v232, 108
      %v916 = vpop.permute.xlu0 %915
      %vm917 = vcmask 883712
      %v918 = vsel %vm917, %v912, %v914
      %v919 = vsel %vm917, %v914, %v916
      %v924 = vsel %vm245, %v909, 0
      %v927 = vsel %vm245, %v910, 0
      %929 = vmatprep.subr.bf16.mxu0 %v919
      %930 = vmatpush1.bf16.msra.mxu0 %v918
      %931 = vmatprep.subr.bf16.mxu0 0
      %932 = vmatpush1.bf16.msra.mxu0 0
      %933 = vmatprep.subr.bf16.mxu0 0
      %934 = vmatpush1.bf16.msra.mxu0 0
      %935 = vmatprep.subr.bf16.mxu0 0
      %936 = vmatpush1.bf16.msra.mxu0 0
      %937 = vmatprep.subr.bf16.mxu0 0
      %938 = vmatpush1.bf16.msra.mxu0 0
      %939 = vmatprep.subr.bf16.mxu0 0
      %940 = vmatpush1.bf16.msra.mxu0 0
      %941 = vmatprep.subr.bf16.mxu0 0
      %942 = vmatpush1.bf16.msra.mxu0 0
      %943 = vmatprep.subr.bf16.mxu0 0
      %944 = vmatpush1.bf16.msra.mxu0 0
      %945 = vmatprep.subr.bf16.mxu0 0
      %946 = vmatpush1.bf16.msra.mxu0 0
      %947 = vmatprep.subr.bf16.mxu0 0
      %948 = vmatpush1.bf16.msra.mxu0 0
      %949 = vmatprep.subr.bf16.mxu0 0
      %950 = vmatpush1.bf16.msra.mxu0 0
      %951 = vmatprep.subr.bf16.mxu0 0
      %952 = vmatpush1.bf16.msra.mxu0 0
      %953 = vmatprep.subr.bf16.mxu0 0
      %954 = vmatpush1.bf16.msra.mxu0 0
      %955 = vmatprep.subr.bf16.mxu0 0
      %956 = vmatpush1.bf16.msra.mxu0 0
      %957 = vmatprep.subr.bf16.mxu0 0
      %958 = vmatpush1.bf16.msra.mxu0 0
      %959 = vmatprep.subr.bf16.mxu0 0
      %960 = vmatpush1.bf16.msra.mxu0 0
      %961 = vmatprep.mubr.bf16.mxu0 0
      %962 = vmatmul.mubr.bf16.gmra.mrb[0].mxu0 %v924
      %v963 = vpop.f32.mrb[0].mxu0
      %v964 = vadd.f32 0.0, %v963
      %v965 = vpop.f32.mrb[0].mxu0
      %v966 = vadd.f32 0.0, %v965
      %v967 = vpop.f32.mrb[0].mxu0
      %v968 = vadd.f32 0.0, %v967
      %v969 = vpop.f32.mrb[0].mxu0
      %v970 = vadd.f32 0.0, %v969
      %971 = vmatprep.mubr.bf16.mxu0 0
      %972 = vmatmul.mubr.bf16.gmra.mrb[0].mxu0 %v927
      %v973 = vpop.f32.mrb[0].mxu0
      %v974 = vadd.f32 0.0, %v973
      %v975 = vpop.f32.mrb[0].mxu0
      %v976 = vadd.f32 0.0, %v975
      %v977 = vpop.f32.mrb[0].mxu0
      %v978 = vadd.f32 0.0, %v977
      %v979 = vpop.f32.mrb[0].mxu0
      %v980 = vadd.f32 0.0, %v979
      %981 = vdwg.mxu0
      %982 = vmatprep.subr.bf16.mxu0 0
      %983 = vmatpush1.bf16.msra.mxu0 %v916
      %984 = vmatprep.subr.bf16.mxu0 0
      %985 = vmatpush1.bf16.msra.mxu0 0
      %986 = vmatprep.subr.bf16.mxu0 0
      %987 = vmatpush1.bf16.msra.mxu0 0
      %988 = vmatprep.subr.bf16.mxu0 0
      %989 = vmatpush1.bf16.msra.mxu0 0
      %990 = vmatprep.subr.bf16.mxu0 0
      %991 = vmatpush1.bf16.msra.mxu0 0
      %992 = vmatprep.subr.bf16.mxu0 0
      %993 = vmatpush1.bf16.msra.mxu0 0
      %994 = vmatprep.subr.bf16.mxu0 0
      %995 = vmatpush1.bf16.msra.mxu0 0
      %996 = vmatprep.subr.bf16.mxu0 0
      %997 = vmatpush1.bf16.msra.mxu0 0
      %998 = vmatprep.subr.bf16.mxu0 0
      %999 = vmatpush1.bf16.msra.mxu0 0
      %1000 = vmatprep.subr.bf16.mxu0 0
      %1001 = vmatpush1.bf16.msra.mxu0 0
      %1002 = vmatprep.subr.bf16.mxu0 0
      %1003 = vmatpush1.bf16.msra.mxu0 0
      %1004 = vmatprep.subr.bf16.mxu0 0
      %1005 = vmatpush1.bf16.msra.mxu0 0
      %1006 = vmatprep.subr.bf16.mxu0 0
      %1007 = vmatpush1.bf16.msra.mxu0 0
      %1008 = vmatprep.subr.bf16.mxu0 0
      %1009 = vmatpush1.bf16.msra.mxu0 0
      %1010 = vmatprep.subr.bf16.mxu0 0
      %1011 = vmatpush1.bf16.msra.mxu0 0
      %1012 = vmatprep.subr.bf16.mxu0 0
      %1013 = vmatpush1.bf16.msra.mxu0 0
      %1014 = vmatprep.mubr.bf16.mxu0 0
      %1015 = vmatmul.mubr.bf16.gmra.mrb[0].mxu0 %v924
      %v1016 = vpop.f32.mrb[0].mxu0
      %v1017 = vadd.f32 0.0, %v1016
      %v1018 = vpop.f32.mrb[0].mxu0
      %v1019 = vpop.f32.mrb[0].mxu0
      %v1020 = vadd.f32 0.0, %v1019
      %v1021 = vpop.f32.mrb[0].mxu0
      %1022 = vmatprep.mubr.bf16.mxu0 0
      %1023 = vmatmul.mubr.bf16.gmra.mrb[0].mxu0 %v927
      %v1024 = vpop.f32.mrb[0].mxu0
      %v1025 = vadd.f32 0.0, %v1024
      %v1026 = vpop.f32.mrb[0].mxu0
      %v1027 = vpop.f32.mrb[0].mxu0
      %v1028 = vadd.f32 0.0, %v1027
      %v1029 = vpop.f32.mrb[0].mxu0
      %1030 = vdwg.mxu0
      %v1031 = vadd.f32 %v889, %v964
      %v1032 = vadd.f32 %v890, %v966
      %v1033 = vadd.f32 %v891, %v1017
      %v1034 = vadd.f32 %v892, %v968
      %v1035 = vadd.f32 %v893, %v970
      %v1036 = vadd.f32 %v894, %v1020
      %v1037 = vadd.f32 %v895, %v974
      %v1038 = vadd.f32 %v896, %v976
      %v1039 = vadd.f32 %v897, %v1025
      %v1040 = vadd.f32 %v898, %v978
      %v1041 = vadd.f32 %v899, %v980
      %v1042 = vadd.f32 %v900, %v1028
      %v1047 = vunpack.c.l.b16 %v198
      %v1048 = vunpack.c.l.b16 %v199
      %v1049 = vunpack.c.l.b16 %v200
      %v1050 = vunpack.c.l.b16 %v201
      %v1051 = vpack.c.b16 %v1048, %v1047
      %v1052 = vpack.c.b16 %v1050, %v1049
      %1053 = vrot.lane.b32.xlu0 %v230, 92
      %v1054 = vpop.permute.xlu0 %1053
      %1055 = vrot.lane.b32.xlu0 %v231, 92
      %v1056 = vpop.permute.xlu0 %1055
      %1057 = vrot.lane.b32.xlu0 %v232, 92
      %v1058 = vpop.permute.xlu0 %1057
      %vm1059 = vcmask 752640
      %v1060 = vsel %vm1059, %v1054, %v1056
      %v1061 = vsel %vm1059, %v1056, %v1058
      %v1066 = vsel %vm245, %v1051, 0
      %v1069 = vsel %vm245, %v1052, 0
      %1071 = vmatprep.subr.bf16.mxu0 %v1061
      %1072 = vmatpush1.bf16.msra.mxu0 %v1060
      %1073 = vmatprep.subr.bf16.mxu0 0
      %1074 = vmatpush1.bf16.msra.mxu0 0
      %1075 = vmatprep.subr.bf16.mxu0 0
      %1076 = vmatpush1.bf16.msra.mxu0 0
      %1077 = vmatprep.subr.bf16.mxu0 0
      %1078 = vmatpush1.bf16.msra.mxu0 0
      %1079 = vmatprep.subr.bf16.mxu0 0
      %1080 = vmatpush1.bf16.msra.mxu0 0
      %1081 = vmatprep.subr.bf16.mxu0 0
      %1082 = vmatpush1.bf16.msra.mxu0 0
      %1083 = vmatprep.subr.bf16.mxu0 0
      %1084 = vmatpush1.bf16.msra.mxu0 0
      %1085 = vmatprep.subr.bf16.mxu0 0
      %1086 = vmatpush1.bf16.msra.mxu0 0
      %1087 = vmatprep.subr.bf16.mxu0 0
      %1088 = vmatpush1.bf16.msra.mxu0 0
      %1089 = vmatprep.subr.bf16.mxu0 0
      %1090 = vmatpush1.bf16.msra.mxu0 0
      %1091 = vmatprep.subr.bf16.mxu0 0
      %1092 = vmatpush1.bf16.msra.mxu0 0
      %1093 = vmatprep.subr.bf16.mxu0 0
      %1094 = vmatpush1.bf16.msra.mxu0 0
      %1095 = vmatprep.subr.bf16.mxu0 0
      %1096 = vmatpush1.bf16.msra.mxu0 0
      %1097 = vmatprep.subr.bf16.mxu0 0
      %1098 = vmatpush1.bf16.msra.mxu0 0
      %1099 = vmatprep.subr.bf16.mxu0 0
      %1100 = vmatpush1.bf16.msra.mxu0 0
      %1101 = vmatprep.subr.bf16.mxu0 0
      %1102 = vmatpush1.bf16.msra.mxu0 0
      %1103 = vmatprep.mubr.bf16.mxu0 0
      %1104 = vmatmul.mubr.bf16.gmra.mrb[0].mxu0 %v1066
      %v1105 = vpop.f32.mrb[0].mxu0
      %v1106 = vadd.f32 0.0, %v1105
      %v1107 = vpop.f32.mrb[0].mxu0
      %v1108 = vadd.f32 0.0, %v1107
      %v1109 = vpop.f32.mrb[0].mxu0
      %v1110 = vadd.f32 0.0, %v1109
      %v1111 = vpop.f32.mrb[0].mxu0
      %v1112 = vadd.f32 0.0, %v1111
      %1113 = vmatprep.mubr.bf16.mxu0 0
      %1114 = vmatmul.mubr.bf16.gmra.mrb[0].mxu0 %v1069
      %v1115 = vpop.f32.mrb[0].mxu0
      %v1116 = vadd.f32 0.0, %v1115
      %v1117 = vpop.f32.mrb[0].mxu0
      %v1118 = vadd.f32 0.0, %v1117
      %v1119 = vpop.f32.mrb[0].mxu0
      %v1120 = vadd.f32 0.0, %v1119
      %v1121 = vpop.f32.mrb[0].mxu0
      %v1122 = vadd.f32 0.0, %v1121
      %1123 = vdwg.mxu0
      %1124 = vmatprep.subr.bf16.mxu0 0
      %1125 = vmatpush1.bf16.msra.mxu0 %v1058
      %1126 = vmatprep.subr.bf16.mxu0 0
      %1127 = vmatpush1.bf16.msra.mxu0 0
      %1128 = vmatprep.subr.bf16.mxu0 0
      %1129 = vmatpush1.bf16.msra.mxu0 0
      %1130 = vmatprep.subr.bf16.mxu0 0
      %1131 = vmatpush1.bf16.msra.mxu0 0
      %1132 = vmatprep.subr.bf16.mxu0 0
      %1133 = vmatpush1.bf16.msra.mxu0 0
      %1134 = vmatprep.subr.bf16.mxu0 0
      %1135 = vmatpush1.bf16.msra.mxu0 0
      %1136 = vmatprep.subr.bf16.mxu0 0
      %1137 = vmatpush1.bf16.msra.mxu0 0
      %1138 = vmatprep.subr.bf16.mxu0 0
      %1139 = vmatpush1.bf16.msra.mxu0 0
      %1140 = vmatprep.subr.bf16.mxu0 0
      %1141 = vmatpush1.bf16.msra.mxu0 0
      %1142 = vmatprep.subr.bf16.mxu0 0
      %1143 = vmatpush1.bf16.msra.mxu0 0
      %1144 = vmatprep.subr.bf16.mxu0 0
      %1145 = vmatpush1.bf16.msra.mxu0 0
      %1146 = vmatprep.subr.bf16.mxu0 0
      %1147 = vmatpush1.bf16.msra.mxu0 0
      %1148 = vmatprep.subr.bf16.mxu0 0
      %1149 = vmatpush1.bf16.msra.mxu0 0
      %1150 = vmatprep.subr.bf16.mxu0 0
      %1151 = vmatpush1.bf16.msra.mxu0 0
      %1152 = vmatprep.subr.bf16.mxu0 0
      %1153 = vmatpush1.bf16.msra.mxu0 0
      %1154 = vmatprep.subr.bf16.mxu0 0
      %1155 = vmatpush1.bf16.msra.mxu0 0
      %1156 = vmatprep.mubr.bf16.mxu0 0
      %1157 = vmatmul.mubr.bf16.gmra.mrb[0].mxu0 %v1066
      %v1158 = vpop.f32.mrb[0].mxu0
      %v1159 = vadd.f32 0.0, %v1158
      %v1160 = vpop.f32.mrb[0].mxu0
      %v1161 = vpop.f32.mrb[0].mxu0
      %v1162 = vadd.f32 0.0, %v1161
      %v1163 = vpop.f32.mrb[0].mxu0
      %1164 = vmatprep.mubr.bf16.mxu0 0
      %1165 = vmatmul.mubr.bf16.gmra.mrb[0].mxu0 %v1069
      %v1166 = vpop.f32.mrb[0].mxu0
      %v1167 = vadd.f32 0.0, %v1166
      %v1168 = vpop.f32.mrb[0].mxu0
      %v1169 = vpop.f32.mrb[0].mxu0
      %v1170 = vadd.f32 0.0, %v1169
      %v1171 = vpop.f32.mrb[0].mxu0
      %1172 = vdwg.mxu0
      %v1173 = vadd.f32 %v1031, %v1106
      %v1174 = vadd.f32 %v1032, %v1108
      %v1175 = vadd.f32 %v1033, %v1159
      %v1176 = vadd.f32 %v1034, %v1110
      %v1177 = vadd.f32 %v1035, %v1112
      %v1178 = vadd.f32 %v1036, %v1162
      %v1179 = vadd.f32 %v1037, %v1116
      %v1180 = vadd.f32 %v1038, %v1118
      %v1181 = vadd.f32 %v1039, %v1167
      %v1182 = vadd.f32 %v1040, %v1120
      %v1183 = vadd.f32 %v1041, %v1122
      %v1184 = vadd.f32 %v1042, %v1170
      %v1189 = vunpack.c.l.b16 %v202
      %v1190 = vunpack.c.l.b16 %v203
      %v1191 = vunpack.c.l.b16 %v204
      %v1192 = vunpack.c.l.b16 %v205
      %v1193 = vpack.c.b16 %v1190, %v1189
      %v1194 = vpack.c.b16 %v1192, %v1191
      %1195 = vrot.lane.b32.xlu0 %v230, 91
      %v1196 = vpop.permute.xlu0 %1195
      %1197 = vrot.lane.b32.xlu0 %v231, 91
      %v1198 = vpop.permute.xlu0 %1197
      %1199 = vrot.lane.b32.xlu0 %v232, 91
      %v1200 = vpop.permute.xlu0 %1199
      %vm1201 = vcmask 744448
      %v1202 = vsel %vm1201, %v1196, %v1198
      %v1203 = vsel %vm1201, %v1198, %v1200
      %v1208 = vsel %vm245, %v1193, 0
      %v1211 = vsel %vm245, %v1194, 0
      %1213 = vmatprep.subr.bf16.mxu0 %v1203
      %1214 = vmatpush1.bf16.msra.mxu0 %v1202
      %1215 = vmatprep.subr.bf16.mxu0 0
      %1216 = vmatpush1.bf16.msra.mxu0 0
      %1217 = vmatprep.subr.bf16.mxu0 0
      %1218 = vmatpush1.bf16.msra.mxu0 0
      %1219 = vmatprep.subr.bf16.mxu0 0
      %1220 = vmatpush1.bf16.msra.mxu0 0
      %1221 = vmatprep.subr.bf16.mxu0 0
      %1222 = vmatpush1.bf16.msra.mxu0 0
      %1223 = vmatprep.subr.bf16.mxu0 0
      %1224 = vmatpush1.bf16.msra.mxu0 0
      %1225 = vmatprep.subr.bf16.mxu0 0
      %1226 = vmatpush1.bf16.msra.mxu0 0
      %1227 = vmatprep.subr.bf16.mxu0 0
      %1228 = vmatpush1.bf16.msra.mxu0 0
      %1229 = vmatprep.subr.bf16.mxu0 0
      %1230 = vmatpush1.bf16.msra.mxu0 0
      %1231 = vmatprep.subr.bf16.mxu0 0
      %1232 = vmatpush1.bf16.msra.mxu0 0
      %1233 = vmatprep.subr.bf16.mxu0 0
      %1234 = vmatpush1.bf16.msra.mxu0 0
      %1235 = vmatprep.subr.bf16.mxu0 0
      %1236 = vmatpush1.bf16.msra.mxu0 0
      %1237 = vmatprep.subr.bf16.mxu0 0
      %1238 = vmatpush1.bf16.msra.mxu0 0
      %1239 = vmatprep.subr.bf16.mxu0 0
      %1240 = vmatpush1.bf16.msra.mxu0 0
      %1241 = vmatprep.subr.bf16.mxu0 0
      %1242 = vmatpush1.bf16.msra.mxu0 0
      %1243 = vmatprep.subr.bf16.mxu0 0
      %1244 = vmatpush1.bf16.msra.mxu0 0
      %1245 = vmatprep.mubr.bf16.mxu0 0
      %1246 = vmatmul.mubr.bf16.gmra.mrb[0].mxu0 %v1208
      %v1247 = vpop.f32.mrb[0].mxu0
      %v1248 = vadd.f32 0.0, %v1247
      %v1249 = vpop.f32.mrb[0].mxu0
      %v1250 = vadd.f32 0.0, %v1249
      %v1251 = vpop.f32.mrb[0].mxu0
      %v1252 = vadd.f32 0.0, %v1251
      %v1253 = vpop.f32.mrb[0].mxu0
      %v1254 = vadd.f32 0.0, %v1253
      %1255 = vmatprep.mubr.bf16.mxu0 0
      %1256 = vmatmul.mubr.bf16.gmra.mrb[0].mxu0 %v1211
      %v1257 = vpop.f32.mrb[0].mxu0
      %v1258 = vadd.f32 0.0, %v1257
      %v1259 = vpop.f32.mrb[0].mxu0
      %v1260 = vadd.f32 0.0, %v1259
      %v1261 = vpop.f32.mrb[0].mxu0
      %v1262 = vadd.f32 0.0, %v1261
      %v1263 = vpop.f32.mrb[0].mxu0
      %v1264 = vadd.f32 0.0, %v1263
      %1265 = vdwg.mxu0
      %1266 = vmatprep.subr.bf16.mxu0 0
      %1267 = vmatpush1.bf16.msra.mxu0 %v1200
      %1268 = vmatprep.subr.bf16.mxu0 0
      %1269 = vmatpush1.bf16.msra.mxu0 0
      %1270 = vmatprep.subr.bf16.mxu0 0
      %1271 = vmatpush1.bf16.msra.mxu0 0
      %1272 = vmatprep.subr.bf16.mxu0 0
      %1273 = vmatpush1.bf16.msra.mxu0 0
      %1274 = vmatprep.subr.bf16.mxu0 0
      %1275 = vmatpush1.bf16.msra.mxu0 0
      %1276 = vmatprep.subr.bf16.mxu0 0
      %1277 = vmatpush1.bf16.msra.mxu0 0
      %1278 = vmatprep.subr.bf16.mxu0 0
      %1279 = vmatpush1.bf16.msra.mxu0 0
      %1280 = vmatprep.subr.bf16.mxu0 0
      %1281 = vmatpush1.bf16.msra.mxu0 0
      %1282 = vmatprep.subr.bf16.mxu0 0
      %1283 = vmatpush1.bf16.msra.mxu0 0
      %1284 = vmatprep.subr.bf16.mxu0 0
      %1285 = vmatpush1.bf16.msra.mxu0 0
      %1286 = vmatprep.subr.bf16.mxu0 0
      %1287 = vmatpush1.bf16.msra.mxu0 0
      %1288 = vmatprep.subr.bf16.mxu0 0
      %1289 = vmatpush1.bf16.msra.mxu0 0
      %1290 = vmatprep.subr.bf16.mxu0 0
      %1291 = vmatpush1.bf16.msra.mxu0 0
      %1292 = vmatprep.subr.bf16.mxu0 0
      %1293 = vmatpush1.bf16.msra.mxu0 0
      %1294 = vmatprep.subr.bf16.mxu0 0
      %1295 = vmatpush1.bf16.msra.mxu0 0
      %1296 = vmatprep.subr.bf16.mxu0 0
      %1297 = vmatpush1.bf16.msra.mxu0 0
      %1298 = vmatprep.mubr.bf16.mxu0 0
      %1299 = vmatmul.mubr.bf16.gmra.mrb[0].mxu0 %v1208
      %v1300 = vpop.f32.mrb[0].mxu0
      %v1301 = vadd.f32 0.0, %v1300
      %v1302 = vpop.f32.mrb[0].mxu0
      %v1303 = vpop.f32.mrb[0].mxu0
      %v1304 = vadd.f32 0.0, %v1303
      %v1305 = vpop.f32.mrb[0].mxu0
      %1306 = vmatprep.mubr.bf16.mxu0 0
      %1307 = vmatmul.mubr.bf16.gmra.mrb[0].mxu0 %v1211
      %v1308 = vpop.f32.mrb[0].mxu0
      %v1309 = vadd.f32 0.0, %v1308
      %v1310 = vpop.f32.mrb[0].mxu0
      %v1311 = vpop.f32.mrb[0].mxu0
      %v1312 = vadd.f32 0.0, %v1311
      %v1313 = vpop.f32.mrb[0].mxu0
      %1314 = vdwg.mxu0
      %v1315 = vadd.f32 %v1173, %v1248
      %v1316 = vadd.f32 %v1174, %v1250
      %v1317 = vadd.f32 %v1175, %v1301
      %v1318 = vadd.f32 %v1176, %v1252
      %v1319 = vadd.f32 %v1177, %v1254
      %v1320 = vadd.f32 %v1178, %v1304
      %v1321 = vadd.f32 %v1179, %v1258
      %v1322 = vadd.f32 %v1180, %v1260
      %v1323 = vadd.f32 %v1181, %v1309
      %v1324 = vadd.f32 %v1182, %v1262
      %v1325 = vadd.f32 %v1183, %v1264
      %v1326 = vadd.f32 %v1184, %v1312
      %v1331 = vunpack.c.l.b16 %v206
      %v1332 = vunpack.c.l.b16 %v207
      %v1333 = vunpack.c.l.b16 %v208
      %v1334 = vunpack.c.l.b16 %v209
      %v1335 = vpack.c.b16 %v1332, %v1331
      %v1336 = vpack.c.b16 %v1334, %v1333
      %1337 = vrot.lane.b32.xlu0 %v230, 90
      %v1338 = vpop.permute.xlu0 %1337
      %1339 = vrot.lane.b32.xlu0 %v231, 90
      %v1340 = vpop.permute.xlu0 %1339
      %1341 = vrot.lane.b32.xlu0 %v232, 90
      %v1342 = vpop.permute.xlu0 %1341
      %vm1343 = vcmask 736256
      %v1344 = vsel %vm1343, %v1338, %v1340
      %v1345 = vsel %vm1343, %v1340, %v1342
      %v1350 = vsel %vm245, %v1335, 0
      %v1353 = vsel %vm245, %v1336, 0
      %1355 = vmatprep.subr.bf16.mxu0 %v1345
      %1356 = vmatpush1.bf16.msra.mxu0 %v1344
      %1357 = vmatprep.subr.bf16.mxu0 0
      %1358 = vmatpush1.bf16.msra.mxu0 0
      %1359 = vmatprep.subr.bf16.mxu0 0
      %1360 = vmatpush1.bf16.msra.mxu0 0
      %1361 = vmatprep.subr.bf16.mxu0 0
      %1362 = vmatpush1.bf16.msra.mxu0 0
      %1363 = vmatprep.subr.bf16.mxu0 0
      %1364 = vmatpush1.bf16.msra.mxu0 0
      %1365 = vmatprep.subr.bf16.mxu0 0
      %1366 = vmatpush1.bf16.msra.mxu0 0
      %1367 = vmatprep.subr.bf16.mxu0 0
      %1368 = vmatpush1.bf16.msra.mxu0 0
      %1369 = vmatprep.subr.bf16.mxu0 0
      %1370 = vmatpush1.bf16.msra.mxu0 0
      %1371 = vmatprep.subr.bf16.mxu0 0
      %1372 = vmatpush1.bf16.msra.mxu0 0
      %1373 = vmatprep.subr.bf16.mxu0 0
      %1374 = vmatpush1.bf16.msra.mxu0 0
      %1375 = vmatprep.subr.bf16.mxu0 0
      %1376 = vmatpush1.bf16.msra.mxu0 0
      %1377 = vmatprep.subr.bf16.mxu0 0
      %1378 = vmatpush1.bf16.msra.mxu0 0
      %1379 = vmatprep.subr.bf16.mxu0 0
      %1380 = vmatpush1.bf16.msra.mxu0 0
      %1381 = vmatprep.subr.bf16.mxu0 0
      %1382 = vmatpush1.bf16.msra.mxu0 0
      %1383 = vmatprep.subr.bf16.mxu0 0
      %1384 = vmatpush1.bf16.msra.mxu0 0
      %1385 = vmatprep.subr.bf16.mxu0 0
      %1386 = vmatpush1.bf16.msra.mxu0 0
      %1387 = vmatprep.mubr.bf16.mxu0 0
      %1388 = vmatmul.mubr.bf16.gmra.mrb[0].mxu0 %v1350
      %v1389 = vpop.f32.mrb[0].mxu0
      %v1390 = vadd.f32 0.0, %v1389
      %v1391 = vpop.f32.mrb[0].mxu0
      %v1392 = vadd.f32 0.0, %v1391
      %v1393 = vpop.f32.mrb[0].mxu0
      %v1394 = vadd.f32 0.0, %v1393
      %v1395 = vpop.f32.mrb[0].mxu0
      %v1396 = vadd.f32 0.0, %v1395
      %1397 = vmatprep.mubr.bf16.mxu0 0
      %1398 = vmatmul.mubr.bf16.gmra.mrb[0].mxu0 %v1353
      %v1399 = vpop.f32.mrb[0].mxu0
      %v1400 = vadd.f32 0.0, %v1399
      %v1401 = vpop.f32.mrb[0].mxu0
      %v1402 = vadd.f32 0.0, %v1401
      %v1403 = vpop.f32.mrb[0].mxu0
      %v1404 = vadd.f32 0.0, %v1403
      %v1405 = vpop.f32.mrb[0].mxu0
      %v1406 = vadd.f32 0.0, %v1405
      %1407 = vdwg.mxu0
      %1408 = vmatprep.subr.bf16.mxu0 0
      %1409 = vmatpush1.bf16.msra.mxu0 %v1342
      %1410 = vmatprep.subr.bf16.mxu0 0
      %1411 = vmatpush1.bf16.msra.mxu0 0
      %1412 = vmatprep.subr.bf16.mxu0 0
      %1413 = vmatpush1.bf16.msra.mxu0 0
      %1414 = vmatprep.subr.bf16.mxu0 0
      %1415 = vmatpush1.bf16.msra.mxu0 0
      %1416 = vmatprep.subr.bf16.mxu0 0
      %1417 = vmatpush1.bf16.msra.mxu0 0
      %1418 = vmatprep.subr.bf16.mxu0 0
      %1419 = vmatpush1.bf16.msra.mxu0 0
      %1420 = vmatprep.subr.bf16.mxu0 0
      %1421 = vmatpush1.bf16.msra.mxu0 0
      %1422 = vmatprep.subr.bf16.mxu0 0
      %1423 = vmatpush1.bf16.msra.mxu0 0
      %1424 = vmatprep.subr.bf16.mxu0 0
      %1425 = vmatpush1.bf16.msra.mxu0 0
      %1426 = vmatprep.subr.bf16.mxu0 0
      %1427 = vmatpush1.bf16.msra.mxu0 0
      %1428 = vmatprep.subr.bf16.mxu0 0
      %1429 = vmatpush1.bf16.msra.mxu0 0
      %1430 = vmatprep.subr.bf16.mxu0 0
      %1431 = vmatpush1.bf16.msra.mxu0 0
      %1432 = vmatprep.subr.bf16.mxu0 0
      %1433 = vmatpush1.bf16.msra.mxu0 0
      %1434 = vmatprep.subr.bf16.mxu0 0
      %1435 = vmatpush1.bf16.msra.mxu0 0
      %1436 = vmatprep.subr.bf16.mxu0 0
      %1437 = vmatpush1.bf16.msra.mxu0 0
      %1438 = vmatprep.subr.bf16.mxu0 0
      %1439 = vmatpush1.bf16.msra.mxu0 0
      %1440 = vmatprep.mubr.bf16.mxu0 0
      %1441 = vmatmul.mubr.bf16.gmra.mrb[0].mxu0 %v1350
      %v1442 = vpop.f32.mrb[0].mxu0
      %v1443 = vadd.f32 0.0, %v1442
      %v1444 = vpop.f32.mrb[0].mxu0
      %v1445 = vpop.f32.mrb[0].mxu0
      %v1446 = vadd.f32 0.0, %v1445
      %v1447 = vpop.f32.mrb[0].mxu0
      %1448 = vmatprep.mubr.bf16.mxu0 0
      %1449 = vmatmul.mubr.bf16.gmra.mrb[0].mxu0 %v1353
      %v1450 = vpop.f32.mrb[0].mxu0
      %v1451 = vadd.f32 0.0, %v1450
      %v1452 = vpop.f32.mrb[0].mxu0
      %v1453 = vpop.f32.mrb[0].mxu0
      %v1454 = vadd.f32 0.0, %v1453
      %v1455 = vpop.f32.mrb[0].mxu0
      %1456 = vdwg.mxu0
      %v1457 = vadd.f32 %v1315, %v1390
      %v1458 = vadd.f32 %v1316, %v1392
      %v1459 = vadd.f32 %v1317, %v1443
      %v1460 = vadd.f32 %v1318, %v1394
      %v1461 = vadd.f32 %v1319, %v1396
      %v1462 = vadd.f32 %v1320, %v1446
      %v1463 = vadd.f32 %v1321, %v1400
      %v1464 = vadd.f32 %v1322, %v1402
      %v1465 = vadd.f32 %v1323, %v1451
      %v1466 = vadd.f32 %v1324, %v1404
      %v1467 = vadd.f32 %v1325, %v1406
      %v1468 = vadd.f32 %v1326, %v1454
      %1469 = vst [vmem:[%s168] sm:$0xff] %v1457
      %1470 = vst [vmem:[%s168 + $0x8] sm:$0xff] %v1458
      %vm1471 = vcmask 261120
      %1472 = vst.msk [vmem:[%s168 + $0x10] sm:$0xff] %vm1471, %v1459
      %1473 = vst [vmem:[%s168 + $0x18] sm:$0xff] %v1460
      %1474 = vst [vmem:[%s168 + $0x20] sm:$0xff] %v1461
      %1475 = vst.msk [vmem:[%s168 + $0x28] sm:$0xff] %vm1471, %v1462
      %1476 = vst [vmem:[%s168 + $0x30] sm:$0xff] %v1463
      %1477 = vst [vmem:[%s168 + $0x38] sm:$0xff] %v1464
      %1478 = vst.msk [vmem:[%s168 + $0x40] sm:$0xff] %vm1471, %v1465
      %1479 = vst [vmem:[%s168 + $0x48] sm:$0xff] %v1466
      %1480 = vst [vmem:[%s168 + $0x50] sm:$0xff] %v1467
      %1481 = vst.msk [vmem:[%s168 + $0x58] sm:$0xff] %vm1471, %v1468
      %v1482 = vlaneseq
      %v1483 = vand.u32 %v1482, 127
      %v1484 = vadd.s32 %v1483, 128
      %v1485 = vadd.s32 %v1483, 256
      %vm1486 = vcmp.lt.s32.totalorder %v1483, 0
      %v1487 = vsub.s32 0, %v1483
      %v1488 = vsel %vm1486, %v1487, %v1483
      %v1489 = vmul.u32.u64.compose %v1488, 3817748708
      %v1490 = vextract.low.u32 %v1489
      %v1491 = vextract.high.u32 %v1489
      %v1492 = vshrl.u32 %v1491, 4
      %v1493 = vmul.u32 %v1492, 18
      %v1494 = vsub.s32 %v1488, %v1493
      %v1495 = vsub.s32 0, %v1494
      %v1496 = vsel %vm1486, %v1495, %v1494
      %vm1497 = vcmp.lt.s32.totalorder %v1484, 0
      %v1498 = vsub.s32 0, %v1484
      %v1499 = vsel %vm1497, %v1498, %v1484
      %v1500 = vmul.u32.u64.compose %v1499, 3817748708
      %v1501 = vextract.low.u32 %v1500
      %v1502 = vextract.high.u32 %v1500
      %v1503 = vshrl.u32 %v1502, 4
      %v1504 = vmul.u32 %v1503, 18
      %v1505 = vsub.s32 %v1499, %v1504
      %v1506 = vsub.s32 0, %v1505
      %v1507 = vsel %vm1497, %v1506, %v1505
      %vm1508 = vcmp.lt.s32.totalorder %v1485, 0
      %v1509 = vsub.s32 0, %v1485
      %v1510 = vsel %vm1508, %v1509, %v1485
      %v1511 = vmul.u32.u64.compose %v1510, 3817748708
      %v1512 = vextract.low.u32 %v1511
      %v1513 = vextract.high.u32 %v1511
      %v1514 = vshrl.u32 %v1513, 4
      %v1515 = vmul.u32 %v1514, 18
      %v1516 = vsub.s32 %v1510, %v1515
      %v1517 = vsub.s32 0, %v1516
      %v1518 = vsel %vm1508, %v1517, %v1516
      %vm1519 = vcmp.ne.s32.totalorder %v1496, 0
      %vm1520 = vcmp.ne.s32.totalorder %v1507, 0
      %vm1521 = vcmp.ne.s32.totalorder %v1518, 0
      %vm1522 = vcmp.lt.s32.totalorder %v1496, 0
      %vm1523 = vcmp.lt.s32.totalorder %v1507, 0
      %vm1524 = vcmp.lt.s32.totalorder %v1518, 0
      %vm1525 = vmand %vm1522, %vm1519
      %vm1526 = vmand %vm1523, %vm1520
      %vm1527 = vmand %vm1524, %vm1521
      %v1528 = vadd.s32 %v1496, 18
      %v1529 = vadd.s32 %v1507, 18
      %v1530 = vadd.s32 %v1518, 18
      %v1531 = vsel %vm1525, %v1528, %v1496
      %v1532 = vsel %vm1526, %v1529, %v1507
      %v1533 = vsel %vm1527, %v1530, %v1518
      %vm1534 = vcmp.lt.s32.totalorder %v1531, 16
      %vm1535 = vcmp.lt.s32.totalorder %v1532, 16
      %vm1536 = vcmp.lt.s32.totalorder %v1533, 16
      %v1537 = vsel %vm1534, %v1457, 0.0
      %v1538 = vsel %vm1535, %v1458, 0.0
      %v1539 = vsel %vm1536, %v1459, 0.0
      %v1540 = vsel %vm1534, %v1460, 0.0
      %v1541 = vsel %vm1535, %v1461, 0.0
      %v1542 = vsel %vm1536, %v1462, 0.0
      %v1543 = vsel %vm1534, %v1463, 0.0
      %v1544 = vsel %vm1535, %v1464, 0.0
      %v1545 = vsel %vm1536, %v1465, 0.0
      %v1546 = vsel %vm1534, %v1466, 0.0
      %v1547 = vsel %vm1535, %v1467, 0.0
      %v1548 = vsel %vm1536, %v1468, 0.0
      %v1549 = vadd.f32 %v1537, %v1538
      %v1550 = vsel %vm1471, %v1539, 0.0
      %v1551 = vadd.f32 %v1549, %v1550
      %1552 = vadd.xlane.f32.xlu0 %v1551
      %v1553 = vpop.xlane.xlu0 %1552
      %v1554 = vadd.f32 %v1540, %v1541
      %v1555 = vsel %vm1471, %v1542, 0.0
      %v1556 = vadd.f32 %v1554, %v1555
      %1557 = vadd.xlane.f32.xlu0 %v1556
      %v1558 = vpop.xlane.xlu0 %1557
      %v1559 = vadd.f32 %v1543, %v1544
      %v1560 = vsel %vm1471, %v1545, 0.0
      %v1561 = vadd.f32 %v1559, %v1560
      %1562 = vadd.xlane.f32.xlu0 %v1561
      %v1563 = vpop.xlane.xlu0 %1562
      %v1564 = vadd.f32 %v1546, %v1547
      %v1565 = vsel %vm1471, %v1548, 0.0
      %v1566 = vadd.f32 %v1564, %v1565
      %1567 = vadd.xlane.f32.xlu0 %v1566
      %v1568 = vpop.xlane.xlu0 %1567
      %v1569 = vmul.f32 %v1537, %v1537
      %v1570 = vmul.f32 %v1538, %v1538
      %v1571 = vmul.f32 %v1539, %v1539
      %v1572 = vmul.f32 %v1540, %v1540
      %v1573 = vmul.f32 %v1541, %v1541
      %v1574 = vmul.f32 %v1542, %v1542
      %v1575 = vmul.f32 %v1543, %v1543
      %v1576 = vmul.f32 %v1544, %v1544
      %v1577 = vmul.f32 %v1545, %v1545
      %v1578 = vmul.f32 %v1546, %v1546
      %v1579 = vmul.f32 %v1547, %v1547
      %v1580 = vmul.f32 %v1548, %v1548
      %v1581 = vadd.f32 %v1569, %v1570
      %v1582 = vsel %vm1471, %v1571, 0.0
      %v1583 = vadd.f32 %v1581, %v1582
      %1584 = vadd.xlane.f32.xlu0 %v1583
      %v1585 = vpop.xlane.xlu0 %1584
      %v1586 = vadd.f32 %v1572, %v1573
      %v1587 = vsel %vm1471, %v1574, 0.0
      %v1588 = vadd.f32 %v1586, %v1587
      %1589 = vadd.xlane.f32.xlu0 %v1588
      %v1590 = vpop.xlane.xlu0 %1589
      %v1591 = vadd.f32 %v1575, %v1576
      %v1592 = vsel %vm1471, %v1577, 0.0
      %v1593 = vadd.f32 %v1591, %v1592
      %1594 = vadd.xlane.f32.xlu0 %v1593
      %v1595 = vpop.xlane.xlu0 %1594
      %v1596 = vadd.f32 %v1578, %v1579
      %v1597 = vsel %vm1471, %v1580, 0.0
      %v1598 = vadd.f32 %v1596, %v1597
      %1599 = vadd.xlane.f32.xlu0 %v1598
      %v1600 = vpop.xlane.xlu0 %1599
      %vm1601 = vcmask 7168
      %v1602 = vsel %vm1601, %v1553, %v1585
      %v1603 = vsel %vm1601, %v1558, %v1590
      %v1604 = vsel %vm1601, %v1563, %v1595
      %v1605 = vsel %vm1601, %v1568, %v1600
      %p1606 = scmp.eq.s32.totalorder %s15, 0
      // Predicated region
      $region29: #{down_forward.3} parent=27 // pred_check
        %p1607 = pneg %p1606
      $region30: #{down_forward.3} parent=27 // pred_check_branch
        %1609 = sbr.rel (%p1607) target = $region32
      $region31: #{down_forward.3} parent=27 // pred_region
        %vm1610 = vcmask 15360
        %1611 = vst.msk [vmem:[%s3] sm:$0xff] %vm1610, 0.0
        %1612 = vst.msk [vmem:[%s3 + $0x8] sm:$0xff] %vm1610, 0.0
        %1613 = vst.msk [vmem:[%s3 + $0x10] sm:$0xff] %vm1610, 0.0
        %1614 = vst.msk [vmem:[%s3 + $0x18] sm:$0xff] %vm1610, 0.0
      $region32: #{down_forward.3} parent=27 // pred_fallthru
        _
      %v1615 = vld [vmem:[%s3] sm:$0xff]
      %v1616 = vld [vmem:[%s3 + $0x8] sm:$0xff]
      %v1617 = vld [vmem:[%s3 + $0x10] sm:$0xff]
      %v1618 = vld [vmem:[%s3 + $0x18] sm:$0xff]
      %v1619 = vadd.f32 %v1615, %v1602
      %v1620 = vadd.f32 %v1616, %v1603
      %v1621 = vadd.f32 %v1617, %v1604
      %v1622 = vadd.f32 %v1618, %v1605
      %vm1623 = vcmask 15360
      %1624 = vst.msk [vmem:[%s3] sm:$0xff] %vm1623, %v1619
      %1625 = vst.msk [vmem:[%s3 + $0x8] sm:$0xff] %vm1623, %v1620
      %1626 = vst.msk [vmem:[%s3 + $0x10] sm:$0xff] %vm1623, %v1621
      %1627 = vst.msk [vmem:[%s3 + $0x18] sm:$0xff] %vm1623, %v1622
      %p1628 = scmp.lt.s32.totalorder %s15, 1
      %s1629 = scalar_select %p1628, %s15, 1
      %s1630 = smul.addr %s1629, 12
      %s1631 = smul.addr %s1630, 8
      %s1632 = scalar_lea.vmem %s2, %s1631
      // Predicated region
      $region33: #{down_forward.3} parent=27 // pred_check
        %p1633 = pneg %p80
      $region34: #{down_forward.3} parent=27 // pred_check_branch
        %1635 = sbr.rel (%p1633) target = $region36
      $region35: #{down_forward.3} parent=27 // pred_region
        _
      $region36: #{down_forward.3} parent=27 // pred_fallthru
        _
      // Predicated region
      $region37: #{down_forward.3} parent=27 // pred_check
        %p1636 = pneg %p101
      $region38: #{down_forward.3} parent=27 // pred_check_branch
        %1638 = sbr.rel (%p1636) target = $region40
      $region39: #{down_forward.3} parent=27 // pred_region
        _
      $region40: #{down_forward.3} parent=27 // pred_fallthru
        _
      // Predicated region
      $region41: #{down_forward.3} parent=27 // pred_check
        %p1639 = pneg %p101
      $region42: #{down_forward.3} parent=27 // pred_check_branch
        %1641 = sbr.rel (%p1639) target = $region44
      $region43: #{down_forward.3} parent=27 // pred_region
        _
      $region44: #{down_forward.3} parent=27 // pred_fallthru
        _
    $region28: #{down_forward.3} parent=5 // pred_fallthru
      _
    %p1642 = scmp.le.s32.totalorder 2, %s10
    // Predicated region
    $region45: #{down_forward.3} parent=5 // pred_check
      %p1643 = pneg %p1642
    $region46: #{down_forward.3} parent=5 // pred_check_branch
      %1645 = sbr.rel (%p1643) target = $region48
    $region47: #{down_forward.3} parent=5 // pred_region
      %s1646 = ssub.s32 %s10, 2
      // Predicated region
      $region49: #{down_forward.3} parent=47 // pred_check
        %p1647 = pneg %p86
      $region50: #{down_forward.3} parent=47 // pred_check_branch
        %1649 = sbr.rel (%p1647) target = $region52
      $region51: #{down_forward.3} parent=47 // pred_region
        %p1650 = scmp.lt.s32.totalorder %s16, 1
        %s1651 = scalar_select %p1650, %s16, 1
        %s1652 = smul.addr %s1651, 12
        %s1653 = smul.addr %s1652, 8
        %s1654 = scalar_lea.vmem %s2, %s1653
      $region52: #{down_forward.3} parent=47 // pred_fallthru
        _
    $region48: #{down_forward.3} parent=5 // pred_fallthru
      _
  $region6: #{down_forward.3} parent=0 // loop_footer
    %s14 = sadd.s32 1, %s10
  $region7: #{down_forward.3} parent=0 // loop_footer_branch
    %9 = sbr.rel target = $region3
  $region8: #{down_forward.3} parent=0 // loop_exit
    _

// kernel: down_forward.4
$region0: #{down_forward.4}
  #allocation0 [shape = 'u32[]', space=smem, size = 0x4, offset = 0x4, fixed_abs, tag = 'smem constant byte address 0x4 - core index']
  #allocation1 [shape = 'u32[144,128]{1,0:T(1,128)}', space=vmem, size = 0x12000, scoped, tag = 'internal scratch']
  %s0 = inlined_call_operand.vmem [shape: f32[2,32,288], index: 0, kind: input, shape index: {}]
  %s1 = inlined_call_operand.vmem [shape: f32[32,1], index: 1, kind: input, shape index: {}]
  %s2 = inlined_call_operand.vmem [shape: f32[32,1], index: 2, kind: input, shape index: {}]
  %s3 = inlined_call_operand.vmem [shape: bf16[9,32,32], index: 3, kind: input, shape index: {}]
  %s4 = inlined_call_operand.vmem [shape: f32[2,32,288], index: 4, kind: output, shape index: {0}]
  %s5 = inlined_call_operand.vmem [shape: f32[32,2], index: 5, kind: output, shape index: {1}]
  %6 = xla_tuple %s4, %s5
  %s7 = sld [smem:[#allocation0]]
  $region61: #{down_forward.4} parent=0
    _
  %s9 = ssub.s32 1, %s7
  %s10 = scalar_select 0, %s9, %s7
  loop: start=0, step=1, limit=4
  $region2: #{down_forward.4} parent=0 // loop_pre_header
    _
  $region3: #{down_forward.4} parent=0 // loop_header
    %s12 = sphi 0, %s16
    %p13 = scmp.ge.s32.totalorder %s12, 4
    %s22 = sphi 0, %s24
    %s25 = sphi 0, %s22
    %s26 = sphi 0, %s25
    %s42 = sphi 0, %s26
    %s46 = sphi 0, %s46
    %s48 = sphi 0, %s46
    %s49 = sphi 0, %s48
    %s63 = sphi 0, %s49
    %s67 = sphi 0, %s67
    %s69 = sphi 0, %s67
    %s70 = sphi 0, %s69
    %s84 = sphi 0, %s70
    %s88 = sphi 0, %s88
    %s90 = sphi 0, %s88
    %s91 = sphi 0, %s90
    %s105 = sphi 0, %s91
    %s111 = sphi 0, %s113
    %s114 = sphi 0, %s111
    %s115 = sphi 0, %s114
    %s131 = sphi 0, %s115
    %s135 = sphi 0, %s135
    %s137 = sphi 0, %s135
    %s138 = sphi 0, %s137
    %s152 = sphi 0, %s138
  $region4: #{down_forward.4} parent=0 // loop_header_branch
    %15 = sbr.rel (%p13) target = $region8
  $region5: #{down_forward.4} parent=0 // loop_body
    %s17 = ssub.s32 %s12, 1
    %s18 = ssub.s32 %s12, 2
    %s19 = sadd.s32 %s12, 1
    %s20 = ssub.s32 %s12, %s19
    %p21 = scmp.eq.s32.totalorder %s20, 0
    %s23 = sadd.s32 %s22, 1
    %s24 = scalar_select %p21, %s22, %s23
    %p27 = pneg %p21
    %p28 = scmp.eq.s32.totalorder %s12, 1
    %p29 = por %p27, %p28
    %p30 = scmp.ne.s32.totalorder %s22, %s25
    %p31 = scmp.eq.s32.totalorder %s12, 0
    %p32 = por %p30, %p31
    %p33 = scmp.ne.s32.totalorder %s22, %s25
    %p34 = scmp.eq.s32.totalorder %s17, 1
    %p35 = por %p33, %p34
    %p36 = scmp.ne.s32.totalorder %s25, %s26
    %p37 = scmp.eq.s32.totalorder %s17, 0
    %p38 = por %p36, %p37
    %p39 = scmp.ne.s32.totalorder %s25, %s26
    %p40 = scmp.eq.s32.totalorder %s18, 1
    %p41 = por %p39, %p40
    %p43 = scmp.ne.s32.totalorder %s26, %s42
    %p44 = scmp.eq.s32.totalorder %s18, 0
    %p45 = por %p43, %p44
    %s47 = sadd.s32 %s46, 1
    %p50 = scmp.eq.s32.totalorder %s12, 1
    %p51 = scmp.ne.s32.totalorder %s46, %s48
    %p52 = scmp.eq.s32.totalorder %s12, 0
    %p53 = por %p51, %p52
    %p54 = scmp.ne.s32.totalorder %s46, %s48
    %p55 = scmp.eq.s32.totalorder %s17, 1
    %p56 = por %p54, %p55
    %p57 = scmp.ne.s32.totalorder %s48, %s49
    %p58 = scmp.eq.s32.totalorder %s17, 0
    %p59 = por %p57, %p58
    %p60 = scmp.ne.s32.totalorder %s48, %s49
    %p61 = scmp.eq.s32.totalorder %s18, 1
    %p62 = por %p60, %p61
    %p64 = scmp.ne.s32.totalorder %s49, %s63
    %p65 = scmp.eq.s32.totalorder %s18, 0
    %p66 = por %p64, %p65
    %s68 = sadd.s32 %s67, 1
    %p71 = scmp.eq.s32.totalorder %s12, 1
    %p72 = scmp.ne.s32.totalorder %s67, %s69
    %p73 = scmp.eq.s32.totalorder %s12, 0
    %p74 = por %p72, %p73
    %p75 = scmp.ne.s32.totalorder %s67, %s69
    %p76 = scmp.eq.s32.totalorder %s17, 1
    %p77 = por %p75, %p76
    %p78 = scmp.ne.s32.totalorder %s69, %s70
    %p79 = scmp.eq.s32.totalorder %s17, 0
    %p80 = por %p78, %p79
    %p81 = scmp.ne.s32.totalorder %s69, %s70
    %p82 = scmp.eq.s32.totalorder %s18, 1
    %p83 = por %p81, %p82
    %p85 = scmp.ne.s32.totalorder %s70, %s84
    %p86 = scmp.eq.s32.totalorder %s18, 0
    %p87 = por %p85, %p86
    %s89 = sadd.s32 %s88, 1
    %p92 = scmp.eq.s32.totalorder %s12, 1
    %p93 = scmp.ne.s32.totalorder %s88, %s90
    %p94 = scmp.eq.s32.totalorder %s12, 0
    %p95 = por %p93, %p94
    %p96 = scmp.ne.s32.totalorder %s88, %s90
    %p97 = scmp.eq.s32.totalorder %s17, 1
    %p98 = por %p96, %p97
    %p99 = scmp.ne.s32.totalorder %s90, %s91
    %p100 = scmp.eq.s32.totalorder %s17, 0
    %p101 = por %p99, %p100
    %p102 = scmp.ne.s32.totalorder %s90, %s91
    %p103 = scmp.eq.s32.totalorder %s18, 1
    %p104 = por %p102, %p103
    %p106 = scmp.ne.s32.totalorder %s91, %s105
    %p107 = scmp.eq.s32.totalorder %s18, 0
    %p108 = por %p106, %p107
    %s109 = ssub.s32 %s12, %s19
    %p110 = scmp.eq.s32.totalorder %s109, 0
    %s112 = sadd.s32 %s111, 1
    %s113 = scalar_select %p110, %s111, %s112
    %p116 = pneg %p110
    %p117 = scmp.eq.s32.totalorder %s12, 1
    %p118 = por %p116, %p117
    %p119 = scmp.ne.s32.totalorder %s111, %s114
    %p120 = scmp.eq.s32.totalorder %s12, 0
    %p121 = por %p119, %p120
    %p122 = scmp.ne.s32.totalorder %s111, %s114
    %p123 = scmp.eq.s32.totalorder %s17, 1
    %p124 = por %p122, %p123
    %p125 = scmp.ne.s32.totalorder %s114, %s115
    %p126 = scmp.eq.s32.totalorder %s17, 0
    %p127 = por %p125, %p126
    %p128 = scmp.ne.s32.totalorder %s114, %s115
    %p129 = scmp.eq.s32.totalorder %s18, 1
    %p130 = por %p128, %p129
    %p132 = scmp.ne.s32.totalorder %s115, %s131
    %p133 = scmp.eq.s32.totalorder %s18, 0
    %p134 = por %p132, %p133
    %s136 = sadd.s32 %s135, 1
    %p139 = scmp.eq.s32.totalorder %s12, 1
    %p140 = scmp.ne.s32.totalorder %s135, %s137
    %p141 = scmp.eq.s32.totalorder %s12, 0
    %p142 = por %p140, %p141
    %p143 = scmp.ne.s32.totalorder %s135, %s137
    %p144 = scmp.eq.s32.totalorder %s17, 1
    %p145 = por %p143, %p144
    %p146 = scmp.ne.s32.totalorder %s137, %s138
    %p147 = scmp.eq.s32.totalorder %s17, 0
    %p148 = por %p146, %p147
    %p149 = scmp.ne.s32.totalorder %s137, %s138
    %p150 = scmp.eq.s32.totalorder %s18, 1
    %p151 = por %p149, %p150
    %p153 = scmp.ne.s32.totalorder %s138, %s152
    %p154 = scmp.eq.s32.totalorder %s18, 0
    %p155 = por %p153, %p154
    %p156 = scmp.le.s32.totalorder 1, %s12
    %p157 = scmp.lt.s32.totalorder %s12, 3
    %p158 = pnand %p156, %p157
    %p159 = pneg %p158
    // Predicated region
    $region9: #{down_forward.4} parent=5 // pred_check
      _
    $region10: #{down_forward.4} parent=5 // pred_check_branch
      %161 = sbr.rel (%p158) target = $region12
    $region11: #{down_forward.4} parent=5 // pred_region
      %s162 = ssub.s32 %s12, 1
      // Predicated region
      $region13: #{down_forward.4} parent=11 // pred_check
        %p163 = pneg %p59
      $region14: #{down_forward.4} parent=11 // pred_check_branch
        %165 = sbr.rel (%p163) target = $region16
      $region15: #{down_forward.4} parent=11 // pred_region
        _
      $region16: #{down_forward.4} parent=11 // pred_fallthru
        _
      // Predicated region
      $region17: #{down_forward.4} parent=11 // pred_check
        %p166 = pneg %p80
      $region18: #{down_forward.4} parent=11 // pred_check_branch
        %168 = sbr.rel (%p166) target = $region20
      $region19: #{down_forward.4} parent=11 // pred_region
        _
      $region20: #{down_forward.4} parent=11 // pred_fallthru
        _
      // Predicated region
      $region21: #{down_forward.4} parent=11 // pred_check
        %p169 = pneg %p101
      $region22: #{down_forward.4} parent=11 // pred_check_branch
        %171 = sbr.rel (%p169) target = $region24
      $region23: #{down_forward.4} parent=11 // pred_region
        _
      $region24: #{down_forward.4} parent=11 // pred_fallthru
        _
    $region12: #{down_forward.4} parent=5 // pred_fallthru
      _
    %p172 = scmp.lt.s32.totalorder %s12, 2
    // Predicated region
    $region25: #{down_forward.4} parent=5 // pred_check
      %p173 = pneg %p172
    $region26: #{down_forward.4} parent=5 // pred_check_branch
      %175 = sbr.rel (%p173) target = $region28
    $region27: #{down_forward.4} parent=5 // pred_region
      // Predicated region
      $region29: #{down_forward.4} parent=27 // pred_check
        %p176 = pneg %p32
      $region30: #{down_forward.4} parent=27 // pred_check_branch
        %178 = sbr.rel (%p176) target = $region32
      $region31: #{down_forward.4} parent=27 // pred_region
        %p179 = scmp.lt.s32.totalorder %s12, 1
        %s180 = scalar_select %p179, %s12, 1
        %s181 = smul.addr %s180, 12
        %s182 = smul.addr %s181, 8
        %s183 = scalar_lea.vmem %s0, %s182
      $region32: #{down_forward.4} parent=27 // pred_fallthru
        _
    $region28: #{down_forward.4} parent=5 // pred_fallthru
      _
    %p184 = scmp.le.s32.totalorder 1, %s12
    %p185 = scmp.lt.s32.totalorder %s12, 3
    %p186 = pnand %p184, %p185
    %p187 = pneg %p186
    // Predicated region
    $region33: #{down_forward.4} parent=5 // pred_check
      _
    $region34: #{down_forward.4} parent=5 // pred_check_branch
      %189 = sbr.rel (%p186) target = $region36
    $region35: #{down_forward.4} parent=5 // pred_region
      %s190 = ssub.s32 %s12, 1
      %p191 = scmp.lt.s32.totalorder %s17, 1
      %s192 = scalar_select %p191, %s17, 1
      %s193 = smul.addr %s192, 12
      %s194 = smul.addr %s193, 8
      %s195 = scalar_lea.vmem %s0, %s194
      %p196 = pneg %p38
      %p197 = pneg %p35
      %p198 = pneg %p59
      %p199 = pneg %p56
      %p200 = pneg %p80
      %p201 = pneg %p77
      %p202 = pneg %p101
      %p203 = pneg %p98
      %p204 = pneg %p127
      %p205 = pneg %p124
      %p206 = scmp.lt.s32.totalorder %s17, 1
      %s207 = scalar_select %p206, %s17, 1
      %s208 = smul.addr %s207, 12
      %s209 = smul.addr %s208, 8
      %s210 = scalar_lea.vmem %s4, %s209
      %p211 = pneg %p148
      %p212 = pneg %p145
      %p213 = scmp.lt.s32.totalorder %s17, 1
      %s214 = scalar_select %p213, %s17, 1
      %s215 = smul.addr %s214, 12
      %s216 = smul.addr %s215, 8
      %s217 = scalar_lea.vmem %s0, %s216
      %p218 = scmp.lt.s32.totalorder %s17, 1
      %s219 = scalar_select %p218, %s17, 1
      %s220 = smul.addr %s219, 12
      %s221 = smul.addr %s220, 8
      %s222 = scalar_lea.vmem %s4, %s221
      %v224 = vld [vmem:[%s217] sm:$0xff]
      %v225 = vld [vmem:[%s217 + $0x8] sm:$0xff]
      %v226 = vld [vmem:[%s217 + $0x10] sm:$0xff]
      %v227 = vld [vmem:[%s217 + $0x18] sm:$0xff]
      %v228 = vld [vmem:[%s217 + $0x20] sm:$0xff]
      %v229 = vld [vmem:[%s217 + $0x28] sm:$0xff]
      %v230 = vld [vmem:[%s217 + $0x30] sm:$0xff]
      %v231 = vld [vmem:[%s217 + $0x38] sm:$0xff]
      %v232 = vld [vmem:[%s217 + $0x40] sm:$0xff]
      %v233 = vld [vmem:[%s217 + $0x48] sm:$0xff]
      %v234 = vld [vmem:[%s217 + $0x50] sm:$0xff]
      %v235 = vld [vmem:[%s217 + $0x58] sm:$0xff]
      %v236 = vld [vmem:[%s1] sm:$0xff]
      %v237 = vld [vmem:[%s1 + $0x8] sm:$0xff]
      %v238 = vld [vmem:[%s1 + $0x10] sm:$0xff]
      %v239 = vld [vmem:[%s1 + $0x18] sm:$0xff]
      %241 = vset.pattern.permute.xlu0 0
      %242 = vperm.xlu0 %241, %v236
      %v243 = vpop.permute.xlu0 %242
      %246 = vset.pattern.permute.xlu0 0
      %247 = vperm.xlu0 %246, %v237
      %v248 = vpop.permute.xlu0 %247
      %251 = vset.pattern.permute.xlu0 0
      %252 = vperm.xlu0 %251, %v238
      %v253 = vpop.permute.xlu0 %252
      %256 = vset.pattern.permute.xlu0 0
      %257 = vperm.xlu0 %256, %v239
      %v258 = vpop.permute.xlu0 %257
      %v260 = vmul.f32 %v224, %v243
      %v261 = vmul.f32 %v225, %v243
      %v262 = vmul.f32 %v226, %v243
      %v263 = vmul.f32 %v227, %v248
      %v264 = vmul.f32 %v228, %v248
      %v265 = vmul.f32 %v229, %v248
      %v266 = vmul.f32 %v230, %v253
      %v267 = vmul.f32 %v231, %v253
      %v268 = vmul.f32 %v232, %v253
      %v269 = vmul.f32 %v233, %v258
      %v270 = vmul.f32 %v234, %v258
      %v271 = vmul.f32 %v235, %v258
      %v272 = vld [vmem:[%s2] sm:$0xff]
      %v273 = vld [vmem:[%s2 + $0x8] sm:$0xff]
      %v274 = vld [vmem:[%s2 + $0x10] sm:$0xff]
      %v275 = vld [vmem:[%s2 + $0x18] sm:$0xff]
      %277 = vset.pattern.permute.xlu0 0
      %278 = vperm.xlu0 %277, %v272
      %v279 = vpop.permute.xlu0 %278
      %282 = vset.pattern.permute.xlu0 0
      %283 = vperm.xlu0 %282, %v273
      %v284 = vpop.permute.xlu0 %283
      %287 = vset.pattern.permute.xlu0 0
      %288 = vperm.xlu0 %287, %v274
      %v289 = vpop.permute.xlu0 %288
      %292 = vset.pattern.permute.xlu0 0
      %293 = vperm.xlu0 %292, %v275
      %v294 = vpop.permute.xlu0 %293
      %v296 = vadd.f32 %v260, %v279
      %v297 = vadd.f32 %v261, %v279
      %v298 = vadd.f32 %v262, %v279
      %v299 = vadd.f32 %v263, %v284
      %v300 = vadd.f32 %v264, %v284
      %v301 = vadd.f32 %v265, %v284
      %v302 = vadd.f32 %v266, %v289
      %v303 = vadd.f32 %v267, %v289
      %v304 = vadd.f32 %v268, %v289
      %v305 = vadd.f32 %v269, %v294
      %v306 = vadd.f32 %v270, %v294
      %v307 = vadd.f32 %v271, %v294
      %v308 = vmax.f32 %v296, 0.0
      %v309 = vmax.f32 %v297, 0.0
      %v310 = vmax.f32 %v298, 0.0
      %v311 = vmax.f32 %v299, 0.0
      %v312 = vmax.f32 %v300, 0.0
      %v313 = vmax.f32 %v301, 0.0
      %v314 = vmax.f32 %v302, 0.0
      %v315 = vmax.f32 %v303, 0.0
      %v316 = vmax.f32 %v304, 0.0
      %v317 = vmax.f32 %v305, 0.0
      %v318 = vmax.f32 %v306, 0.0
      %v319 = vmax.f32 %v307, 0.0
      %v320 = vlaneseq
      %v321 = vand.u32 %v320, 127
      %v322 = vadd.s32 %v321, 128
      %v323 = vadd.s32 %v321, 256
      %vm324 = vcmp.lt.s32.totalorder %v321, 0
      %v325 = vsub.s32 0, %v321
      %v326 = vsel %vm324, %v325, %v321
      %v327 = vmul.u32.u64.compose %v326, 3817748708
      %v328 = vextract.low.u32 %v327
      %v329 = vextract.high.u32 %v327
      %v330 = vshrl.u32 %v329, 4
      %v331 = vmul.u32 %v330, 18
      %v332 = vsub.s32 %v326, %v331
      %v333 = vsub.s32 0, %v332
      %v334 = vsel %vm324, %v333, %v332
      %vm335 = vcmp.lt.s32.totalorder %v322, 0
      %v336 = vsub.s32 0, %v322
      %v337 = vsel %vm335, %v336, %v322
      %v338 = vmul.u32.u64.compose %v337, 3817748708
      %v339 = vextract.low.u32 %v338
      %v340 = vextract.high.u32 %v338
      %v341 = vshrl.u32 %v340, 4
      %v342 = vmul.u32 %v341, 18
      %v343 = vsub.s32 %v337, %v342
      %v344 = vsub.s32 0, %v343
      %v345 = vsel %vm335, %v344, %v343
      %vm346 = vcmp.lt.s32.totalorder %v323, 0
      %v347 = vsub.s32 0, %v323
      %v348 = vsel %vm346, %v347, %v323
      %v349 = vmul.u32.u64.compose %v348, 3817748708
      %v350 = vextract.low.u32 %v349
      %v351 = vextract.high.u32 %v349
      %v352 = vshrl.u32 %v351, 4
      %v353 = vmul.u32 %v352, 18
      %v354 = vsub.s32 %v348, %v353
      %v355 = vsub.s32 0, %v354
      %v356 = vsel %vm346, %v355, %v354
      %vm357 = vcmp.ne.s32.totalorder %v334, 0
      %vm358 = vcmp.ne.s32.totalorder %v345, 0
      %vm359 = vcmp.ne.s32.totalorder %v356, 0
      %vm360 = vcmp.lt.s32.totalorder %v334, 0
      %vm361 = vcmp.lt.s32.totalorder %v345, 0
      %vm362 = vcmp.lt.s32.totalorder %v356, 0
      %vm363 = vmand %vm360, %vm357
      %vm364 = vmand %vm361, %vm358
      %vm365 = vmand %vm362, %vm359
      %v366 = vadd.s32 %v334, 18
      %v367 = vadd.s32 %v345, 18
      %v368 = vadd.s32 %v356, 18
      %v369 = vsel %vm363, %v366, %v334
      %v370 = vsel %vm364, %v367, %v345
      %v371 = vsel %vm365, %v368, %v356
      %vm372 = vcmp.lt.s32.totalorder %v369, 16
      %vm373 = vcmp.lt.s32.totalorder %v370, 16
      %vm374 = vcmp.lt.s32.totalorder %v371, 16
      %v375 = vsel %vm372, %v308, 0.0
      %v376 = vsel %vm373, %v309, 0.0
      %v377 = vsel %vm374, %v310, 0.0
      %v378 = vsel %vm372, %v311, 0.0
      %v379 = vsel %vm373, %v312, 0.0
      %v380 = vsel %vm374, %v313, 0.0
      %v381 = vsel %vm372, %v314, 0.0
      %v382 = vsel %vm373, %v315, 0.0
      %v383 = vsel %vm374, %v316, 0.0
      %v384 = vsel %vm372, %v317, 0.0
      %v385 = vsel %vm373, %v318, 0.0
      %v386 = vsel %vm374, %v319, 0.0
      %399 = vrot.lane.b32.xlu0 %v375, 19
      %v400 = vpop.permute.xlu0 %399
      %401 = vrot.lane.b32.xlu0 %v376, 19
      %v402 = vpop.permute.xlu0 %401
      %403 = vrot.lane.b32.xlu0 %v377, 19
      %v404 = vpop.permute.xlu0 %403
      %405 = vrot.lane.b32.xlu0 %v378, 19
      %v406 = vpop.permute.xlu0 %405
      %407 = vrot.lane.b32.xlu0 %v379, 19
      %v408 = vpop.permute.xlu0 %407
      %409 = vrot.lane.b32.xlu0 %v380, 19
      %v410 = vpop.permute.xlu0 %409
      %411 = vrot.lane.b32.xlu0 %v381, 19
      %v412 = vpop.permute.xlu0 %411
      %413 = vrot.lane.b32.xlu0 %v382, 19
      %v414 = vpop.permute.xlu0 %413
      %415 = vrot.lane.b32.xlu0 %v383, 19
      %v416 = vpop.permute.xlu0 %415
      %417 = vrot.lane.b32.xlu0 %v384, 19
      %v418 = vpop.permute.xlu0 %417
      %419 = vrot.lane.b32.xlu0 %v385, 19
      %v420 = vpop.permute.xlu0 %419
      %421 = vrot.lane.b32.xlu0 %v386, 19
      %v422 = vpop.permute.xlu0 %421
      %vm423 = vcmask 154624
      %v424 = vsel %vm423, %v400, %v402
      %v425 = vsel %vm423, %v402, %v404
      %v426 = vsel %vm423, %v406, %v408
      %v427 = vsel %vm423, %v408, %v410
      %v428 = vsel %vm423, %v412, %v414
      %v429 = vsel %vm423, %v414, %v416
      %v430 = vsel %vm423, %v418, %v420
      %v431 = vsel %vm423, %v420, %v422
      %v444 = vsel %vm423, 0.0, %v400
      %v445 = vsel %vm423, 0.0, %v406
      %v446 = vsel %vm423, 0.0, %v412
      %v447 = vsel %vm423, 0.0, %v418
      %vm448 = vcmask 408576
      %v449 = vsel %vm448, %v425, 0.0
      %v450 = vsel %vm448, %v427, 0.0
      %v451 = vsel %vm448, %v429, 0.0
      %v452 = vsel %vm448, %v431, 0.0
      %v453 = vpack.c.bf16 %v445, %v444
      %v454 = vpack.c.bf16 %v426, %v424
      %v455 = vpack.c.bf16 %v450, %v449
      %v456 = vpack.c.bf16 %v447, %v446
      %v457 = vpack.c.bf16 %v430, %v428
      %v458 = vpack.c.bf16 %v452, %v451
      %v459 = vld [vmem:[%s3] sm:$0xf]
      %v460 = vld [vmem:[%s3 + $0x4] sm:$0xf]
      %v461 = vld [vmem:[%s3 + $0x8] sm:$0xf]
      %v462 = vld [vmem:[%s3 + $0xc] sm:$0xf]
      %v463 = vld [vmem:[%s3 + $0x10] sm:$0xf]
      %v464 = vld [vmem:[%s3 + $0x14] sm:$0xf]
      %v465 = vld [vmem:[%s3 + $0x18] sm:$0xf]
      %v466 = vld [vmem:[%s3 + $0x1c] sm:$0xf]
      %v467 = vld [vmem:[%s3 + $0x20] sm:$0xf]
      %v468 = vld [vmem:[%s3 + $0x24] sm:$0xf]
      %v469 = vld [vmem:[%s3 + $0x28] sm:$0xf]
      %v470 = vld [vmem:[%s3 + $0x2c] sm:$0xf]
      %v471 = vld [vmem:[%s3 + $0x30] sm:$0xf]
      %v472 = vld [vmem:[%s3 + $0x34] sm:$0xf]
      %v473 = vld [vmem:[%s3 + $0x38] sm:$0xf]
      %v474 = vld [vmem:[%s3 + $0x3c] sm:$0xf]
      %v475 = vld [vmem:[%s3 + $0x40] sm:$0xf]
      %v476 = vld [vmem:[%s3 + $0x44] sm:$0xf]
      %v477 = vld [vmem:[%s3 + $0x48] sm:$0xf]
      %v478 = vld [vmem:[%s3 + $0x4c] sm:$0xf]
      %v479 = vld [vmem:[%s3 + $0x50] sm:$0xf]
      %v480 = vld [vmem:[%s3 + $0x54] sm:$0xf]
      %v481 = vld [vmem:[%s3 + $0x58] sm:$0xf]
      %v482 = vld [vmem:[%s3 + $0x5c] sm:$0xf]
      %v483 = vld [vmem:[%s3 + $0x60] sm:$0xf]
      %v484 = vld [vmem:[%s3 + $0x64] sm:$0xf]
      %v485 = vld [vmem:[%s3 + $0x68] sm:$0xf]
      %v486 = vld [vmem:[%s3 + $0x6c] sm:$0xf]
      %v487 = vld [vmem:[%s3 + $0x70] sm:$0xf]
      %v488 = vld [vmem:[%s3 + $0x74] sm:$0xf]
      %v489 = vld [vmem:[%s3 + $0x78] sm:$0xf]
      %v490 = vld [vmem:[%s3 + $0x7c] sm:$0xf]
      %v491 = vld [vmem:[%s3 + $0x80] sm:$0xf]
      %v492 = vld [vmem:[%s3 + $0x84] sm:$0xf]
      %v493 = vld [vmem:[%s3 + $0x88] sm:$0xf]
      %v494 = vld [vmem:[%s3 + $0x8c] sm:$0xf]
      %v499 = vunpack.c.l.b16 %v463
      %v500 = vunpack.c.l.b16 %v464
      %v501 = vunpack.c.l.b16 %v465
      %v502 = vunpack.c.l.b16 %v466
      %v503 = vpack.c.b16 %v500, %v499
      %v504 = vpack.c.b16 %v502, %v501
      %511 = vrot.lane.b32.xlu0 %v453, 127
      %v512 = vpop.permute.xlu0 %511
      %513 = vrot.lane.b32.xlu0 %v454, 127
      %v514 = vpop.permute.xlu0 %513
      %515 = vrot.lane.b32.xlu0 %v455, 127
      %v516 = vpop.permute.xlu0 %515
      %517 = vrot.lane.b32.xlu0 %v456, 127
      %v518 = vpop.permute.xlu0 %517
      %519 = vrot.lane.b32.xlu0 %v457, 127
      %v520 = vpop.permute.xlu0 %519
      %521 = vrot.lane.b32.xlu0 %v458, 127
      %v522 = vpop.permute.xlu0 %521
      %vm523 = vcmask 1039360
      %v524 = vsel %vm523, %v512, %v514
      %v525 = vsel %vm523, %v514, %v516
      %v526 = vsel %vm523, %v518, %v520
      %v527 = vsel %vm523, %v520, %v522
      %vm534 = vcmask 261120
      %v536 = vsel %vm534, %v503, 0
      %v539 = vsel %vm534, %v504, 0
      %541 = vmatprep.subr.bf16.mxu0 %v525
      %542 = vmatpush1.bf16.msra.mxu0 %v524
      %543 = vmatprep.subr.bf16.mxu0 %v527
      %544 = vmatpush1.bf16.msra.mxu0 %v526
      %545 = vmatprep.subr.bf16.mxu0 0
      %546 = vmatpush1.bf16.msra.mxu0 0
      %547 = vmatprep.subr.bf16.mxu0 0
      %548 = vmatpush1.bf16.msra.mxu0 0
      %549 = vmatprep.subr.bf16.mxu0 0
      %550 = vmatpush1.bf16.msra.mxu0 0
      %551 = vmatprep.subr.bf16.mxu0 0
      %552 = vmatpush1.bf16.msra.mxu0 0
      %553 = vmatprep.subr.bf16.mxu0 0
      %554 = vmatpush1.bf16.msra.mxu0 0
      %555 = vmatprep.subr.bf16.mxu0 0
      %556 = vmatpush1.bf16.msra.mxu0 0
      %557 = vmatprep.subr.bf16.mxu0 0
      %558 = vmatpush1.bf16.msra.mxu0 0
      %559 = vmatprep.subr.bf16.mxu0 0
      %560 = vmatpush1.bf16.msra.mxu0 0
      %561 = vmatprep.subr.bf16.mxu0 0
      %562 = vmatpush1.bf16.msra.mxu0 0
      %563 = vmatprep.subr.bf16.mxu0 0
      %564 = vmatpush1.bf16.msra.mxu0 0
      %565 = vmatprep.subr.bf16.mxu0 0
      %566 = vmatpush1.bf16.msra.mxu0 0
      %567 = vmatprep.subr.bf16.mxu0 0
      %568 = vmatpush1.bf16.msra.mxu0 0
      %569 = vmatprep.subr.bf16.mxu0 0
      %570 = vmatpush1.bf16.msra.mxu0 0
      %571 = vmatprep.subr.bf16.mxu0 0
      %572 = vmatpush1.bf16.msra.mxu0 0
      %573 = vmatprep.mubr.bf16.mxu0 0
      %574 = vmatmul.mubr.bf16.gmra.mrb[0].mxu0 %v536
      %v575 = vpop.f32.mrb[0].mxu0
      %v576 = vadd.f32 0.0, %v575
      %v577 = vpop.f32.mrb[0].mxu0
      %v578 = vadd.f32 0.0, %v577
      %v579 = vpop.f32.mrb[0].mxu0
      %v580 = vadd.f32 0.0, %v579
      %v581 = vpop.f32.mrb[0].mxu0
      %v582 = vadd.f32 0.0, %v581
      %583 = vmatprep.mubr.bf16.mxu0 0
      %584 = vmatmul.mubr.bf16.gmra.mrb[0].mxu0 %v539
      %v585 = vpop.f32.mrb[0].mxu0
      %v586 = vadd.f32 0.0, %v585
      %v587 = vpop.f32.mrb[0].mxu0
      %v588 = vadd.f32 0.0, %v587
      %v589 = vpop.f32.mrb[0].mxu0
      %v590 = vadd.f32 0.0, %v589
      %v591 = vpop.f32.mrb[0].mxu0
      %v592 = vadd.f32 0.0, %v591
      %593 = vdwg.mxu0
      %594 = vmatprep.subr.bf16.mxu0 0
      %595 = vmatpush1.bf16.msra.mxu0 %v516
      %596 = vmatprep.subr.bf16.mxu0 0
      %597 = vmatpush1.bf16.msra.mxu0 %v522
      %598 = vmatprep.subr.bf16.mxu0 0
      %599 = vmatpush1.bf16.msra.mxu0 0
      %600 = vmatprep.subr.bf16.mxu0 0
      %601 = vmatpush1.bf16.msra.mxu0 0
      %602 = vmatprep.subr.bf16.mxu0 0
      %603 = vmatpush1.bf16.msra.mxu0 0
      %604 = vmatprep.subr.bf16.mxu0 0
      %605 = vmatpush1.bf16.msra.mxu0 0
      %606 = vmatprep.subr.bf16.mxu0 0
      %607 = vmatpush1.bf16.msra.mxu0 0
      %608 = vmatprep.subr.bf16.mxu0 0
      %609 = vmatpush1.bf16.msra.mxu0 0
      %610 = vmatprep.subr.bf16.mxu0 0
      %611 = vmatpush1.bf16.msra.mxu0 0
      %612 = vmatprep.subr.bf16.mxu0 0
      %613 = vmatpush1.bf16.msra.mxu0 0
      %614 = vmatprep.subr.bf16.mxu0 0
      %615 = vmatpush1.bf16.msra.mxu0 0
      %616 = vmatprep.subr.bf16.mxu0 0
      %617 = vmatpush1.bf16.msra.mxu0 0
      %618 = vmatprep.subr.bf16.mxu0 0
      %619 = vmatpush1.bf16.msra.mxu0 0
      %620 = vmatprep.subr.bf16.mxu0 0
      %621 = vmatpush1.bf16.msra.mxu0 0
      %622 = vmatprep.subr.bf16.mxu0 0
      %623 = vmatpush1.bf16.msra.mxu0 0
      %624 = vmatprep.subr.bf16.mxu0 0
      %625 = vmatpush1.bf16.msra.mxu0 0
      %626 = vmatprep.mubr.bf16.mxu0 0
      %627 = vmatmul.mubr.bf16.gmra.mrb[0].mxu0 %v536
      %v628 = vpop.f32.mrb[0].mxu0
      %v629 = vadd.f32 0.0, %v628
      %v630 = vpop.f32.mrb[0].mxu0
      %v631 = vpop.f32.mrb[0].mxu0
      %v632 = vadd.f32 0.0, %v631
      %v633 = vpop.f32.mrb[0].mxu0
      %634 = vmatprep.mubr.bf16.mxu0 0
      %635 = vmatmul.mubr.bf16.gmra.mrb[0].mxu0 %v539
      %v636 = vpop.f32.mrb[0].mxu0
      %v637 = vadd.f32 0.0, %v636
      %v638 = vpop.f32.mrb[0].mxu0
      %v639 = vpop.f32.mrb[0].mxu0
      %v640 = vadd.f32 0.0, %v639
      %v641 = vpop.f32.mrb[0].mxu0
      %642 = vdwg.mxu0
      %v647 = vunpack.c.l.b16 %v459
      %v648 = vunpack.c.l.b16 %v460
      %v649 = vunpack.c.l.b16 %v461
      %v650 = vunpack.c.l.b16 %v462
      %v651 = vpack.c.b16 %v648, %v647
      %v652 = vpack.c.b16 %v650, %v649
      %v654 = vsel %vm534, %v651, 0
      %v657 = vsel %vm534, %v652, 0
      %659 = vmatprep.subr.bf16.mxu0 %v454
      %660 = vmatpush1.bf16.msra.mxu0 %v453
      %661 = vmatprep.subr.bf16.mxu0 %v457
      %662 = vmatpush1.bf16.msra.mxu0 %v456
      %663 = vmatprep.subr.bf16.mxu0 0
      %664 = vmatpush1.bf16.msra.mxu0 0
      %665 = vmatprep.subr.bf16.mxu0 0
      %666 = vmatpush1.bf16.msra.mxu0 0
      %667 = vmatprep.subr.bf16.mxu0 0
      %668 = vmatpush1.bf16.msra.mxu0 0
      %669 = vmatprep.subr.bf16.mxu0 0
      %670 = vmatpush1.bf16.msra.mxu0 0
      %671 = vmatprep.subr.bf16.mxu0 0
      %672 = vmatpush1.bf16.msra.mxu0 0
      %673 = vmatprep.subr.bf16.mxu0 0
      %674 = vmatpush1.bf16.msra.mxu0 0
      %675 = vmatprep.subr.bf16.mxu0 0
      %676 = vmatpush1.bf16.msra.mxu0 0
      %677 = vmatprep.subr.bf16.mxu0 0
      %678 = vmatpush1.bf16.msra.mxu0 0
      %679 = vmatprep.subr.bf16.mxu0 0
      %680 = vmatpush1.bf16.msra.mxu0 0
      %681 = vmatprep.subr.bf16.mxu0 0
      %682 = vmatpush1.bf16.msra.mxu0 0
      %683 = vmatprep.subr.bf16.mxu0 0
      %684 = vmatpush1.bf16.msra.mxu0 0
      %685 = vmatprep.subr.bf16.mxu0 0
      %686 = vmatpush1.bf16.msra.mxu0 0
      %687 = vmatprep.subr.bf16.mxu0 0
      %688 = vmatpush1.bf16.msra.mxu0 0
      %689 = vmatprep.subr.bf16.mxu0 0
      %690 = vmatpush1.bf16.msra.mxu0 0
      %691 = vmatprep.mubr.bf16.mxu0 0
      %692 = vmatmul.mubr.bf16.gmra.mrb[0].mxu0 %v654
      %v693 = vpop.f32.mrb[0].mxu0
      %v694 = vadd.f32 %v576, %v693
      %v695 = vpop.f32.mrb[0].mxu0
      %v696 = vadd.f32 %v578, %v695
      %v697 = vpop.f32.mrb[0].mxu0
      %v698 = vadd.f32 %v580, %v697
      %v699 = vpop.f32.mrb[0].mxu0
      %v700 = vadd.f32 %v582, %v699
      %701 = vmatprep.mubr.bf16.mxu0 0
      %702 = vmatmul.mubr.bf16.gmra.mrb[0].mxu0 %v657
      %v703 = vpop.f32.mrb[0].mxu0
      %v704 = vadd.f32 %v586, %v703
      %v705 = vpop.f32.mrb[0].mxu0
      %v706 = vadd.f32 %v588, %v705
      %v707 = vpop.f32.mrb[0].mxu0
      %v708 = vadd.f32 %v590, %v707
      %v709 = vpop.f32.mrb[0].mxu0
      %v710 = vadd.f32 %v592, %v709
      %711 = vdwg.mxu0
      %712 = vmatprep.subr.bf16.mxu0 0
      %713 = vmatpush1.bf16.msra.mxu0 %v455
      %714 = vmatprep.subr.bf16.mxu0 0
      %715 = vmatpush1.bf16.msra.mxu0 %v458
      %716 = vmatprep.subr.bf16.mxu0 0
      %717 = vmatpush1.bf16.msra.mxu0 0
      %718 = vmatprep.subr.bf16.mxu0 0
      %719 = vmatpush1.bf16.msra.mxu0 0
      %720 = vmatprep.subr.bf16.mxu0 0
      %721 = vmatpush1.bf16.msra.mxu0 0
      %722 = vmatprep.subr.bf16.mxu0 0
      %723 = vmatpush1.bf16.msra.mxu0 0
      %724 = vmatprep.subr.bf16.mxu0 0
      %725 = vmatpush1.bf16.msra.mxu0 0
      %726 = vmatprep.subr.bf16.mxu0 0
      %727 = vmatpush1.bf16.msra.mxu0 0
      %728 = vmatprep.subr.bf16.mxu0 0
      %729 = vmatpush1.bf16.msra.mxu0 0
      %730 = vmatprep.subr.bf16.mxu0 0
      %731 = vmatpush1.bf16.msra.mxu0 0
      %732 = vmatprep.subr.bf16.mxu0 0
      %733 = vmatpush1.bf16.msra.mxu0 0
      %734 = vmatprep.subr.bf16.mxu0 0
      %735 = vmatpush1.bf16.msra.mxu0 0
      %736 = vmatprep.subr.bf16.mxu0 0
      %737 = vmatpush1.bf16.msra.mxu0 0
      %738 = vmatprep.subr.bf16.mxu0 0
      %739 = vmatpush1.bf16.msra.mxu0 0
      %740 = vmatprep.subr.bf16.mxu0 0
      %741 = vmatpush1.bf16.msra.mxu0 0
      %742 = vmatprep.subr.bf16.mxu0 0
      %743 = vmatpush1.bf16.msra.mxu0 0
      %744 = vmatprep.mubr.bf16.mxu0 0
      %745 = vmatmul.mubr.bf16.gmra.mrb[0].mxu0 %v654
      %v746 = vpop.f32.mrb[0].mxu0
      %v747 = vadd.f32 %v629, %v746
      %v748 = vpop.f32.mrb[0].mxu0
      %v749 = vpop.f32.mrb[0].mxu0
      %v750 = vadd.f32 %v632, %v749
      %v751 = vpop.f32.mrb[0].mxu0
      %752 = vmatprep.mubr.bf16.mxu0 0
      %753 = vmatmul.mubr.bf16.gmra.mrb[0].mxu0 %v657
      %v754 = vpop.f32.mrb[0].mxu0
      %v755 = vadd.f32 %v637, %v754
      %v756 = vpop.f32.mrb[0].mxu0
      %v757 = vpop.f32.mrb[0].mxu0
      %v758 = vadd.f32 %v640, %v757
      %v759 = vpop.f32.mrb[0].mxu0
      %760 = vdwg.mxu0
      %v765 = vunpack.c.l.b16 %v467
      %v766 = vunpack.c.l.b16 %v468
      %v767 = vunpack.c.l.b16 %v469
      %v768 = vunpack.c.l.b16 %v470
      %v769 = vpack.c.b16 %v766, %v765
      %v770 = vpack.c.b16 %v768, %v767
      %771 = vrot.lane.b32.xlu0 %v453, 126
      %v772 = vpop.permute.xlu0 %771
      %773 = vrot.lane.b32.xlu0 %v454, 126
      %v774 = vpop.permute.xlu0 %773
      %775 = vrot.lane.b32.xlu0 %v455, 126
      %v776 = vpop.permute.xlu0 %775
      %777 = vrot.lane.b32.xlu0 %v456, 126
      %v778 = vpop.permute.xlu0 %777
      %779 = vrot.lane.b32.xlu0 %v457, 126
      %v780 = vpop.permute.xlu0 %779
      %781 = vrot.lane.b32.xlu0 %v458, 126
      %v782 = vpop.permute.xlu0 %781
      %vm783 = vcmask 1031168
      %v784 = vsel %vm783, %v772, %v774
      %v785 = vsel %vm783, %v774, %v776
      %v786 = vsel %vm783, %v778, %v780
      %v787 = vsel %vm783, %v780, %v782
      %v795 = vsel %vm534, %v769, 0
      %v798 = vsel %vm534, %v770, 0
      %800 = vmatprep.subr.bf16.mxu0 %v785
      %801 = vmatpush1.bf16.msra.mxu0 %v784
      %802 = vmatprep.subr.bf16.mxu0 %v787
      %803 = vmatpush1.bf16.msra.mxu0 %v786
      %804 = vmatprep.subr.bf16.mxu0 0
      %805 = vmatpush1.bf16.msra.mxu0 0
      %806 = vmatprep.subr.bf16.mxu0 0
      %807 = vmatpush1.bf16.msra.mxu0 0
      %808 = vmatprep.subr.bf16.mxu0 0
      %809 = vmatpush1.bf16.msra.mxu0 0
      %810 = vmatprep.subr.bf16.mxu0 0
      %811 = vmatpush1.bf16.msra.mxu0 0
      %812 = vmatprep.subr.bf16.mxu0 0
      %813 = vmatpush1.bf16.msra.mxu0 0
      %814 = vmatprep.subr.bf16.mxu0 0
      %815 = vmatpush1.bf16.msra.mxu0 0
      %816 = vmatprep.subr.bf16.mxu0 0
      %817 = vmatpush1.bf16.msra.mxu0 0
      %818 = vmatprep.subr.bf16.mxu0 0
      %819 = vmatpush1.bf16.msra.mxu0 0
      %820 = vmatprep.subr.bf16.mxu0 0
      %821 = vmatpush1.bf16.msra.mxu0 0
      %822 = vmatprep.subr.bf16.mxu0 0
      %823 = vmatpush1.bf16.msra.mxu0 0
      %824 = vmatprep.subr.bf16.mxu0 0
      %825 = vmatpush1.bf16.msra.mxu0 0
      %826 = vmatprep.subr.bf16.mxu0 0
      %827 = vmatpush1.bf16.msra.mxu0 0
      %828 = vmatprep.subr.bf16.mxu0 0
      %829 = vmatpush1.bf16.msra.mxu0 0
      %830 = vmatprep.subr.bf16.mxu0 0
      %831 = vmatpush1.bf16.msra.mxu0 0
      %832 = vmatprep.mubr.bf16.mxu0 0
      %833 = vmatmul.mubr.bf16.gmra.mrb[0].mxu0 %v795
      %v834 = vpop.f32.mrb[0].mxu0
      %v835 = vadd.f32 0.0, %v834
      %v836 = vpop.f32.mrb[0].mxu0
      %v837 = vadd.f32 0.0, %v836
      %v838 = vpop.f32.mrb[0].mxu0
      %v839 = vadd.f32 0.0, %v838
      %v840 = vpop.f32.mrb[0].mxu0
      %v841 = vadd.f32 0.0, %v840
      %842 = vmatprep.mubr.bf16.mxu0 0
      %843 = vmatmul.mubr.bf16.gmra.mrb[0].mxu0 %v798
      %v844 = vpop.f32.mrb[0].mxu0
      %v845 = vadd.f32 0.0, %v844
      %v846 = vpop.f32.mrb[0].mxu0
      %v847 = vadd.f32 0.0, %v846
      %v848 = vpop.f32.mrb[0].mxu0
      %v849 = vadd.f32 0.0, %v848
      %v850 = vpop.f32.mrb[0].mxu0
      %v851 = vadd.f32 0.0, %v850
      %852 = vdwg.mxu0
      %853 = vmatprep.subr.bf16.mxu0 0
      %854 = vmatpush1.bf16.msra.mxu0 %v776
      %855 = vmatprep.subr.bf16.mxu0 0
      %856 = vmatpush1.bf16.msra.mxu0 %v782
      %857 = vmatprep.subr.bf16.mxu0 0
      %858 = vmatpush1.bf16.msra.mxu0 0
      %859 = vmatprep.subr.bf16.mxu0 0
      %860 = vmatpush1.bf16.msra.mxu0 0
      %861 = vmatprep.subr.bf16.mxu0 0
      %862 = vmatpush1.bf16.msra.mxu0 0
      %863 = vmatprep.subr.bf16.mxu0 0
      %864 = vmatpush1.bf16.msra.mxu0 0
      %865 = vmatprep.subr.bf16.mxu0 0
      %866 = vmatpush1.bf16.msra.mxu0 0
      %867 = vmatprep.subr.bf16.mxu0 0
      %868 = vmatpush1.bf16.msra.mxu0 0
      %869 = vmatprep.subr.bf16.mxu0 0
      %870 = vmatpush1.bf16.msra.mxu0 0
      %871 = vmatprep.subr.bf16.mxu0 0
      %872 = vmatpush1.bf16.msra.mxu0 0
      %873 = vmatprep.subr.bf16.mxu0 0
      %874 = vmatpush1.bf16.msra.mxu0 0
      %875 = vmatprep.subr.bf16.mxu0 0
      %876 = vmatpush1.bf16.msra.mxu0 0
      %877 = vmatprep.subr.bf16.mxu0 0
      %878 = vmatpush1.bf16.msra.mxu0 0
      %879 = vmatprep.subr.bf16.mxu0 0
      %880 = vmatpush1.bf16.msra.mxu0 0
      %881 = vmatprep.subr.bf16.mxu0 0
      %882 = vmatpush1.bf16.msra.mxu0 0
      %883 = vmatprep.subr.bf16.mxu0 0
      %884 = vmatpush1.bf16.msra.mxu0 0
      %885 = vmatprep.mubr.bf16.mxu0 0
      %886 = vmatmul.mubr.bf16.gmra.mrb[0].mxu0 %v795
      %v887 = vpop.f32.mrb[0].mxu0
      %v888 = vadd.f32 0.0, %v887
      %v889 = vpop.f32.mrb[0].mxu0
      %v890 = vpop.f32.mrb[0].mxu0
      %v891 = vadd.f32 0.0, %v890
      %v892 = vpop.f32.mrb[0].mxu0
      %893 = vmatprep.mubr.bf16.mxu0 0
      %894 = vmatmul.mubr.bf16.gmra.mrb[0].mxu0 %v798
      %v895 = vpop.f32.mrb[0].mxu0
      %v896 = vadd.f32 0.0, %v895
      %v897 = vpop.f32.mrb[0].mxu0
      %v898 = vpop.f32.mrb[0].mxu0
      %v899 = vadd.f32 0.0, %v898
      %v900 = vpop.f32.mrb[0].mxu0
      %901 = vdwg.mxu0
      %v902 = vadd.f32 %v694, %v835
      %v903 = vadd.f32 %v696, %v837
      %v904 = vadd.f32 %v747, %v888
      %v905 = vadd.f32 %v698, %v839
      %v906 = vadd.f32 %v700, %v841
      %v907 = vadd.f32 %v750, %v891
      %v908 = vadd.f32 %v704, %v845
      %v909 = vadd.f32 %v706, %v847
      %v910 = vadd.f32 %v755, %v896
      %v911 = vadd.f32 %v708, %v849
      %v912 = vadd.f32 %v710, %v851
      %v913 = vadd.f32 %v758, %v899
      %v918 = vunpack.c.l.b16 %v471
      %v919 = vunpack.c.l.b16 %v472
      %v920 = vunpack.c.l.b16 %v473
      %v921 = vunpack.c.l.b16 %v474
      %v922 = vpack.c.b16 %v919, %v918
      %v923 = vpack.c.b16 %v921, %v920
      %924 = vrot.lane.b32.xlu0 %v453, 110
      %v925 = vpop.permute.xlu0 %924
      %926 = vrot.lane.b32.xlu0 %v454, 110
      %v927 = vpop.permute.xlu0 %926
      %928 = vrot.lane.b32.xlu0 %v455, 110
      %v929 = vpop.permute.xlu0 %928
      %930 = vrot.lane.b32.xlu0 %v456, 110
      %v931 = vpop.permute.xlu0 %930
      %932 = vrot.lane.b32.xlu0 %v457, 110
      %v933 = vpop.permute.xlu0 %932
      %934 = vrot.lane.b32.xlu0 %v458, 110
      %v935 = vpop.permute.xlu0 %934
      %vm936 = vcmask 900096
      %v937 = vsel %vm936, %v925, %v927
      %v938 = vsel %vm936, %v927, %v929
      %v939 = vsel %vm936, %v931, %v933
      %v940 = vsel %vm936, %v933, %v935
      %v948 = vsel %vm534, %v922, 0
      %v951 = vsel %vm534, %v923, 0
      %953 = vmatprep.subr.bf16.mxu0 %v938
      %954 = vmatpush1.bf16.msra.mxu0 %v937
      %955 = vmatprep.subr.bf16.mxu0 %v940
      %956 = vmatpush1.bf16.msra.mxu0 %v939
      %957 = vmatprep.subr.bf16.mxu0 0
      %958 = vmatpush1.bf16.msra.mxu0 0
      %959 = vmatprep.subr.bf16.mxu0 0
      %960 = vmatpush1.bf16.msra.mxu0 0
      %961 = vmatprep.subr.bf16.mxu0 0
      %962 = vmatpush1.bf16.msra.mxu0 0
      %963 = vmatprep.subr.bf16.mxu0 0
      %964 = vmatpush1.bf16.msra.mxu0 0
      %965 = vmatprep.subr.bf16.mxu0 0
      %966 = vmatpush1.bf16.msra.mxu0 0
      %967 = vmatprep.subr.bf16.mxu0 0
      %968 = vmatpush1.bf16.msra.mxu0 0
      %969 = vmatprep.subr.bf16.mxu0 0
      %970 = vmatpush1.bf16.msra.mxu0 0
      %971 = vmatprep.subr.bf16.mxu0 0
      %972 = vmatpush1.bf16.msra.mxu0 0
      %973 = vmatprep.subr.bf16.mxu0 0
      %974 = vmatpush1.bf16.msra.mxu0 0
      %975 = vmatprep.subr.bf16.mxu0 0
      %976 = vmatpush1.bf16.msra.mxu0 0
      %977 = vmatprep.subr.bf16.mxu0 0
      %978 = vmatpush1.bf16.msra.mxu0 0
      %979 = vmatprep.subr.bf16.mxu0 0
      %980 = vmatpush1.bf16.msra.mxu0 0
      %981 = vmatprep.subr.bf16.mxu0 0
      %982 = vmatpush1.bf16.msra.mxu0 0
      %983 = vmatprep.subr.bf16.mxu0 0
      %984 = vmatpush1.bf16.msra.mxu0 0
      %985 = vmatprep.mubr.bf16.mxu0 0
      %986 = vmatmul.mubr.bf16.gmra.mrb[0].mxu0 %v948
      %v987 = vpop.f32.mrb[0].mxu0
      %v988 = vadd.f32 0.0, %v987
      %v989 = vpop.f32.mrb[0].mxu0
      %v990 = vadd.f32 0.0, %v989
      %v991 = vpop.f32.mrb[0].mxu0
      %v992 = vadd.f32 0.0, %v991
      %v993 = vpop.f32.mrb[0].mxu0
      %v994 = vadd.f32 0.0, %v993
      %995 = vmatprep.mubr.bf16.mxu0 0
      %996 = vmatmul.mubr.bf16.gmra.mrb[0].mxu0 %v951
      %v997 = vpop.f32.mrb[0].mxu0
      %v998 = vadd.f32 0.0, %v997
      %v999 = vpop.f32.mrb[0].mxu0
      %v1000 = vadd.f32 0.0, %v999
      %v1001 = vpop.f32.mrb[0].mxu0
      %v1002 = vadd.f32 0.0, %v1001
      %v1003 = vpop.f32.mrb[0].mxu0
      %v1004 = vadd.f32 0.0, %v1003
      %1005 = vdwg.mxu0
      %1006 = vmatprep.subr.bf16.mxu0 0
      %1007 = vmatpush1.bf16.msra.mxu0 %v929
      %1008 = vmatprep.subr.bf16.mxu0 0
      %1009 = vmatpush1.bf16.msra.mxu0 %v935
      %1010 = vmatprep.subr.bf16.mxu0 0
      %1011 = vmatpush1.bf16.msra.mxu0 0
      %1012 = vmatprep.subr.bf16.mxu0 0
      %1013 = vmatpush1.bf16.msra.mxu0 0
      %1014 = vmatprep.subr.bf16.mxu0 0
      %1015 = vmatpush1.bf16.msra.mxu0 0
      %1016 = vmatprep.subr.bf16.mxu0 0
      %1017 = vmatpush1.bf16.msra.mxu0 0
      %1018 = vmatprep.subr.bf16.mxu0 0
      %1019 = vmatpush1.bf16.msra.mxu0 0
      %1020 = vmatprep.subr.bf16.mxu0 0
      %1021 = vmatpush1.bf16.msra.mxu0 0
      %1022 = vmatprep.subr.bf16.mxu0 0
      %1023 = vmatpush1.bf16.msra.mxu0 0
      %1024 = vmatprep.subr.bf16.mxu0 0
      %1025 = vmatpush1.bf16.msra.mxu0 0
      %1026 = vmatprep.subr.bf16.mxu0 0
      %1027 = vmatpush1.bf16.msra.mxu0 0
      %1028 = vmatprep.subr.bf16.mxu0 0
      %1029 = vmatpush1.bf16.msra.mxu0 0
      %1030 = vmatprep.subr.bf16.mxu0 0
      %1031 = vmatpush1.bf16.msra.mxu0 0
      %1032 = vmatprep.subr.bf16.mxu0 0
      %1033 = vmatpush1.bf16.msra.mxu0 0
      %1034 = vmatprep.subr.bf16.mxu0 0
      %1035 = vmatpush1.bf16.msra.mxu0 0
      %1036 = vmatprep.subr.bf16.mxu0 0
      %1037 = vmatpush1.bf16.msra.mxu0 0
      %1038 = vmatprep.mubr.bf16.mxu0 0
      %1039 = vmatmul.mubr.bf16.gmra.mrb[0].mxu0 %v948
      %v1040 = vpop.f32.mrb[0].mxu0
      %v1041 = vadd.f32 0.0, %v1040
      %v1042 = vpop.f32.mrb[0].mxu0
      %v1043 = vpop.f32.mrb[0].mxu0
      %v1044 = vadd.f32 0.0, %v1043
      %v1045 = vpop.f32.mrb[0].mxu0
      %1046 = vmatprep.mubr.bf16.mxu0 0
      %1047 = vmatmul.mubr.bf16.gmra.mrb[0].mxu0 %v951
      %v1048 = vpop.f32.mrb[0].mxu0
      %v1049 = vadd.f32 0.0, %v1048
      %v1050 = vpop.f32.mrb[0].mxu0
      %v1051 = vpop.f32.mrb[0].mxu0
      %v1052 = vadd.f32 0.0, %v1051
      %v1053 = vpop.f32.mrb[0].mxu0
      %1054 = vdwg.mxu0
      %v1055 = vadd.f32 %v902, %v988
      %v1056 = vadd.f32 %v903, %v990
      %v1057 = vadd.f32 %v904, %v1041
      %v1058 = vadd.f32 %v905, %v992
      %v1059 = vadd.f32 %v906, %v994
      %v1060 = vadd.f32 %v907, %v1044
      %v1061 = vadd.f32 %v908, %v998
      %v1062 = vadd.f32 %v909, %v1000
      %v1063 = vadd.f32 %v910, %v1049
      %v1064 = vadd.f32 %v911, %v1002
      %v1065 = vadd.f32 %v912, %v1004
      %v1066 = vadd.f32 %v913, %v1052
      %v1071 = vunpack.c.l.b16 %v475
      %v1072 = vunpack.c.l.b16 %v476
      %v1073 = vunpack.c.l.b16 %v477
      %v1074 = vunpack.c.l.b16 %v478
      %v1075 = vpack.c.b16 %v1072, %v1071
      %v1076 = vpack.c.b16 %v1074, %v1073
      %1077 = vrot.lane.b32.xlu0 %v453, 109
      %v1078 = vpop.permute.xlu0 %1077
      %1079 = vrot.lane.b32.xlu0 %v454, 109
      %v1080 = vpop.permute.xlu0 %1079
      %1081 = vrot.lane.b32.xlu0 %v455, 109
      %v1082 = vpop.permute.xlu0 %1081
      %1083 = vrot.lane.b32.xlu0 %v456, 109
      %v1084 = vpop.permute.xlu0 %1083
      %1085 = vrot.lane.b32.xlu0 %v457, 109
      %v1086 = vpop.permute.xlu0 %1085
      %1087 = vrot.lane.b32.xlu0 %v458, 109
      %v1088 = vpop.permute.xlu0 %1087
      %vm1089 = vcmask 891904
      %v1090 = vsel %vm1089, %v1078, %v1080
      %v1091 = vsel %vm1089, %v1080, %v1082
      %v1092 = vsel %vm1089, %v1084, %v1086
      %v1093 = vsel %vm1089, %v1086, %v1088
      %v1101 = vsel %vm534, %v1075, 0
      %v1104 = vsel %vm534, %v1076, 0
      %1106 = vmatprep.subr.bf16.mxu0 %v1091
      %1107 = vmatpush1.bf16.msra.mxu0 %v1090
      %1108 = vmatprep.subr.bf16.mxu0 %v1093
      %1109 = vmatpush1.bf16.msra.mxu0 %v1092
      %1110 = vmatprep.subr.bf16.mxu0 0
      %1111 = vmatpush1.bf16.msra.mxu0 0
      %1112 = vmatprep.subr.bf16.mxu0 0
      %1113 = vmatpush1.bf16.msra.mxu0 0
      %1114 = vmatprep.subr.bf16.mxu0 0
      %1115 = vmatpush1.bf16.msra.mxu0 0
      %1116 = vmatprep.subr.bf16.mxu0 0
      %1117 = vmatpush1.bf16.msra.mxu0 0
      %1118 = vmatprep.subr.bf16.mxu0 0
      %1119 = vmatpush1.bf16.msra.mxu0 0
      %1120 = vmatprep.subr.bf16.mxu0 0
      %1121 = vmatpush1.bf16.msra.mxu0 0
      %1122 = vmatprep.subr.bf16.mxu0 0
      %1123 = vmatpush1.bf16.msra.mxu0 0
      %1124 = vmatprep.subr.bf16.mxu0 0
      %1125 = vmatpush1.bf16.msra.mxu0 0
      %1126 = vmatprep.subr.bf16.mxu0 0
      %1127 = vmatpush1.bf16.msra.mxu0 0
      %1128 = vmatprep.subr.bf16.mxu0 0
      %1129 = vmatpush1.bf16.msra.mxu0 0
      %1130 = vmatprep.subr.bf16.mxu0 0
      %1131 = vmatpush1.bf16.msra.mxu0 0
      %1132 = vmatprep.subr.bf16.mxu0 0
      %1133 = vmatpush1.bf16.msra.mxu0 0
      %1134 = vmatprep.subr.bf16.mxu0 0
      %1135 = vmatpush1.bf16.msra.mxu0 0
      %1136 = vmatprep.subr.bf16.mxu0 0
      %1137 = vmatpush1.bf16.msra.mxu0 0
      %1138 = vmatprep.mubr.bf16.mxu0 0
      %1139 = vmatmul.mubr.bf16.gmra.mrb[0].mxu0 %v1101
      %v1140 = vpop.f32.mrb[0].mxu0
      %v1141 = vadd.f32 0.0, %v1140
      %v1142 = vpop.f32.mrb[0].mxu0
      %v1143 = vadd.f32 0.0, %v1142
      %v1144 = vpop.f32.mrb[0].mxu0
      %v1145 = vadd.f32 0.0, %v1144
      %v1146 = vpop.f32.mrb[0].mxu0
      %v1147 = vadd.f32 0.0, %v1146
      %1148 = vmatprep.mubr.bf16.mxu0 0
      %1149 = vmatmul.mubr.bf16.gmra.mrb[0].mxu0 %v1104
      %v1150 = vpop.f32.mrb[0].mxu0
      %v1151 = vadd.f32 0.0, %v1150
      %v1152 = vpop.f32.mrb[0].mxu0
      %v1153 = vadd.f32 0.0, %v1152
      %v1154 = vpop.f32.mrb[0].mxu0
      %v1155 = vadd.f32 0.0, %v1154
      %v1156 = vpop.f32.mrb[0].mxu0
      %v1157 = vadd.f32 0.0, %v1156
      %1158 = vdwg.mxu0
      %1159 = vmatprep.subr.bf16.mxu0 0
      %1160 = vmatpush1.bf16.msra.mxu0 %v1082
      %1161 = vmatprep.subr.bf16.mxu0 0
      %1162 = vmatpush1.bf16.msra.mxu0 %v1088
      %1163 = vmatprep.subr.bf16.mxu0 0
      %1164 = vmatpush1.bf16.msra.mxu0 0
      %1165 = vmatprep.subr.bf16.mxu0 0
      %1166 = vmatpush1.bf16.msra.mxu0 0
      %1167 = vmatprep.subr.bf16.mxu0 0
      %1168 = vmatpush1.bf16.msra.mxu0 0
      %1169 = vmatprep.subr.bf16.mxu0 0
      %1170 = vmatpush1.bf16.msra.mxu0 0
      %1171 = vmatprep.subr.bf16.mxu0 0
      %1172 = vmatpush1.bf16.msra.mxu0 0
      %1173 = vmatprep.subr.bf16.mxu0 0
      %1174 = vmatpush1.bf16.msra.mxu0 0
      %1175 = vmatprep.subr.bf16.mxu0 0
      %1176 = vmatpush1.bf16.msra.mxu0 0
      %1177 = vmatprep.subr.bf16.mxu0 0
      %1178 = vmatpush1.bf16.msra.mxu0 0
      %1179 = vmatprep.subr.bf16.mxu0 0
      %1180 = vmatpush1.bf16.msra.mxu0 0
      %1181 = vmatprep.subr.bf16.mxu0 0
      %1182 = vmatpush1.bf16.msra.mxu0 0
      %1183 = vmatprep.subr.bf16.mxu0 0
      %1184 = vmatpush1.bf16.msra.mxu0 0
      %1185 = vmatprep.subr.bf16.mxu0 0
      %1186 = vmatpush1.bf16.msra.mxu0 0
      %1187 = vmatprep.subr.bf16.mxu0 0
      %1188 = vmatpush1.bf16.msra.mxu0 0
      %1189 = vmatprep.subr.bf16.mxu0 0
      %1190 = vmatpush1.bf16.msra.mxu0 0
      %1191 = vmatprep.mubr.bf16.mxu0 0
      %1192 = vmatmul.mubr.bf16.gmra.mrb[0].mxu0 %v1101
      %v1193 = vpop.f32.mrb[0].mxu0
      %v1194 = vadd.f32 0.0, %v1193
      %v1195 = vpop.f32.mrb[0].mxu0
      %v1196 = vpop.f32.mrb[0].mxu0
      %v1197 = vadd.f32 0.0, %v1196
      %v1198 = vpop.f32.mrb[0].mxu0
      %1199 = vmatprep.mubr.bf16.mxu0 0
      %1200 = vmatmul.mubr.bf16.gmra.mrb[0].mxu0 %v1104
      %v1201 = vpop.f32.mrb[0].mxu0
      %v1202 = vadd.f32 0.0, %v1201
      %v1203 = vpop.f32.mrb[0].mxu0
      %v1204 = vpop.f32.mrb[0].mxu0
      %v1205 = vadd.f32 0.0, %v1204
      %v1206 = vpop.f32.mrb[0].mxu0
      %1207 = vdwg.mxu0
      %v1208 = vadd.f32 %v1055, %v1141
      %v1209 = vadd.f32 %v1056, %v1143
      %v1210 = vadd.f32 %v1057, %v1194
      %v1211 = vadd.f32 %v1058, %v1145
      %v1212 = vadd.f32 %v1059, %v1147
      %v1213 = vadd.f32 %v1060, %v1197
      %v1214 = vadd.f32 %v1061, %v1151
      %v1215 = vadd.f32 %v1062, %v1153
      %v1216 = vadd.f32 %v1063, %v1202
      %v1217 = vadd.f32 %v1064, %v1155
      %v1218 = vadd.f32 %v1065, %v1157
      %v1219 = vadd.f32 %v1066, %v1205
      %v1224 = vunpack.c.l.b16 %v479
      %v1225 = vunpack.c.l.b16 %v480
      %v1226 = vunpack.c.l.b16 %v481
      %v1227 = vunpack.c.l.b16 %v482
      %v1228 = vpack.c.b16 %v1225, %v1224
      %v1229 = vpack.c.b16 %v1227, %v1226
      %1230 = vrot.lane.b32.xlu0 %v453, 108
      %v1231 = vpop.permute.xlu0 %1230
      %1232 = vrot.lane.b32.xlu0 %v454, 108
      %v1233 = vpop.permute.xlu0 %1232
      %1234 = vrot.lane.b32.xlu0 %v455, 108
      %v1235 = vpop.permute.xlu0 %1234
      %1236 = vrot.lane.b32.xlu0 %v456, 108
      %v1237 = vpop.permute.xlu0 %1236
      %1238 = vrot.lane.b32.xlu0 %v457, 108
      %v1239 = vpop.permute.xlu0 %1238
      %1240 = vrot.lane.b32.xlu0 %v458, 108
      %v1241 = vpop.permute.xlu0 %1240
      %vm1242 = vcmask 883712
      %v1243 = vsel %vm1242, %v1231, %v1233
      %v1244 = vsel %vm1242, %v1233, %v1235
      %v1245 = vsel %vm1242, %v1237, %v1239
      %v1246 = vsel %vm1242, %v1239, %v1241
      %v1254 = vsel %vm534, %v1228, 0
      %v1257 = vsel %vm534, %v1229, 0
      %1259 = vmatprep.subr.bf16.mxu0 %v1244
      %1260 = vmatpush1.bf16.msra.mxu0 %v1243
      %1261 = vmatprep.subr.bf16.mxu0 %v1246
      %1262 = vmatpush1.bf16.msra.mxu0 %v1245
      %1263 = vmatprep.subr.bf16.mxu0 0
      %1264 = vmatpush1.bf16.msra.mxu0 0
      %1265 = vmatprep.subr.bf16.mxu0 0
      %1266 = vmatpush1.bf16.msra.mxu0 0
      %1267 = vmatprep.subr.bf16.mxu0 0
      %1268 = vmatpush1.bf16.msra.mxu0 0
      %1269 = vmatprep.subr.bf16.mxu0 0
      %1270 = vmatpush1.bf16.msra.mxu0 0
      %1271 = vmatprep.subr.bf16.mxu0 0
      %1272 = vmatpush1.bf16.msra.mxu0 0
      %1273 = vmatprep.subr.bf16.mxu0 0
      %1274 = vmatpush1.bf16.msra.mxu0 0
      %1275 = vmatprep.subr.bf16.mxu0 0
      %1276 = vmatpush1.bf16.msra.mxu0 0
      %1277 = vmatprep.subr.bf16.mxu0 0
      %1278 = vmatpush1.bf16.msra.mxu0 0
      %1279 = vmatprep.subr.bf16.mxu0 0
      %1280 = vmatpush1.bf16.msra.mxu0 0
      %1281 = vmatprep.subr.bf16.mxu0 0
      %1282 = vmatpush1.bf16.msra.mxu0 0
      %1283 = vmatprep.subr.bf16.mxu0 0
      %1284 = vmatpush1.bf16.msra.mxu0 0
      %1285 = vmatprep.subr.bf16.mxu0 0
      %1286 = vmatpush1.bf16.msra.mxu0 0
      %1287 = vmatprep.subr.bf16.mxu0 0
      %1288 = vmatpush1.bf16.msra.mxu0 0
      %1289 = vmatprep.subr.bf16.mxu0 0
      %1290 = vmatpush1.bf16.msra.mxu0 0
      %1291 = vmatprep.mubr.bf16.mxu0 0
      %1292 = vmatmul.mubr.bf16.gmra.mrb[0].mxu0 %v1254
      %v1293 = vpop.f32.mrb[0].mxu0
      %v1294 = vadd.f32 0.0, %v1293
      %v1295 = vpop.f32.mrb[0].mxu0
      %v1296 = vadd.f32 0.0, %v1295
      %v1297 = vpop.f32.mrb[0].mxu0
      %v1298 = vadd.f32 0.0, %v1297
      %v1299 = vpop.f32.mrb[0].mxu0
      %v1300 = vadd.f32 0.0, %v1299
      %1301 = vmatprep.mubr.bf16.mxu0 0
      %1302 = vmatmul.mubr.bf16.gmra.mrb[0].mxu0 %v1257
      %v1303 = vpop.f32.mrb[0].mxu0
      %v1304 = vadd.f32 0.0, %v1303
      %v1305 = vpop.f32.mrb[0].mxu0
      %v1306 = vadd.f32 0.0, %v1305
      %v1307 = vpop.f32.mrb[0].mxu0
      %v1308 = vadd.f32 0.0, %v1307
      %v1309 = vpop.f32.mrb[0].mxu0
      %v1310 = vadd.f32 0.0, %v1309
      %1311 = vdwg.mxu0
      %1312 = vmatprep.subr.bf16.mxu0 0
      %1313 = vmatpush1.bf16.msra.mxu0 %v1235
      %1314 = vmatprep.subr.bf16.mxu0 0
      %1315 = vmatpush1.bf16.msra.mxu0 %v1241
      %1316 = vmatprep.subr.bf16.mxu0 0
      %1317 = vmatpush1.bf16.msra.mxu0 0
      %1318 = vmatprep.subr.bf16.mxu0 0
      %1319 = vmatpush1.bf16.msra.mxu0 0
      %1320 = vmatprep.subr.bf16.mxu0 0
      %1321 = vmatpush1.bf16.msra.mxu0 0
      %1322 = vmatprep.subr.bf16.mxu0 0
      %1323 = vmatpush1.bf16.msra.mxu0 0
      %1324 = vmatprep.subr.bf16.mxu0 0
      %1325 = vmatpush1.bf16.msra.mxu0 0
      %1326 = vmatprep.subr.bf16.mxu0 0
      %1327 = vmatpush1.bf16.msra.mxu0 0
      %1328 = vmatprep.subr.bf16.mxu0 0
      %1329 = vmatpush1.bf16.msra.mxu0 0
      %1330 = vmatprep.subr.bf16.mxu0 0
      %1331 = vmatpush1.bf16.msra.mxu0 0
      %1332 = vmatprep.subr.bf16.mxu0 0
      %1333 = vmatpush1.bf16.msra.mxu0 0
      %1334 = vmatprep.subr.bf16.mxu0 0
      %1335 = vmatpush1.bf16.msra.mxu0 0
      %1336 = vmatprep.subr.bf16.mxu0 0
      %1337 = vmatpush1.bf16.msra.mxu0 0
      %1338 = vmatprep.subr.bf16.mxu0 0
      %1339 = vmatpush1.bf16.msra.mxu0 0
      %1340 = vmatprep.subr.bf16.mxu0 0
      %1341 = vmatpush1.bf16.msra.mxu0 0
      %1342 = vmatprep.subr.bf16.mxu0 0
      %1343 = vmatpush1.bf16.msra.mxu0 0
      %1344 = vmatprep.mubr.bf16.mxu0 0
      %1345 = vmatmul.mubr.bf16.gmra.mrb[0].mxu0 %v1254
      %v1346 = vpop.f32.mrb[0].mxu0
      %v1347 = vadd.f32 0.0, %v1346
      %v1348 = vpop.f32.mrb[0].mxu0
      %v1349 = vpop.f32.mrb[0].mxu0
      %v1350 = vadd.f32 0.0, %v1349
      %v1351 = vpop.f32.mrb[0].mxu0
      %1352 = vmatprep.mubr.bf16.mxu0 0
      %1353 = vmatmul.mubr.bf16.gmra.mrb[0].mxu0 %v1257
      %v1354 = vpop.f32.mrb[0].mxu0
      %v1355 = vadd.f32 0.0, %v1354
      %v1356 = vpop.f32.mrb[0].mxu0
      %v1357 = vpop.f32.mrb[0].mxu0
      %v1358 = vadd.f32 0.0, %v1357
      %v1359 = vpop.f32.mrb[0].mxu0
      %1360 = vdwg.mxu0
      %v1361 = vadd.f32 %v1208, %v1294
      %v1362 = vadd.f32 %v1209, %v1296
      %v1363 = vadd.f32 %v1210, %v1347
      %v1364 = vadd.f32 %v1211, %v1298
      %v1365 = vadd.f32 %v1212, %v1300
      %v1366 = vadd.f32 %v1213, %v1350
      %v1367 = vadd.f32 %v1214, %v1304
      %v1368 = vadd.f32 %v1215, %v1306
      %v1369 = vadd.f32 %v1216, %v1355
      %v1370 = vadd.f32 %v1217, %v1308
      %v1371 = vadd.f32 %v1218, %v1310
      %v1372 = vadd.f32 %v1219, %v1358
      %v1377 = vunpack.c.l.b16 %v483
      %v1378 = vunpack.c.l.b16 %v484
      %v1379 = vunpack.c.l.b16 %v485
      %v1380 = vunpack.c.l.b16 %v486
      %v1381 = vpack.c.b16 %v1378, %v1377
      %v1382 = vpack.c.b16 %v1380, %v1379
      %1383 = vrot.lane.b32.xlu0 %v453, 92
      %v1384 = vpop.permute.xlu0 %1383
      %1385 = vrot.lane.b32.xlu0 %v454, 92
      %v1386 = vpop.permute.xlu0 %1385
      %1387 = vrot.lane.b32.xlu0 %v455, 92
      %v1388 = vpop.permute.xlu0 %1387
      %1389 = vrot.lane.b32.xlu0 %v456, 92
      %v1390 = vpop.permute.xlu0 %1389
      %1391 = vrot.lane.b32.xlu0 %v457, 92
      %v1392 = vpop.permute.xlu0 %1391
      %1393 = vrot.lane.b32.xlu0 %v458, 92
      %v1394 = vpop.permute.xlu0 %1393
      %vm1395 = vcmask 752640
      %v1396 = vsel %vm1395, %v1384, %v1386
      %v1397 = vsel %vm1395, %v1386, %v1388
      %v1398 = vsel %vm1395, %v1390, %v1392
      %v1399 = vsel %vm1395, %v1392, %v1394
      %v1407 = vsel %vm534, %v1381, 0
      %v1410 = vsel %vm534, %v1382, 0
      %1412 = vmatprep.subr.bf16.mxu0 %v1397
      %1413 = vmatpush1.bf16.msra.mxu0 %v1396
      %1414 = vmatprep.subr.bf16.mxu0 %v1399
      %1415 = vmatpush1.bf16.msra.mxu0 %v1398
      %1416 = vmatprep.subr.bf16.mxu0 0
      %1417 = vmatpush1.bf16.msra.mxu0 0
      %1418 = vmatprep.subr.bf16.mxu0 0
      %1419 = vmatpush1.bf16.msra.mxu0 0
      %1420 = vmatprep.subr.bf16.mxu0 0
      %1421 = vmatpush1.bf16.msra.mxu0 0
      %1422 = vmatprep.subr.bf16.mxu0 0
      %1423 = vmatpush1.bf16.msra.mxu0 0
      %1424 = vmatprep.subr.bf16.mxu0 0
      %1425 = vmatpush1.bf16.msra.mxu0 0
      %1426 = vmatprep.subr.bf16.mxu0 0
      %1427 = vmatpush1.bf16.msra.mxu0 0
      %1428 = vmatprep.subr.bf16.mxu0 0
      %1429 = vmatpush1.bf16.msra.mxu0 0
      %1430 = vmatprep.subr.bf16.mxu0 0
      %1431 = vmatpush1.bf16.msra.mxu0 0
      %1432 = vmatprep.subr.bf16.mxu0 0
      %1433 = vmatpush1.bf16.msra.mxu0 0
      %1434 = vmatprep.subr.bf16.mxu0 0
      %1435 = vmatpush1.bf16.msra.mxu0 0
      %1436 = vmatprep.subr.bf16.mxu0 0
      %1437 = vmatpush1.bf16.msra.mxu0 0
      %1438 = vmatprep.subr.bf16.mxu0 0
      %1439 = vmatpush1.bf16.msra.mxu0 0
      %1440 = vmatprep.subr.bf16.mxu0 0
      %1441 = vmatpush1.bf16.msra.mxu0 0
      %1442 = vmatprep.subr.bf16.mxu0 0
      %1443 = vmatpush1.bf16.msra.mxu0 0
      %1444 = vmatprep.mubr.bf16.mxu0 0
      %1445 = vmatmul.mubr.bf16.gmra.mrb[0].mxu0 %v1407
      %v1446 = vpop.f32.mrb[0].mxu0
      %v1447 = vadd.f32 0.0, %v1446
      %v1448 = vpop.f32.mrb[0].mxu0
      %v1449 = vadd.f32 0.0, %v1448
      %v1450 = vpop.f32.mrb[0].mxu0
      %v1451 = vadd.f32 0.0, %v1450
      %v1452 = vpop.f32.mrb[0].mxu0
      %v1453 = vadd.f32 0.0, %v1452
      %1454 = vmatprep.mubr.bf16.mxu0 0
      %1455 = vmatmul.mubr.bf16.gmra.mrb[0].mxu0 %v1410
      %v1456 = vpop.f32.mrb[0].mxu0
      %v1457 = vadd.f32 0.0, %v1456
      %v1458 = vpop.f32.mrb[0].mxu0
      %v1459 = vadd.f32 0.0, %v1458
      %v1460 = vpop.f32.mrb[0].mxu0
      %v1461 = vadd.f32 0.0, %v1460
      %v1462 = vpop.f32.mrb[0].mxu0
      %v1463 = vadd.f32 0.0, %v1462
      %1464 = vdwg.mxu0
      %1465 = vmatprep.subr.bf16.mxu0 0
      %1466 = vmatpush1.bf16.msra.mxu0 %v1388
      %1467 = vmatprep.subr.bf16.mxu0 0
      %1468 = vmatpush1.bf16.msra.mxu0 %v1394
      %1469 = vmatprep.subr.bf16.mxu0 0
      %1470 = vmatpush1.bf16.msra.mxu0 0
      %1471 = vmatprep.subr.bf16.mxu0 0
      %1472 = vmatpush1.bf16.msra.mxu0 0
      %1473 = vmatprep.subr.bf16.mxu0 0
      %1474 = vmatpush1.bf16.msra.mxu0 0
      %1475 = vmatprep.subr.bf16.mxu0 0
      %1476 = vmatpush1.bf16.msra.mxu0 0
      %1477 = vmatprep.subr.bf16.mxu0 0
      %1478 = vmatpush1.bf16.msra.mxu0 0
      %1479 = vmatprep.subr.bf16.mxu0 0
      %1480 = vmatpush1.bf16.msra.mxu0 0
      %1481 = vmatprep.subr.bf16.mxu0 0
      %1482 = vmatpush1.bf16.msra.mxu0 0
      %1483 = vmatprep.subr.bf16.mxu0 0
      %1484 = vmatpush1.bf16.msra.mxu0 0
      %1485 = vmatprep.subr.bf16.mxu0 0
      %1486 = vmatpush1.bf16.msra.mxu0 0
      %1487 = vmatprep.subr.bf16.mxu0 0
      %1488 = vmatpush1.bf16.msra.mxu0 0
      %1489 = vmatprep.subr.bf16.mxu0 0
      %1490 = vmatpush1.bf16.msra.mxu0 0
      %1491 = vmatprep.subr.bf16.mxu0 0
      %1492 = vmatpush1.bf16.msra.mxu0 0
      %1493 = vmatprep.subr.bf16.mxu0 0
      %1494 = vmatpush1.bf16.msra.mxu0 0
      %1495 = vmatprep.subr.bf16.mxu0 0
      %1496 = vmatpush1.bf16.msra.mxu0 0
      %1497 = vmatprep.mubr.bf16.mxu0 0
      %1498 = vmatmul.mubr.bf16.gmra.mrb[0].mxu0 %v1407
      %v1499 = vpop.f32.mrb[0].mxu0
      %v1500 = vadd.f32 0.0, %v1499
      %v1501 = vpop.f32.mrb[0].mxu0
      %v1502 = vpop.f32.mrb[0].mxu0
      %v1503 = vadd.f32 0.0, %v1502
      %v1504 = vpop.f32.mrb[0].mxu0
      %1505 = vmatprep.mubr.bf16.mxu0 0
      %1506 = vmatmul.mubr.bf16.gmra.mrb[0].mxu0 %v1410
      %v1507 = vpop.f32.mrb[0].mxu0
      %v1508 = vadd.f32 0.0, %v1507
      %v1509 = vpop.f32.mrb[0].mxu0
      %v1510 = vpop.f32.mrb[0].mxu0
      %v1511 = vadd.f32 0.0, %v1510
      %v1512 = vpop.f32.mrb[0].mxu0
      %1513 = vdwg.mxu0
      %v1514 = vadd.f32 %v1361, %v1447
      %v1515 = vadd.f32 %v1362, %v1449
      %v1516 = vadd.f32 %v1363, %v1500
      %v1517 = vadd.f32 %v1364, %v1451
      %v1518 = vadd.f32 %v1365, %v1453
      %v1519 = vadd.f32 %v1366, %v1503
      %v1520 = vadd.f32 %v1367, %v1457
      %v1521 = vadd.f32 %v1368, %v1459
      %v1522 = vadd.f32 %v1369, %v1508
      %v1523 = vadd.f32 %v1370, %v1461
      %v1524 = vadd.f32 %v1371, %v1463
      %v1525 = vadd.f32 %v1372, %v1511
      %v1530 = vunpack.c.l.b16 %v487
      %v1531 = vunpack.c.l.b16 %v488
      %v1532 = vunpack.c.l.b16 %v489
      %v1533 = vunpack.c.l.b16 %v490
      %v1534 = vpack.c.b16 %v1531, %v1530
      %v1535 = vpack.c.b16 %v1533, %v1532
      %1536 = vrot.lane.b32.xlu0 %v453, 91
      %v1537 = vpop.permute.xlu0 %1536
      %1538 = vrot.lane.b32.xlu0 %v454, 91
      %v1539 = vpop.permute.xlu0 %1538
      %1540 = vrot.lane.b32.xlu0 %v455, 91
      %v1541 = vpop.permute.xlu0 %1540
      %1542 = vrot.lane.b32.xlu0 %v456, 91
      %v1543 = vpop.permute.xlu0 %1542
      %1544 = vrot.lane.b32.xlu0 %v457, 91
      %v1545 = vpop.permute.xlu0 %1544
      %1546 = vrot.lane.b32.xlu0 %v458, 91
      %v1547 = vpop.permute.xlu0 %1546
      %vm1548 = vcmask 744448
      %v1549 = vsel %vm1548, %v1537, %v1539
      %v1550 = vsel %vm1548, %v1539, %v1541
      %v1551 = vsel %vm1548, %v1543, %v1545
      %v1552 = vsel %vm1548, %v1545, %v1547
      %v1560 = vsel %vm534, %v1534, 0
      %v1563 = vsel %vm534, %v1535, 0
      %1565 = vmatprep.subr.bf16.mxu0 %v1550
      %1566 = vmatpush1.bf16.msra.mxu0 %v1549
      %1567 = vmatprep.subr.bf16.mxu0 %v1552
      %1568 = vmatpush1.bf16.msra.mxu0 %v1551
      %1569 = vmatprep.subr.bf16.mxu0 0
      %1570 = vmatpush1.bf16.msra.mxu0 0
      %1571 = vmatprep.subr.bf16.mxu0 0
      %1572 = vmatpush1.bf16.msra.mxu0 0
      %1573 = vmatprep.subr.bf16.mxu0 0
      %1574 = vmatpush1.bf16.msra.mxu0 0
      %1575 = vmatprep.subr.bf16.mxu0 0
      %1576 = vmatpush1.bf16.msra.mxu0 0
      %1577 = vmatprep.subr.bf16.mxu0 0
      %1578 = vmatpush1.bf16.msra.mxu0 0
      %1579 = vmatprep.subr.bf16.mxu0 0
      %1580 = vmatpush1.bf16.msra.mxu0 0
      %1581 = vmatprep.subr.bf16.mxu0 0
      %1582 = vmatpush1.bf16.msra.mxu0 0
      %1583 = vmatprep.subr.bf16.mxu0 0
      %1584 = vmatpush1.bf16.msra.mxu0 0
      %1585 = vmatprep.subr.bf16.mxu0 0
      %1586 = vmatpush1.bf16.msra.mxu0 0
      %1587 = vmatprep.subr.bf16.mxu0 0
      %1588 = vmatpush1.bf16.msra.mxu0 0
      %1589 = vmatprep.subr.bf16.mxu0 0
      %1590 = vmatpush1.bf16.msra.mxu0 0
      %1591 = vmatprep.subr.bf16.mxu0 0
      %1592 = vmatpush1.bf16.msra.mxu0 0
      %1593 = vmatprep.subr.bf16.mxu0 0
      %1594 = vmatpush1.bf16.msra.mxu0 0
      %1595 = vmatprep.subr.bf16.mxu0 0
      %1596 = vmatpush1.bf16.msra.mxu0 0
      %1597 = vmatprep.mubr.bf16.mxu0 0
      %1598 = vmatmul.mubr.bf16.gmra.mrb[0].mxu0 %v1560
      %v1599 = vpop.f32.mrb[0].mxu0
      %v1600 = vadd.f32 0.0, %v1599
      %v1601 = vpop.f32.mrb[0].mxu0
      %v1602 = vadd.f32 0.0, %v1601
      %v1603 = vpop.f32.mrb[0].mxu0
      %v1604 = vadd.f32 0.0, %v1603
      %v1605 = vpop.f32.mrb[0].mxu0
      %v1606 = vadd.f32 0.0, %v1605
      %1607 = vmatprep.mubr.bf16.mxu0 0
      %1608 = vmatmul.mubr.bf16.gmra.mrb[0].mxu0 %v1563
      %v1609 = vpop.f32.mrb[0].mxu0
      %v1610 = vadd.f32 0.0, %v1609
      %v1611 = vpop.f32.mrb[0].mxu0
      %v1612 = vadd.f32 0.0, %v1611
      %v1613 = vpop.f32.mrb[0].mxu0
      %v1614 = vadd.f32 0.0, %v1613
      %v1615 = vpop.f32.mrb[0].mxu0
      %v1616 = vadd.f32 0.0, %v1615
      %1617 = vdwg.mxu0
      %1618 = vmatprep.subr.bf16.mxu0 0
      %1619 = vmatpush1.bf16.msra.mxu0 %v1541
      %1620 = vmatprep.subr.bf16.mxu0 0
      %1621 = vmatpush1.bf16.msra.mxu0 %v1547
      %1622 = vmatprep.subr.bf16.mxu0 0
      %1623 = vmatpush1.bf16.msra.mxu0 0
      %1624 = vmatprep.subr.bf16.mxu0 0
      %1625 = vmatpush1.bf16.msra.mxu0 0
      %1626 = vmatprep.subr.bf16.mxu0 0
      %1627 = vmatpush1.bf16.msra.mxu0 0
      %1628 = vmatprep.subr.bf16.mxu0 0
      %1629 = vmatpush1.bf16.msra.mxu0 0
      %1630 = vmatprep.subr.bf16.mxu0 0
      %1631 = vmatpush1.bf16.msra.mxu0 0
      %1632 = vmatprep.subr.bf16.mxu0 0
      %1633 = vmatpush1.bf16.msra.mxu0 0
      %1634 = vmatprep.subr.bf16.mxu0 0
      %1635 = vmatpush1.bf16.msra.mxu0 0
      %1636 = vmatprep.subr.bf16.mxu0 0
      %1637 = vmatpush1.bf16.msra.mxu0 0
      %1638 = vmatprep.subr.bf16.mxu0 0
      %1639 = vmatpush1.bf16.msra.mxu0 0
      %1640 = vmatprep.subr.bf16.mxu0 0
      %1641 = vmatpush1.bf16.msra.mxu0 0
      %1642 = vmatprep.subr.bf16.mxu0 0
      %1643 = vmatpush1.bf16.msra.mxu0 0
      %1644 = vmatprep.subr.bf16.mxu0 0
      %1645 = vmatpush1.bf16.msra.mxu0 0
      %1646 = vmatprep.subr.bf16.mxu0 0
      %1647 = vmatpush1.bf16.msra.mxu0 0
      %1648 = vmatprep.subr.bf16.mxu0 0
      %1649 = vmatpush1.bf16.msra.mxu0 0
      %1650 = vmatprep.mubr.bf16.mxu0 0
      %1651 = vmatmul.mubr.bf16.gmra.mrb[0].mxu0 %v1560
      %v1652 = vpop.f32.mrb[0].mxu0
      %v1653 = vadd.f32 0.0, %v1652
      %v1654 = vpop.f32.mrb[0].mxu0
      %v1655 = vpop.f32.mrb[0].mxu0
      %v1656 = vadd.f32 0.0, %v1655
      %v1657 = vpop.f32.mrb[0].mxu0
      %1658 = vmatprep.mubr.bf16.mxu0 0
      %1659 = vmatmul.mubr.bf16.gmra.mrb[0].mxu0 %v1563
      %v1660 = vpop.f32.mrb[0].mxu0
      %v1661 = vadd.f32 0.0, %v1660
      %v1662 = vpop.f32.mrb[0].mxu0
      %v1663 = vpop.f32.mrb[0].mxu0
      %v1664 = vadd.f32 0.0, %v1663
      %v1665 = vpop.f32.mrb[0].mxu0
      %1666 = vdwg.mxu0
      %v1667 = vadd.f32 %v1514, %v1600
      %v1668 = vadd.f32 %v1515, %v1602
      %v1669 = vadd.f32 %v1516, %v1653
      %v1670 = vadd.f32 %v1517, %v1604
      %v1671 = vadd.f32 %v1518, %v1606
      %v1672 = vadd.f32 %v1519, %v1656
      %v1673 = vadd.f32 %v1520, %v1610
      %v1674 = vadd.f32 %v1521, %v1612
      %v1675 = vadd.f32 %v1522, %v1661
      %v1676 = vadd.f32 %v1523, %v1614
      %v1677 = vadd.f32 %v1524, %v1616
      %v1678 = vadd.f32 %v1525, %v1664
      %v1683 = vunpack.c.l.b16 %v491
      %v1684 = vunpack.c.l.b16 %v492
      %v1685 = vunpack.c.l.b16 %v493
      %v1686 = vunpack.c.l.b16 %v494
      %v1687 = vpack.c.b16 %v1684, %v1683
      %v1688 = vpack.c.b16 %v1686, %v1685
      %1689 = vrot.lane.b32.xlu0 %v453, 90
      %v1690 = vpop.permute.xlu0 %1689
      %1691 = vrot.lane.b32.xlu0 %v454, 90
      %v1692 = vpop.permute.xlu0 %1691
      %1693 = vrot.lane.b32.xlu0 %v455, 90
      %v1694 = vpop.permute.xlu0 %1693
      %1695 = vrot.lane.b32.xlu0 %v456, 90
      %v1696 = vpop.permute.xlu0 %1695
      %1697 = vrot.lane.b32.xlu0 %v457, 90
      %v1698 = vpop.permute.xlu0 %1697
      %1699 = vrot.lane.b32.xlu0 %v458, 90
      %v1700 = vpop.permute.xlu0 %1699
      %vm1701 = vcmask 736256
      %v1702 = vsel %vm1701, %v1690, %v1692
      %v1703 = vsel %vm1701, %v1692, %v1694
      %v1704 = vsel %vm1701, %v1696, %v1698
      %v1705 = vsel %vm1701, %v1698, %v1700
      %v1713 = vsel %vm534, %v1687, 0
      %v1716 = vsel %vm534, %v1688, 0
      %1718 = vmatprep.subr.bf16.mxu0 %v1703
      %1719 = vmatpush1.bf16.msra.mxu0 %v1702
      %1720 = vmatprep.subr.bf16.mxu0 %v1705
      %1721 = vmatpush1.bf16.msra.mxu0 %v1704
      %1722 = vmatprep.subr.bf16.mxu0 0
      %1723 = vmatpush1.bf16.msra.mxu0 0
      %1724 = vmatprep.subr.bf16.mxu0 0
      %1725 = vmatpush1.bf16.msra.mxu0 0
      %1726 = vmatprep.subr.bf16.mxu0 0
      %1727 = vmatpush1.bf16.msra.mxu0 0
      %1728 = vmatprep.subr.bf16.mxu0 0
      %1729 = vmatpush1.bf16.msra.mxu0 0
      %1730 = vmatprep.subr.bf16.mxu0 0
      %1731 = vmatpush1.bf16.msra.mxu0 0
      %1732 = vmatprep.subr.bf16.mxu0 0
      %1733 = vmatpush1.bf16.msra.mxu0 0
      %1734 = vmatprep.subr.bf16.mxu0 0
      %1735 = vmatpush1.bf16.msra.mxu0 0
      %1736 = vmatprep.subr.bf16.mxu0 0
      %1737 = vmatpush1.bf16.msra.mxu0 0
      %1738 = vmatprep.subr.bf16.mxu0 0
      %1739 = vmatpush1.bf16.msra.mxu0 0
      %1740 = vmatprep.subr.bf16.mxu0 0
      %1741 = vmatpush1.bf16.msra.mxu0 0
      %1742 = vmatprep.subr.bf16.mxu0 0
      %1743 = vmatpush1.bf16.msra.mxu0 0
      %1744 = vmatprep.subr.bf16.mxu0 0
      %1745 = vmatpush1.bf16.msra.mxu0 0
      %1746 = vmatprep.subr.bf16.mxu0 0
      %1747 = vmatpush1.bf16.msra.mxu0 0
      %1748 = vmatprep.subr.bf16.mxu0 0
      %1749 = vmatpush1.bf16.msra.mxu0 0
      %1750 = vmatprep.mubr.bf16.mxu0 0
      %1751 = vmatmul.mubr.bf16.gmra.mrb[0].mxu0 %v1713
      %v1752 = vpop.f32.mrb[0].mxu0
      %v1753 = vadd.f32 0.0, %v1752
      %v1754 = vpop.f32.mrb[0].mxu0
      %v1755 = vadd.f32 0.0, %v1754
      %v1756 = vpop.f32.mrb[0].mxu0
      %v1757 = vadd.f32 0.0, %v1756
      %v1758 = vpop.f32.mrb[0].mxu0
      %v1759 = vadd.f32 0.0, %v1758
      %1760 = vmatprep.mubr.bf16.mxu0 0
      %1761 = vmatmul.mubr.bf16.gmra.mrb[0].mxu0 %v1716
      %v1762 = vpop.f32.mrb[0].mxu0
      %v1763 = vadd.f32 0.0, %v1762
      %v1764 = vpop.f32.mrb[0].mxu0
      %v1765 = vadd.f32 0.0, %v1764
      %v1766 = vpop.f32.mrb[0].mxu0
      %v1767 = vadd.f32 0.0, %v1766
      %v1768 = vpop.f32.mrb[0].mxu0
      %v1769 = vadd.f32 0.0, %v1768
      %1770 = vdwg.mxu0
      %1771 = vmatprep.subr.bf16.mxu0 0
      %1772 = vmatpush1.bf16.msra.mxu0 %v1694
      %1773 = vmatprep.subr.bf16.mxu0 0
      %1774 = vmatpush1.bf16.msra.mxu0 %v1700
      %1775 = vmatprep.subr.bf16.mxu0 0
      %1776 = vmatpush1.bf16.msra.mxu0 0
      %1777 = vmatprep.subr.bf16.mxu0 0
      %1778 = vmatpush1.bf16.msra.mxu0 0
      %1779 = vmatprep.subr.bf16.mxu0 0
      %1780 = vmatpush1.bf16.msra.mxu0 0
      %1781 = vmatprep.subr.bf16.mxu0 0
      %1782 = vmatpush1.bf16.msra.mxu0 0
      %1783 = vmatprep.subr.bf16.mxu0 0
      %1784 = vmatpush1.bf16.msra.mxu0 0
      %1785 = vmatprep.subr.bf16.mxu0 0
      %1786 = vmatpush1.bf16.msra.mxu0 0
      %1787 = vmatprep.subr.bf16.mxu0 0
      %1788 = vmatpush1.bf16.msra.mxu0 0
      %1789 = vmatprep.subr.bf16.mxu0 0
      %1790 = vmatpush1.bf16.msra.mxu0 0
      %1791 = vmatprep.subr.bf16.mxu0 0
      %1792 = vmatpush1.bf16.msra.mxu0 0
      %1793 = vmatprep.subr.bf16.mxu0 0
      %1794 = vmatpush1.bf16.msra.mxu0 0
      %1795 = vmatprep.subr.bf16.mxu0 0
      %1796 = vmatpush1.bf16.msra.mxu0 0
      %1797 = vmatprep.subr.bf16.mxu0 0
      %1798 = vmatpush1.bf16.msra.mxu0 0
      %1799 = vmatprep.subr.bf16.mxu0 0
      %1800 = vmatpush1.bf16.msra.mxu0 0
      %1801 = vmatprep.subr.bf16.mxu0 0
      %1802 = vmatpush1.bf16.msra.mxu0 0
      %1803 = vmatprep.mubr.bf16.mxu0 0
      %1804 = vmatmul.mubr.bf16.gmra.mrb[0].mxu0 %v1713
      %v1805 = vpop.f32.mrb[0].mxu0
      %v1806 = vadd.f32 0.0, %v1805
      %v1807 = vpop.f32.mrb[0].mxu0
      %v1808 = vpop.f32.mrb[0].mxu0
      %v1809 = vadd.f32 0.0, %v1808
      %v1810 = vpop.f32.mrb[0].mxu0
      %1811 = vmatprep.mubr.bf16.mxu0 0
      %1812 = vmatmul.mubr.bf16.gmra.mrb[0].mxu0 %v1716
      %v1813 = vpop.f32.mrb[0].mxu0
      %v1814 = vadd.f32 0.0, %v1813
      %v1815 = vpop.f32.mrb[0].mxu0
      %v1816 = vpop.f32.mrb[0].mxu0
      %v1817 = vadd.f32 0.0, %v1816
      %v1818 = vpop.f32.mrb[0].mxu0
      %1819 = vdwg.mxu0
      %v1820 = vadd.f32 %v1667, %v1753
      %v1821 = vadd.f32 %v1668, %v1755
      %v1822 = vadd.f32 %v1669, %v1806
      %v1823 = vadd.f32 %v1670, %v1757
      %v1824 = vadd.f32 %v1671, %v1759
      %v1825 = vadd.f32 %v1672, %v1809
      %v1826 = vadd.f32 %v1673, %v1763
      %v1827 = vadd.f32 %v1674, %v1765
      %v1828 = vadd.f32 %v1675, %v1814
      %v1829 = vadd.f32 %v1676, %v1767
      %v1830 = vadd.f32 %v1677, %v1769
      %v1831 = vadd.f32 %v1678, %v1817
      %1832 = vst [vmem:[%s222] sm:$0xff] %v1820
      %1833 = vst [vmem:[%s222 + $0x8] sm:$0xff] %v1821
      %1834 = vst.msk [vmem:[%s222 + $0x10] sm:$0xff] %vm534, %v1822
      %1835 = vst [vmem:[%s222 + $0x18] sm:$0xff] %v1823
      %1836 = vst [vmem:[%s222 + $0x20] sm:$0xff] %v1824
      %1837 = vst.msk [vmem:[%s222 + $0x28] sm:$0xff] %vm534, %v1825
      %1838 = vst [vmem:[%s222 + $0x30] sm:$0xff] %v1826
      %1839 = vst [vmem:[%s222 + $0x38] sm:$0xff] %v1827
      %1840 = vst.msk [vmem:[%s222 + $0x40] sm:$0xff] %vm534, %v1828
      %1841 = vst [vmem:[%s222 + $0x48] sm:$0xff] %v1829
      %1842 = vst [vmem:[%s222 + $0x50] sm:$0xff] %v1830
      %1843 = vst.msk [vmem:[%s222 + $0x58] sm:$0xff] %vm534, %v1831
      %v1844 = vsel %vm372, %v1820, 0.0
      %v1845 = vsel %vm373, %v1821, 0.0
      %v1846 = vsel %vm374, %v1822, 0.0
      %v1847 = vsel %vm372, %v1823, 0.0
      %v1848 = vsel %vm373, %v1824, 0.0
      %v1849 = vsel %vm374, %v1825, 0.0
      %v1850 = vsel %vm372, %v1826, 0.0
      %v1851 = vsel %vm373, %v1827, 0.0
      %v1852 = vsel %vm374, %v1828, 0.0
      %v1853 = vsel %vm372, %v1829, 0.0
      %v1854 = vsel %vm373, %v1830, 0.0
      %v1855 = vsel %vm374, %v1831, 0.0
      %v1856 = vadd.f32 %v1844, %v1845
      %v1857 = vsel %vm534, %v1846, 0.0
      %v1858 = vadd.f32 %v1856, %v1857
      %1859 = vadd.xlane.f32.xlu0 %v1858
      %v1860 = vpop.xlane.xlu0 %1859
      %v1861 = vadd.f32 %v1847, %v1848
      %v1862 = vsel %vm534, %v1849, 0.0
      %v1863 = vadd.f32 %v1861, %v1862
      %1864 = vadd.xlane.f32.xlu0 %v1863
      %v1865 = vpop.xlane.xlu0 %1864
      %v1866 = vadd.f32 %v1850, %v1851
      %v1867 = vsel %vm534, %v1852, 0.0
      %v1868 = vadd.f32 %v1866, %v1867
      %1869 = vadd.xlane.f32.xlu0 %v1868
      %v1870 = vpop.xlane.xlu0 %1869
      %v1871 = vadd.f32 %v1853, %v1854
      %v1872 = vsel %vm534, %v1855, 0.0
      %v1873 = vadd.f32 %v1871, %v1872
      %1874 = vadd.xlane.f32.xlu0 %v1873
      %v1875 = vpop.xlane.xlu0 %1874
      %v1876 = vmul.f32 %v1844, %v1844
      %v1877 = vmul.f32 %v1845, %v1845
      %v1878 = vmul.f32 %v1846, %v1846
      %v1879 = vmul.f32 %v1847, %v1847
      %v1880 = vmul.f32 %v1848, %v1848
      %v1881 = vmul.f32 %v1849, %v1849
      %v1882 = vmul.f32 %v1850, %v1850
      %v1883 = vmul.f32 %v1851, %v1851
      %v1884 = vmul.f32 %v1852, %v1852
      %v1885 = vmul.f32 %v1853, %v1853
      %v1886 = vmul.f32 %v1854, %v1854
      %v1887 = vmul.f32 %v1855, %v1855
      %v1888 = vadd.f32 %v1876, %v1877
      %v1889 = vsel %vm534, %v1878, 0.0
      %v1890 = vadd.f32 %v1888, %v1889
      %1891 = vadd.xlane.f32.xlu0 %v1890
      %v1892 = vpop.xlane.xlu0 %1891
      %v1893 = vadd.f32 %v1879, %v1880
      %v1894 = vsel %vm534, %v1881, 0.0
      %v1895 = vadd.f32 %v1893, %v1894
      %1896 = vadd.xlane.f32.xlu0 %v1895
      %v1897 = vpop.xlane.xlu0 %1896
      %v1898 = vadd.f32 %v1882, %v1883
      %v1899 = vsel %vm534, %v1884, 0.0
      %v1900 = vadd.f32 %v1898, %v1899
      %1901 = vadd.xlane.f32.xlu0 %v1900
      %v1902 = vpop.xlane.xlu0 %1901
      %v1903 = vadd.f32 %v1885, %v1886
      %v1904 = vsel %vm534, %v1887, 0.0
      %v1905 = vadd.f32 %v1903, %v1904
      %1906 = vadd.xlane.f32.xlu0 %v1905
      %v1907 = vpop.xlane.xlu0 %1906
      %vm1908 = vcmask 7168
      %v1909 = vsel %vm1908, %v1860, %v1892
      %v1910 = vsel %vm1908, %v1865, %v1897
      %v1911 = vsel %vm1908, %v1870, %v1902
      %v1912 = vsel %vm1908, %v1875, %v1907
      %p1913 = scmp.eq.s32.totalorder %s17, 0
      // Predicated region
      $region37: #{down_forward.4} parent=35 // pred_check
        %p1914 = pneg %p1913
      $region38: #{down_forward.4} parent=35 // pred_check_branch
        %1916 = sbr.rel (%p1914) target = $region40
      $region39: #{down_forward.4} parent=35 // pred_region
        %vm1917 = vcmask 15360
        %1918 = vst.msk [vmem:[%s5] sm:$0xff] %vm1917, 0.0
        %1919 = vst.msk [vmem:[%s5 + $0x8] sm:$0xff] %vm1917, 0.0
        %1920 = vst.msk [vmem:[%s5 + $0x10] sm:$0xff] %vm1917, 0.0
        %1921 = vst.msk [vmem:[%s5 + $0x18] sm:$0xff] %vm1917, 0.0
      $region40: #{down_forward.4} parent=35 // pred_fallthru
        _
      %v1922 = vld [vmem:[%s5] sm:$0xff]
      %v1923 = vld [vmem:[%s5 + $0x8] sm:$0xff]
      %v1924 = vld [vmem:[%s5 + $0x10] sm:$0xff]
      %v1925 = vld [vmem:[%s5 + $0x18] sm:$0xff]
      %v1926 = vadd.f32 %v1922, %v1909
      %v1927 = vadd.f32 %v1923, %v1910
      %v1928 = vadd.f32 %v1924, %v1911
      %v1929 = vadd.f32 %v1925, %v1912
      %vm1930 = vcmask 15360
      %1931 = vst.msk [vmem:[%s5] sm:$0xff] %vm1930, %v1926
      %1932 = vst.msk [vmem:[%s5 + $0x8] sm:$0xff] %vm1930, %v1927
      %1933 = vst.msk [vmem:[%s5 + $0x10] sm:$0xff] %vm1930, %v1928
      %1934 = vst.msk [vmem:[%s5 + $0x18] sm:$0xff] %vm1930, %v1929
      %p1935 = scmp.lt.s32.totalorder %s17, 1
      %s1936 = scalar_select %p1935, %s17, 1
      %s1937 = smul.addr %s1936, 12
      %s1938 = smul.addr %s1937, 8
      %s1939 = scalar_lea.vmem %s4, %s1938
      // Predicated region
      $region41: #{down_forward.4} parent=35 // pred_check
        %p1940 = pneg %p124
      $region42: #{down_forward.4} parent=35 // pred_check_branch
        %1942 = sbr.rel (%p1940) target = $region44
      $region43: #{down_forward.4} parent=35 // pred_region
        _
      $region44: #{down_forward.4} parent=35 // pred_fallthru
        _
      // Predicated region
      $region45: #{down_forward.4} parent=35 // pred_check
        %p1943 = pneg %p145
      $region46: #{down_forward.4} parent=35 // pred_check_branch
        %1945 = sbr.rel (%p1943) target = $region48
      $region47: #{down_forward.4} parent=35 // pred_region
        _
      $region48: #{down_forward.4} parent=35 // pred_fallthru
        _
      // Predicated region
      $region49: #{down_forward.4} parent=35 // pred_check
        %p1946 = pneg %p145
      $region50: #{down_forward.4} parent=35 // pred_check_branch
        %1948 = sbr.rel (%p1946) target = $region52
      $region51: #{down_forward.4} parent=35 // pred_region
        _
      $region52: #{down_forward.4} parent=35 // pred_fallthru
        _
    $region36: #{down_forward.4} parent=5 // pred_fallthru
      _
    %p1949 = scmp.le.s32.totalorder 2, %s12
    // Predicated region
    $region53: #{down_forward.4} parent=5 // pred_check
      %p1950 = pneg %p1949
    $region54: #{down_forward.4} parent=5 // pred_check_branch
      %1952 = sbr.rel (%p1950) target = $region56
    $region55: #{down_forward.4} parent=5 // pred_region
      %s1953 = ssub.s32 %s12, 2
      // Predicated region
      $region57: #{down_forward.4} parent=55 // pred_check
        %p1954 = pneg %p130
      $region58: #{down_forward.4} parent=55 // pred_check_branch
        %1956 = sbr.rel (%p1954) target = $region60
      $region59: #{down_forward.4} parent=55 // pred_region
        %p1957 = scmp.lt.s32.totalorder %s18, 1
        %s1958 = scalar_select %p1957, %s18, 1
        %s1959 = smul.addr %s1958, 12
        %s1960 = smul.addr %s1959, 8
        %s1961 = scalar_lea.vmem %s4, %s1960
      $region60: #{down_forward.4} parent=55 // pred_fallthru
        _
    $region56: #{down_forward.4} parent=5 // pred_fallthru
      _
  $region6: #{down_forward.4} parent=0 // loop_footer
    %s16 = sadd.s32 1, %s12
  $region7: #{down_forward.4} parent=0 // loop_footer_branch
    %11 = sbr.rel target = $region3
  $region8: #{down_forward.4} parent=0 // loop_exit
    _

// kernel: down_forward.5
$region0: #{down_forward.5}
  #allocation0 [shape = 'u32[]', space=smem, size = 0x4, offset = 0x4, fixed_abs, tag = 'smem constant byte address 0x4 - core index']
  #allocation1 [shape = 'u32[144,128]{1,0:T(1,128)}', space=vmem, size = 0x12000, scoped, tag = 'internal scratch']
  %s0 = inlined_call_operand.vmem [shape: f32[2,32,288], index: 0, kind: input, shape index: {}]
  %s1 = inlined_call_operand.vmem [shape: f32[32,1], index: 1, kind: input, shape index: {}]
  %s2 = inlined_call_operand.vmem [shape: f32[32,1], index: 2, kind: input, shape index: {}]
  %s3 = inlined_call_operand.vmem [shape: f32[2,32,288], index: 3, kind: output, shape index: {}]
  %s4 = sld [smem:[#allocation0]]
  $region45: #{down_forward.5} parent=0
    _
  %s6 = ssub.s32 1, %s4
  %s7 = scalar_select 0, %s6, %s4
  loop: start=0, step=1, limit=4
  $region2: #{down_forward.5} parent=0 // loop_pre_header
    _
  $region3: #{down_forward.5} parent=0 // loop_header
    %s9 = sphi 0, %s13
    %p10 = scmp.ge.s32.totalorder %s9, 4
    %s19 = sphi 0, %s21
    %s22 = sphi 0, %s19
    %s23 = sphi 0, %s22
    %s39 = sphi 0, %s23
    %s43 = sphi 0, %s43
    %s45 = sphi 0, %s43
    %s46 = sphi 0, %s45
    %s60 = sphi 0, %s46
    %s64 = sphi 0, %s64
    %s66 = sphi 0, %s64
    %s67 = sphi 0, %s66
    %s81 = sphi 0, %s67
    %s87 = sphi 0, %s89
    %s90 = sphi 0, %s87
    %s91 = sphi 0, %s90
    %s107 = sphi 0, %s91
  $region4: #{down_forward.5} parent=0 // loop_header_branch
    %12 = sbr.rel (%p10) target = $region8
  $region5: #{down_forward.5} parent=0 // loop_body
    %s14 = ssub.s32 %s9, 1
    %s15 = ssub.s32 %s9, 2
    %s16 = sadd.s32 %s9, 1
    %s17 = ssub.s32 %s9, %s16
    %p18 = scmp.eq.s32.totalorder %s17, 0
    %s20 = sadd.s32 %s19, 1
    %s21 = scalar_select %p18, %s19, %s20
    %p24 = pneg %p18
    %p25 = scmp.eq.s32.totalorder %s9, 1
    %p26 = por %p24, %p25
    %p27 = scmp.ne.s32.totalorder %s19, %s22
    %p28 = scmp.eq.s32.totalorder %s9, 0
    %p29 = por %p27, %p28
    %p30 = scmp.ne.s32.totalorder %s19, %s22
    %p31 = scmp.eq.s32.totalorder %s14, 1
    %p32 = por %p30, %p31
    %p33 = scmp.ne.s32.totalorder %s22, %s23
    %p34 = scmp.eq.s32.totalorder %s14, 0
    %p35 = por %p33, %p34
    %p36 = scmp.ne.s32.totalorder %s22, %s23
    %p37 = scmp.eq.s32.totalorder %s15, 1
    %p38 = por %p36, %p37
    %p40 = scmp.ne.s32.totalorder %s23, %s39
    %p41 = scmp.eq.s32.totalorder %s15, 0
    %p42 = por %p40, %p41
    %s44 = sadd.s32 %s43, 1
    %p47 = scmp.eq.s32.totalorder %s9, 1
    %p48 = scmp.ne.s32.totalorder %s43, %s45
    %p49 = scmp.eq.s32.totalorder %s9, 0
    %p50 = por %p48, %p49
    %p51 = scmp.ne.s32.totalorder %s43, %s45
    %p52 = scmp.eq.s32.totalorder %s14, 1
    %p53 = por %p51, %p52
    %p54 = scmp.ne.s32.totalorder %s45, %s46
    %p55 = scmp.eq.s32.totalorder %s14, 0
    %p56 = por %p54, %p55
    %p57 = scmp.ne.s32.totalorder %s45, %s46
    %p58 = scmp.eq.s32.totalorder %s15, 1
    %p59 = por %p57, %p58
    %p61 = scmp.ne.s32.totalorder %s46, %s60
    %p62 = scmp.eq.s32.totalorder %s15, 0
    %p63 = por %p61, %p62
    %s65 = sadd.s32 %s64, 1
    %p68 = scmp.eq.s32.totalorder %s9, 1
    %p69 = scmp.ne.s32.totalorder %s64, %s66
    %p70 = scmp.eq.s32.totalorder %s9, 0
    %p71 = por %p69, %p70
    %p72 = scmp.ne.s32.totalorder %s64, %s66
    %p73 = scmp.eq.s32.totalorder %s14, 1
    %p74 = por %p72, %p73
    %p75 = scmp.ne.s32.totalorder %s66, %s67
    %p76 = scmp.eq.s32.totalorder %s14, 0
    %p77 = por %p75, %p76
    %p78 = scmp.ne.s32.totalorder %s66, %s67
    %p79 = scmp.eq.s32.totalorder %s15, 1
    %p80 = por %p78, %p79
    %p82 = scmp.ne.s32.totalorder %s67, %s81
    %p83 = scmp.eq.s32.totalorder %s15, 0
    %p84 = por %p82, %p83
    %s85 = ssub.s32 %s9, %s16
    %p86 = scmp.eq.s32.totalorder %s85, 0
    %s88 = sadd.s32 %s87, 1
    %s89 = scalar_select %p86, %s87, %s88
    %p92 = pneg %p86
    %p93 = scmp.eq.s32.totalorder %s9, 1
    %p94 = por %p92, %p93
    %p95 = scmp.ne.s32.totalorder %s87, %s90
    %p96 = scmp.eq.s32.totalorder %s9, 0
    %p97 = por %p95, %p96
    %p98 = scmp.ne.s32.totalorder %s87, %s90
    %p99 = scmp.eq.s32.totalorder %s14, 1
    %p100 = por %p98, %p99
    %p101 = scmp.ne.s32.totalorder %s90, %s91
    %p102 = scmp.eq.s32.totalorder %s14, 0
    %p103 = por %p101, %p102
    %p104 = scmp.ne.s32.totalorder %s90, %s91
    %p105 = scmp.eq.s32.totalorder %s15, 1
    %p106 = por %p104, %p105
    %p108 = scmp.ne.s32.totalorder %s91, %s107
    %p109 = scmp.eq.s32.totalorder %s15, 0
    %p110 = por %p108, %p109
    %p111 = scmp.le.s32.totalorder 1, %s9
    %p112 = scmp.lt.s32.totalorder %s9, 3
    %p113 = pnand %p111, %p112
    %p114 = pneg %p113
    // Predicated region
    $region9: #{down_forward.5} parent=5 // pred_check
      _
    $region10: #{down_forward.5} parent=5 // pred_check_branch
      %116 = sbr.rel (%p113) target = $region12
    $region11: #{down_forward.5} parent=5 // pred_region
      %s117 = ssub.s32 %s9, 1
      // Predicated region
      $region13: #{down_forward.5} parent=11 // pred_check
        %p118 = pneg %p56
      $region14: #{down_forward.5} parent=11 // pred_check_branch
        %120 = sbr.rel (%p118) target = $region16
      $region15: #{down_forward.5} parent=11 // pred_region
        _
      $region16: #{down_forward.5} parent=11 // pred_fallthru
        _
      // Predicated region
      $region17: #{down_forward.5} parent=11 // pred_check
        %p121 = pneg %p77
      $region18: #{down_forward.5} parent=11 // pred_check_branch
        %123 = sbr.rel (%p121) target = $region20
      $region19: #{down_forward.5} parent=11 // pred_region
        _
      $region20: #{down_forward.5} parent=11 // pred_fallthru
        _
    $region12: #{down_forward.5} parent=5 // pred_fallthru
      _
    %p124 = scmp.lt.s32.totalorder %s9, 2
    // Predicated region
    $region21: #{down_forward.5} parent=5 // pred_check
      %p125 = pneg %p124
    $region22: #{down_forward.5} parent=5 // pred_check_branch
      %127 = sbr.rel (%p125) target = $region24
    $region23: #{down_forward.5} parent=5 // pred_region
      // Predicated region
      $region25: #{down_forward.5} parent=23 // pred_check
        %p128 = pneg %p29
      $region26: #{down_forward.5} parent=23 // pred_check_branch
        %130 = sbr.rel (%p128) target = $region28
      $region27: #{down_forward.5} parent=23 // pred_region
        %p131 = scmp.lt.s32.totalorder %s9, 1
        %s132 = scalar_select %p131, %s9, 1
        %s133 = smul.addr %s132, 12
        %s134 = smul.addr %s133, 8
        %s135 = scalar_lea.vmem %s0, %s134
      $region28: #{down_forward.5} parent=23 // pred_fallthru
        _
    $region24: #{down_forward.5} parent=5 // pred_fallthru
      _
    %p136 = scmp.le.s32.totalorder 1, %s9
    %p137 = scmp.lt.s32.totalorder %s9, 3
    %p138 = pnand %p136, %p137
    %p139 = pneg %p138
    // Predicated region
    $region29: #{down_forward.5} parent=5 // pred_check
      _
    $region30: #{down_forward.5} parent=5 // pred_check_branch
      %141 = sbr.rel (%p138) target = $region32
    $region31: #{down_forward.5} parent=5 // pred_region
      %s142 = ssub.s32 %s9, 1
      %p143 = scmp.lt.s32.totalorder %s14, 1
      %s144 = scalar_select %p143, %s14, 1
      %s145 = smul.addr %s144, 12
      %s146 = smul.addr %s145, 8
      %s147 = scalar_lea.vmem %s0, %s146
      %p148 = pneg %p35
      %p149 = pneg %p32
      %p150 = pneg %p56
      %p151 = pneg %p53
      %p152 = pneg %p77
      %p153 = pneg %p74
      %p154 = pneg %p103
      %p155 = pneg %p100
      %p156 = scmp.lt.s32.totalorder %s14, 1
      %s157 = scalar_select %p156, %s14, 1
      %s158 = smul.addr %s157, 12
      %s159 = smul.addr %s158, 8
      %s160 = scalar_lea.vmem %s3, %s159
      %p161 = scmp.lt.s32.totalorder %s14, 1
      %s162 = scalar_select %p161, %s14, 1
      %s163 = smul.addr %s162, 12
      %s164 = smul.addr %s163, 8
      %s165 = scalar_lea.vmem %s0, %s164
      %p166 = scmp.lt.s32.totalorder %s14, 1
      %s167 = scalar_select %p166, %s14, 1
      %s168 = smul.addr %s167, 12
      %s169 = smul.addr %s168, 8
      %s170 = scalar_lea.vmem %s3, %s169
      %v171 = vld [vmem:[%s165] sm:$0xff]
      %v172 = vld [vmem:[%s165 + $0x8] sm:$0xff]
      %v173 = vld [vmem:[%s165 + $0x10] sm:$0xff]
      %v174 = vld [vmem:[%s165 + $0x18] sm:$0xff]
      %v175 = vld [vmem:[%s165 + $0x20] sm:$0xff]
      %v176 = vld [vmem:[%s165 + $0x28] sm:$0xff]
      %v177 = vld [vmem:[%s165 + $0x30] sm:$0xff]
      %v178 = vld [vmem:[%s165 + $0x38] sm:$0xff]
      %v179 = vld [vmem:[%s165 + $0x40] sm:$0xff]
      %v180 = vld [vmem:[%s165 + $0x48] sm:$0xff]
      %v181 = vld [vmem:[%s165 + $0x50] sm:$0xff]
      %v182 = vld [vmem:[%s165 + $0x58] sm:$0xff]
      %v183 = vld [vmem:[%s1] sm:$0xff]
      %v184 = vld [vmem:[%s1 + $0x8] sm:$0xff]
      %v185 = vld [vmem:[%s1 + $0x10] sm:$0xff]
      %v186 = vld [vmem:[%s1 + $0x18] sm:$0xff]
      %188 = vset.pattern.permute.xlu0 0
      %189 = vperm.xlu0 %188, %v183
      %v190 = vpop.permute.xlu0 %189
      %193 = vset.pattern.permute.xlu0 0
      %194 = vperm.xlu0 %193, %v184
      %v195 = vpop.permute.xlu0 %194
      %198 = vset.pattern.permute.xlu0 0
      %199 = vperm.xlu0 %198, %v185
      %v200 = vpop.permute.xlu0 %199
      %203 = vset.pattern.permute.xlu0 0
      %204 = vperm.xlu0 %203, %v186
      %v205 = vpop.permute.xlu0 %204
      %v207 = vmul.f32 %v171, %v190
      %v208 = vmul.f32 %v172, %v190
      %v209 = vmul.f32 %v173, %v190
      %v210 = vmul.f32 %v174, %v195
      %v211 = vmul.f32 %v175, %v195
      %v212 = vmul.f32 %v176, %v195
      %v213 = vmul.f32 %v177, %v200
      %v214 = vmul.f32 %v178, %v200
      %v215 = vmul.f32 %v179, %v200
      %v216 = vmul.f32 %v180, %v205
      %v217 = vmul.f32 %v181, %v205
      %v218 = vmul.f32 %v182, %v205
      %v219 = vld [vmem:[%s2] sm:$0xff]
      %v220 = vld [vmem:[%s2 + $0x8] sm:$0xff]
      %v221 = vld [vmem:[%s2 + $0x10] sm:$0xff]
      %v222 = vld [vmem:[%s2 + $0x18] sm:$0xff]
      %224 = vset.pattern.permute.xlu0 0
      %225 = vperm.xlu0 %224, %v219
      %v226 = vpop.permute.xlu0 %225
      %229 = vset.pattern.permute.xlu0 0
      %230 = vperm.xlu0 %229, %v220
      %v231 = vpop.permute.xlu0 %230
      %234 = vset.pattern.permute.xlu0 0
      %235 = vperm.xlu0 %234, %v221
      %v236 = vpop.permute.xlu0 %235
      %239 = vset.pattern.permute.xlu0 0
      %240 = vperm.xlu0 %239, %v222
      %v241 = vpop.permute.xlu0 %240
      %v243 = vadd.f32 %v207, %v226
      %v244 = vadd.f32 %v208, %v226
      %v245 = vadd.f32 %v209, %v226
      %v246 = vadd.f32 %v210, %v231
      %v247 = vadd.f32 %v211, %v231
      %v248 = vadd.f32 %v212, %v231
      %v249 = vadd.f32 %v213, %v236
      %v250 = vadd.f32 %v214, %v236
      %v251 = vadd.f32 %v215, %v236
      %v252 = vadd.f32 %v216, %v241
      %v253 = vadd.f32 %v217, %v241
      %v254 = vadd.f32 %v218, %v241
      %v255 = vmax.f32 %v243, 0.0
      %v256 = vmax.f32 %v244, 0.0
      %v257 = vmax.f32 %v245, 0.0
      %v258 = vmax.f32 %v246, 0.0
      %v259 = vmax.f32 %v247, 0.0
      %v260 = vmax.f32 %v248, 0.0
      %v261 = vmax.f32 %v249, 0.0
      %v262 = vmax.f32 %v250, 0.0
      %v263 = vmax.f32 %v251, 0.0
      %v264 = vmax.f32 %v252, 0.0
      %v265 = vmax.f32 %v253, 0.0
      %v266 = vmax.f32 %v254, 0.0
      %267 = vst [vmem:[%s170] sm:$0xff] %v255
      %268 = vst [vmem:[%s170 + $0x8] sm:$0xff] %v256
      %vm269 = vcmask 261120
      %270 = vst.msk [vmem:[%s170 + $0x10] sm:$0xff] %vm269, %v257
      %271 = vst [vmem:[%s170 + $0x18] sm:$0xff] %v258
      %272 = vst [vmem:[%s170 + $0x20] sm:$0xff] %v259
      %273 = vst.msk [vmem:[%s170 + $0x28] sm:$0xff] %vm269, %v260
      %274 = vst [vmem:[%s170 + $0x30] sm:$0xff] %v261
      %275 = vst [vmem:[%s170 + $0x38] sm:$0xff] %v262
      %276 = vst.msk [vmem:[%s170 + $0x40] sm:$0xff] %vm269, %v263
      %277 = vst [vmem:[%s170 + $0x48] sm:$0xff] %v264
      %278 = vst [vmem:[%s170 + $0x50] sm:$0xff] %v265
      %279 = vst.msk [vmem:[%s170 + $0x58] sm:$0xff] %vm269, %v266
      %p280 = scmp.lt.s32.totalorder %s14, 1
      %s281 = scalar_select %p280, %s14, 1
      %s282 = smul.addr %s281, 12
      %s283 = smul.addr %s282, 8
      %s284 = scalar_lea.vmem %s3, %s283
      // Predicated region
      $region33: #{down_forward.5} parent=31 // pred_check
        %p285 = pneg %p100
      $region34: #{down_forward.5} parent=31 // pred_check_branch
        %287 = sbr.rel (%p285) target = $region36
      $region35: #{down_forward.5} parent=31 // pred_region
        _
      $region36: #{down_forward.5} parent=31 // pred_fallthru
        _
    $region32: #{down_forward.5} parent=5 // pred_fallthru
      _
    %p288 = scmp.le.s32.totalorder 2, %s9
    // Predicated region
    $region37: #{down_forward.5} parent=5 // pred_check
      %p289 = pneg %p288
    $region38: #{down_forward.5} parent=5 // pred_check_branch
      %291 = sbr.rel (%p289) target = $region40
    $region39: #{down_forward.5} parent=5 // pred_region
      %s292 = ssub.s32 %s9, 2
      // Predicated region
      $region41: #{down_forward.5} parent=39 // pred_check
        %p293 = pneg %p106
      $region42: #{down_forward.5} parent=39 // pred_check_branch
        %295 = sbr.rel (%p293) target = $region44
      $region43: #{down_forward.5} parent=39 // pred_region
        %p296 = scmp.lt.s32.totalorder %s15, 1
        %s297 = scalar_select %p296, %s15, 1
        %s298 = smul.addr %s297, 12
        %s299 = smul.addr %s298, 8
        %s300 = scalar_lea.vmem %s3, %s299
      $region44: #{down_forward.5} parent=39 // pred_fallthru
        _
    $region40: #{down_forward.5} parent=5 // pred_fallthru
      _
  $region6: #{down_forward.5} parent=0 // loop_footer
    %s13 = sadd.s32 1, %s9
  $region7: #{down_forward.5} parent=0 // loop_footer_branch
    %8 = sbr.rel target = $region3
  $region8: #{down_forward.5} parent=0 // loop_exit
    _

</llo_original>
